<compile_context>
chip_gen: v5e
topology: v5e:2x2
jax: 0.10.0
libtpu: 0.0.40
codegen_flags: <defaults>
</compile_context>

<pallas_src>
import jax
import jax.numpy as jnp
from jax.experimental import pallas as pl
from jax.experimental.pallas import tpu as pltpu


def _decoder_steps_kernel(xs_ref, h_init_ref, c_init_ref, w_ref, v_ref,
                          preds_ref, h_out_ref, c_out_ref,
                          in0_sc, hall_sc):
    TB = xs_ref.shape[0]
    B = h_init_ref.shape[1]
    H = h_init_ref.shape[2]
    T = TB // B
    G = 4 * H

    # ---- packed parameters, hoisted once (small: ~7 vregs resident) ----
    w0 = w_ref[0:H, :]                 # [H, 4H]   whh0^T, gate order i|f|g|o
    w1 = w_ref[H:3 * H, :]             # [2H, 4H]  [wih1^T ; whh1^T]
    wih0_row = v_ref[0:1, :]           # [1, 4H]   layer-0 W_ih (E == 1)
    b0_row = v_ref[1:2, :]             # [1, 4H]   b_ih0 + b_hh0
    b1_row = v_ref[2:3, :]             # [1, 4H]   b_ih1 + b_hh1
    lin_w = v_ref[3:4, 0:H]            # [1, H]    output Linear weight
    emb_w = v_ref[3:4, H:H + 1]        # [1, 1]
    emb_b = v_ref[3:4, H + 1:H + 2]    # [1, 1]
    lin_b = v_ref[3:4, H + 2:H + 3]    # [1, 1]

    # Hoisted broadcast: one (B, 4H) bias slab instead of a per-gate/per-step
    # broadcast_in_dim inside the loop.
    b1_b = jnp.broadcast_to(b1_row, (B, G))

    # ---- precompute layer-0 input contribution for ALL T steps (state-free) ----
    # embedding Linear(1->1) + ReLU (dropout = identity in eval), then folded
    # with W_ih0 and the layer-0 bias.  Pure VPU; off the recurrence chain.
    x_all = xs_ref[...]                                     # [T*B, 1]
    emb_all = jnp.maximum(x_all * emb_w + emb_b, 0.0)       # [T*B, 1]
    in0_sc[...] = emb_all * wih0_row + b0_row               # [T*B, 4H]

    # ---- initial LSTM state, carried as values (vregs) across the unrolled loop ----
    h0 = h_init_ref[0]
    h1 = h_init_ref[1]
    c0 = c_init_ref[0]
    c1 = c_init_ref[1]

    def gate_acts(g):
        i = jax.nn.sigmoid(g[:, 0:H])
        f = jax.nn.sigmoid(g[:, H:2 * H])
        gg = jnp.tanh(g[:, 2 * H:3 * H])
        o = jax.nn.sigmoid(g[:, 3 * H:4 * H])
        return i, f, gg, o

    # Fully unrolled time loop (T static): exactly 2 MXU matmuls per step.
    for t in range(T):
        # ---- LSTM layer 0: one packed [B,H] @ [H,4H] matmul ----
        g0 = in0_sc[t * B:(t + 1) * B, :] + jnp.dot(
            h0, w0, preferred_element_type=jnp.float32)     # [B, 4H]
        i0, f0, gg0, o0 = gate_acts(g0)
        c0 = f0 * c0 + i0 * gg0
        h0 = o0 * jnp.tanh(c0)
        # inter-layer dropout: identity in eval mode

        # ---- LSTM layer 1: one packed [B,2H] @ [2H,4H] matmul ----
        s1 = jnp.concatenate([h0, h1], axis=-1)             # [B, 2H]
        g1 = b1_b + jnp.dot(s1, w1, preferred_element_type=jnp.float32)
        i1, f1, gg1, o1 = gate_acts(g1)
        c1 = f1 * c1 + i1 * gg1
        h1 = o1 * jnp.tanh(c1)

        # Only work that does not feed the recurrence: stash h1 for later.
        hall_sc[t * B:(t + 1) * B, :] = h1

    # ---- output projection hoisted out of the loop: one mul + reduce + store ----
    preds_ref[...] = jnp.sum(hall_sc[...] * lin_w, axis=-1, keepdims=True) + lin_b

    h_out_ref[0] = h0
    h_out_ref[1] = h1
    c_out_ref[0] = c0
    c_out_ref[1] = c1


def decoder_decode_steps(xs, hidden, cell, w_slab, v_slab):
    """Run T consecutive Decoder.forward steps in one kernel.

    xs:     [T, B, O]   per-step inputs (O == 1)
    hidden: [L, B, H]   initial hidden state (L == 2)
    cell:   [L, B, H]   initial cell state
    Returns (preds [T, B, O], hidden_final [L, B, H], cell_final [L, B, H]).
    """
    T, B, O = xs.shape
    L, _, H = hidden.shape
    assert L == 2 and O == 1, "kernel is specialized for n_layers=2, output_size=1"

    xs2 = xs.reshape(T * B, O).astype(jnp.float32)

    vmem = pl.BlockSpec(memory_space=pltpu.MemorySpace.VMEM)
    out_shapes = (
        jax.ShapeDtypeStruct((T * B, O), jnp.float32),
        jax.ShapeDtypeStruct((L, B, H), jnp.float32),
        jax.ShapeDtypeStruct((L, B, H), jnp.float32),
    )
    preds2, h_out, c_out = pl.pallas_call(
        _decoder_steps_kernel,
        out_shape=out_shapes,
        in_specs=[vmem] * 5,
        out_specs=(vmem, vmem, vmem),
        scratch_shapes=[
            pltpu.VMEM((T * B, 4 * H), jnp.float32),   # precomputed layer-0 inputs
            pltpu.VMEM((T * B, H), jnp.float32),       # h1 history for output proj
        ],
    )(xs2, hidden, cell, w_slab, v_slab)
    return preds2.reshape(T, B, O), h_out, c_out


def decoder_forward(x, hidden, cell, w_slab, v_slab):
    """Exactly one Decoder.forward step (matches the PyTorch module signature)."""
    preds, h, c = decoder_decode_steps(x[None], hidden, cell, w_slab, v_slab)
    return preds[0], h, c


# ----------------------------- host-side parameter handling -----------------------------

def init_params(key, output_size=1, embedding_size=1, hidden_size=16):
    """PyTorch-layout parameters with uniform(-1/sqrt(fan_in), ...) init."""
    O, E, H = output_size, embedding_size, hidden_size
    ks = jax.random.split(key, 12)

    def u(k, shape, fan_in):
        b = 1.0 / (fan_in ** 0.5)
        return jax.random.uniform(k, shape, jnp.float32, -b, b)

    return {
        "emb_w": u(ks[0], (E, O), O),       # nn.Linear(O, E).weight
        "emb_b": u(ks[1], (E,), O),
        "wih0": u(ks[2], (4 * H, E), H),    # LSTM layer 0
        "whh0": u(ks[3], (4 * H, H), H),
        "bih0": u(ks[4], (4 * H,), H),
        "bhh0": u(ks[5], (4 * H,), H),
        "wih1": u(ks[6], (4 * H, H), H),    # LSTM layer 1
        "whh1": u(ks[7], (4 * H, H), H),
        "bih1": u(ks[8], (4 * H,), H),
        "bhh1": u(ks[9], (4 * H,), H),
        "lin_w": u(ks[10], (O, H), H),      # nn.Linear(H, O).weight
        "lin_b": u(ks[11], (O,), H),
    }


def pack_params(p, hidden_size=16):
    """Pack torch-layout params into 2 slabs with gate-packed, pre-transposed weights.

    w_slab: [3H, 4H]  rows 0..H-1  = whh0^T   (layer-0 recurrent, gates i|f|g|o)
                      rows H..3H-1 = [wih1^T ; whh1^T]  (layer-1 stacked)
    v_slab: [4, 4H]   row 0 = wih0[:,0] (E==1), row 1 = b0, row 2 = b1,
                      row 3 = [lin_w (H) | emb_w, emb_b, lin_b | zeros]
    """
    H = hidden_size
    w0 = p["whh0"].T                                               # (H, 4H)
    w1 = jnp.concatenate([p["wih1"].T, p["whh1"].T], axis=0)       # (2H, 4H)
    w_slab = jnp.concatenate([w0, w1], axis=0).astype(jnp.float32)  # (3H, 4H)

    b0 = (p["bih0"] + p["bhh0"]).astype(jnp.float32)               # (4H,)
    b1 = (p["bih1"] + p["bhh1"]).astype(jnp.float32)               # (4H,)
    row0 = p["wih0"][:, 0].astype(jnp.float32)                     # (4H,)  E == 1
    row3 = jnp.zeros((4 * H,), jnp.float32)
    row3 = row3.at[0:H].set(p["lin_w"][0])
    row3 = row3.at[H + 0].set(p["emb_w"][0, 0])
    row3 = row3.at[H + 1].set(p["emb_b"][0])
    row3 = row3.at[H + 2].set(p["lin_b"][0])
    v_slab = jnp.stack([row0, b0, b1, row3]).astype(jnp.float32)   # (4, 4H)
    return w_slab, v_slab


# ----------------------------- pure-JAX reference (eval mode) -----------------------------

def decoder_reference_steps(xs, hidden, cell, p):
    H = hidden.shape[-1]

    def lstm_cell(inp, h, c, wih, whh, bih, bhh):
        g = inp @ wih.T + h @ whh.T + bih + bhh
        i = jax.nn.sigmoid(g[:, 0 * H:1 * H])
        f = jax.nn.sigmoid(g[:, 1 * H:2 * H])
        gg = jnp.tanh(g[:, 2 * H:3 * H])
        o = jax.nn.sigmoid(g[:, 3 * H:4 * H])
        c_new = f * c + i * gg
        return o * jnp.tanh(c_new), c_new

    h0, h1 = hidden[0], hidden[1]
    c0, c1 = cell[0], cell[1]
    preds = []
    for t in range(xs.shape[0]):
        emb = jnp.maximum(xs[t] @ p["emb_w"].T + p["emb_b"], 0.0)
        h0, c0 = lstm_cell(emb, h0, c0, p["wih0"], p["whh0"], p["bih0"], p["bhh0"])
        h1, c1 = lstm_cell(h0, h1, c1, p["wih1"], p["whh1"], p["bih1"], p["bhh1"])
        preds.append(h1 @ p["lin_w"].T + p["lin_b"])
    return jnp.stack(preds), jnp.stack([h0, h1]), jnp.stack([c0, c1])


if __name__ == "__main__":
    B, T, O, E, H, L = 8, 16, 1, 1, 16, 2
    key = jax.random.PRNGKey(0)
    k_x, k_h, k_c, k_p = jax.random.split(key, 4)

    xs = jax.random.normal(k_x, (T, B, O), jnp.float32)
    hidden = jax.random.normal(k_h, (L, B, H), jnp.float32)
    cell = jax.random.normal(k_c, (L, B, H), jnp.float32)

    params = init_params(k_p, output_size=O, embedding_size=E, hidden_size=H)
    w_slab, v_slab = pack_params(params, hidden_size=H)

    # Multi-step decode (T consecutive Decoder.forward applications) in one kernel.
    preds, h_out, c_out = decoder_decode_steps(xs, hidden, cell, w_slab, v_slab)
    jax.block_until_ready((preds, h_out, c_out))

    preds_r, h_r, c_r = decoder_reference_steps(xs, hidden, cell, params)
    assert preds.shape == (T, B, O)
    assert h_out.shape == (L, B, H) and c_out.shape == (L, B, H)
    assert jnp.allclose(preds, preds_r, atol=1e-4)
    assert jnp.allclose(h_out, h_r, atol=1e-4)
    assert jnp.allclose(c_out, c_r, atol=1e-4)

    # Single-step path == the PyTorch module's forward signature.
    pred1, h1s, c1s = decoder_forward(xs[0], hidden, cell, w_slab, v_slab)
    pred1_r, h1_r, c1_r = decoder_reference_steps(xs[:1], hidden, cell, params)
    assert jnp.allclose(pred1, pred1_r[0], atol=1e-4)
    assert jnp.allclose(h1s, h1_r, atol=1e-4)
    assert jnp.allclose(c1s, c1_r, atol=1e-4)

    print("KERNEL_OK")
</pallas_src>

<mosaic_0001>
module attributes {stable_mosaic.version = 11 : i64} {
  func.func @_decoder_steps_kernel(%arg0: memref<128x1xf32, #tpu.memory_space<vmem>>, %arg1: memref<2x8x16xf32, #tpu.memory_space<vmem>>, %arg2: memref<2x8x16xf32, #tpu.memory_space<vmem>>, %arg3: memref<48x64xf32, #tpu.memory_space<vmem>>, %arg4: memref<4x64xf32, #tpu.memory_space<vmem>>, %arg5: memref<128x1xf32, #tpu.memory_space<vmem>>, %arg6: memref<2x8x16xf32, #tpu.memory_space<vmem>>, %arg7: memref<2x8x16xf32, #tpu.memory_space<vmem>>, %arg8: memref<128x64xf32, #tpu.memory_space<vmem>>, %arg9: memref<128x16xf32, #tpu.memory_space<vmem>>) attributes {dimension_semantics = [], scalar_prefetch = 0 : i64, scratch_operands = 2 : i64, tpu.core_type = #tpu.core_type<tc>} {
    %c0 = arith.constant 0 : index
    %c0_0 = arith.constant 0 : index
    %0 = vector.load %arg3[%c0, %c0_0] : memref<48x64xf32, #tpu.memory_space<vmem>>, vector<16x64xf32>
    %c16 = arith.constant 16 : index
    %c0_1 = arith.constant 0 : index
    %1 = vector.load %arg3[%c16, %c0_1] : memref<48x64xf32, #tpu.memory_space<vmem>>, vector<32x64xf32>
    %c0_2 = arith.constant 0 : index
    %c0_3 = arith.constant 0 : index
    %2 = vector.load %arg4[%c0_2, %c0_3] : memref<4x64xf32, #tpu.memory_space<vmem>>, vector<1x64xf32>
    %c1 = arith.constant 1 : index
    %c0_4 = arith.constant 0 : index
    %3 = vector.load %arg4[%c1, %c0_4] : memref<4x64xf32, #tpu.memory_space<vmem>>, vector<1x64xf32>
    %c2 = arith.constant 2 : index
    %c0_5 = arith.constant 0 : index
    %4 = vector.load %arg4[%c2, %c0_5] : memref<4x64xf32, #tpu.memory_space<vmem>>, vector<1x64xf32>
    %c3 = arith.constant 3 : index
    %c0_6 = arith.constant 0 : index
    %5 = vector.load %arg4[%c3, %c0_6] : memref<4x64xf32, #tpu.memory_space<vmem>>, vector<1x16xf32>
    %c3_7 = arith.constant 3 : index
    %c16_8 = arith.constant 16 : index
    %6 = vector.load %arg4[%c3_7, %c16_8] : memref<4x64xf32, #tpu.memory_space<vmem>>, vector<1x1xf32>
    %c3_9 = arith.constant 3 : index
    %c17 = arith.constant 17 : index
    %7 = vector.load %arg4[%c3_9, %c17] : memref<4x64xf32, #tpu.memory_space<vmem>>, vector<1x1xf32>
    %c3_10 = arith.constant 3 : index
    %c18 = arith.constant 18 : index
    %8 = vector.load %arg4[%c3_10, %c18] : memref<4x64xf32, #tpu.memory_space<vmem>>, vector<1x1xf32>
    %9 = vector.shape_cast %4 : vector<1x64xf32> to vector<1x64xf32>
    %10 = vector.broadcast %9 : vector<1x64xf32> to vector<8x64xf32>
    %c0_11 = arith.constant 0 : index
    %c0_12 = arith.constant 0 : index
    %11 = vector.load %arg0[%c0_11, %c0_12] : memref<128x1xf32, #tpu.memory_space<vmem>>, vector<128x1xf32>
    %12 = vector.broadcast %6 : vector<1x1xf32> to vector<128x1xf32>
    %13 = arith.mulf %11, %12 : vector<128x1xf32>
    %14 = vector.broadcast %7 : vector<1x1xf32> to vector<128x1xf32>
    %15 = arith.addf %13, %14 : vector<128x1xf32>
    %cst = arith.constant 0.000000e+00 : f32
    %16 = vector.broadcast %cst : f32 to vector<128x1xf32>
    %17 = arith.maximumf %15, %16 : vector<128x1xf32>
    %18 = vector.broadcast %17 : vector<128x1xf32> to vector<128x64xf32>
    %19 = vector.broadcast %2 : vector<1x64xf32> to vector<128x64xf32>
    %20 = arith.mulf %18, %19 : vector<128x64xf32>
    %21 = vector.broadcast %3 : vector<1x64xf32> to vector<128x64xf32>
    %22 = arith.addf %20, %21 : vector<128x64xf32>
    %c0_13 = arith.constant 0 : index
    %c0_14 = arith.constant 0 : index
    %23 = vector.load %arg8[%c0_13, %c0_14] : memref<128x64xf32, #tpu.memory_space<vmem>>, vector<128x64xf32>
    tpu.vector_store %arg8[%c0_13, %c0_14], %22 {strides = array<i32>} : memref<128x64xf32, #tpu.memory_space<vmem>>, vector<128x64xf32>,
    %c0_15 = arith.constant 0 : index
    %c0_16 = arith.constant 0 : index
    %c0_17 = arith.constant 0 : index
    %24 = vector.load %arg1[%c0_15, %c0_16, %c0_17] : memref<2x8x16xf32, #tpu.memory_space<vmem>>, vector<1x8x16xf32>
    %25 = vector.shape_cast %24 : vector<1x8x16xf32> to vector<8x16xf32>
    %c1_18 = arith.constant 1 : index
    %c0_19 = arith.constant 0 : index
    %c0_20 = arith.constant 0 : index
    %26 = vector.load %arg1[%c1_18, %c0_19, %c0_20] : memref<2x8x16xf32, #tpu.memory_space<vmem>>, vector<1x8x16xf32>
    %27 = vector.shape_cast %26 : vector<1x8x16xf32> to vector<8x16xf32>
    %c0_21 = arith.constant 0 : index
    %c0_22 = arith.constant 0 : index
    %c0_23 = arith.constant 0 : index
    %28 = vector.load %arg2[%c0_21, %c0_22, %c0_23] : memref<2x8x16xf32, #tpu.memory_space<vmem>>, vector<1x8x16xf32>
    %29 = vector.shape_cast %28 : vector<1x8x16xf32> to vector<8x16xf32>
    %c1_24 = arith.constant 1 : index
    %c0_25 = arith.constant 0 : index
    %c0_26 = arith.constant 0 : index
    %30 = vector.load %arg2[%c1_24, %c0_25, %c0_26] : memref<2x8x16xf32, #tpu.memory_space<vmem>>, vector<1x8x16xf32>
    %31 = vector.shape_cast %30 : vector<1x8x16xf32> to vector<8x16xf32>
    %c0_27 = arith.constant 0 : index
    %c0_28 = arith.constant 0 : index
    %32 = vector.load %arg8[%c0_27, %c0_28] : memref<128x64xf32, #tpu.memory_space<vmem>>, vector<8x64xf32>
    %cst_29 = arith.constant dense<0.000000e+00> : vector<8x64xf32>
    %33 = tpu.matmul %25, %0, %cst_29 {dimension_numbers = #tpu.dot_dimension_numbers<[1], [0], [0], [1], [0, 0, 1, 1], [], []>} : vector<8x16xf32>, vector<16x64xf32>, vector<8x64xf32> -> vector<8x64xf32>
    %34 = arith.addf %32, %33 : vector<8x64xf32>
    %35 = vector.extract_strided_slice %34 {offsets = [0, 0], sizes = [8, 16], strides = [1, 1]} : vector<8x64xf32> to vector<8x16xf32>
    %36 = arith.negf %35 : vector<8x16xf32>
    %37 = math.exp %36 : vector<8x16xf32>
    %cst_30 = arith.constant 1.000000e+00 : f32
    %38 = vector.broadcast %cst_30 : f32 to vector<8x16xf32>
    %39 = arith.addf %38, %37 : vector<8x16xf32>
    %40 = arith.divf %38, %39 : vector<8x16xf32>
    %41 = vector.extract_strided_slice %34 {offsets = [0, 16], sizes = [8, 16], strides = [1, 1]} : vector<8x64xf32> to vector<8x16xf32>
    %42 = arith.negf %41 : vector<8x16xf32>
    %43 = math.exp %42 : vector<8x16xf32>
    %cst_31 = arith.constant 1.000000e+00 : f32
    %44 = vector.broadcast %cst_31 : f32 to vector<8x16xf32>
    %45 = arith.addf %44, %43 : vector<8x16xf32>
    %46 = arith.divf %44, %45 : vector<8x16xf32>
    %47 = vector.extract_strided_slice %34 {offsets = [0, 32], sizes = [8, 16], strides = [1, 1]} : vector<8x64xf32> to vector<8x16xf32>
    %48 = math.tanh %47 : vector<8x16xf32>
    %49 = vector.extract_strided_slice %34 {offsets = [0, 48], sizes = [8, 16], strides = [1, 1]} : vector<8x64xf32> to vector<8x16xf32>
    %50 = arith.negf %49 : vector<8x16xf32>
    %51 = math.exp %50 : vector<8x16xf32>
    %cst_32 = arith.constant 1.000000e+00 : f32
    %52 = vector.broadcast %cst_32 : f32 to vector<8x16xf32>
    %53 = arith.addf %52, %51 : vector<8x16xf32>
    %54 = arith.divf %52, %53 : vector<8x16xf32>
    %55 = arith.mulf %46, %29 : vector<8x16xf32>
    %56 = arith.mulf %40, %48 : vector<8x16xf32>
    %57 = arith.addf %55, %56 : vector<8x16xf32>
    %58 = math.tanh %57 : vector<8x16xf32>
    %59 = arith.mulf %54, %58 : vector<8x16xf32>
    %60 = tpu.concatenate %59, %27 in 1 : vector<8x16xf32>, vector<8x16xf32> -> vector<8x32xf32>
    %cst_33 = arith.constant dense<0.000000e+00> : vector<8x64xf32>
    %61 = tpu.matmul %60, %1, %cst_33 {dimension_numbers = #tpu.dot_dimension_numbers<[1], [0], [0], [1], [0, 0, 1, 1], [], []>} : vector<8x32xf32>, vector<32x64xf32>, vector<8x64xf32> -> vector<8x64xf32>
    %62 = arith.addf %10, %61 : vector<8x64xf32>
    %63 = vector.extract_strided_slice %62 {offsets = [0, 0], sizes = [8, 16], strides = [1, 1]} : vector<8x64xf32> to vector<8x16xf32>
    %64 = arith.negf %63 : vector<8x16xf32>
    %65 = math.exp %64 : vector<8x16xf32>
    %cst_34 = arith.constant 1.000000e+00 : f32
    %66 = vector.broadcast %cst_34 : f32 to vector<8x16xf32>
    %67 = arith.addf %66, %65 : vector<8x16xf32>
    %68 = arith.divf %66, %67 : vector<8x16xf32>
    %69 = vector.extract_strided_slice %62 {offsets = [0, 16], sizes = [8, 16], strides = [1, 1]} : vector<8x64xf32> to vector<8x16xf32>
    %70 = arith.negf %69 : vector<8x16xf32>
    %71 = math.exp %70 : vector<8x16xf32>
    %cst_35 = arith.constant 1.000000e+00 : f32
    %72 = vector.broadcast %cst_35 : f32 to vector<8x16xf32>
    %73 = arith.addf %72, %71 : vector<8x16xf32>
    %74 = arith.divf %72, %73 : vector<8x16xf32>
    %75 = vector.extract_strided_slice %62 {offsets = [0, 32], sizes = [8, 16], strides = [1, 1]} : vector<8x64xf32> to vector<8x16xf32>
    %76 = math.tanh %75 : vector<8x16xf32>
    %77 = vector.extract_strided_slice %62 {offsets = [0, 48], sizes = [8, 16], strides = [1, 1]} : vector<8x64xf32> to vector<8x16xf32>
    %78 = arith.negf %77 : vector<8x16xf32>
    %79 = math.exp %78 : vector<8x16xf32>
    %cst_36 = arith.constant 1.000000e+00 : f32
    %80 = vector.broadcast %cst_36 : f32 to vector<8x16xf32>
    %81 = arith.addf %80, %79 : vector<8x16xf32>
    %82 = arith.divf %80, %81 : vector<8x16xf32>
    %83 = arith.mulf %74, %31 : vector<8x16xf32>
    %84 = arith.mulf %68, %76 : vector<8x16xf32>
    %85 = arith.addf %83, %84 : vector<8x16xf32>
    %86 = math.tanh %85 : vector<8x16xf32>
    %87 = arith.mulf %82, %86 : vector<8x16xf32>
    %c0_37 = arith.constant 0 : index
    %c0_38 = arith.constant 0 : index
    %88 = vector.load %arg9[%c0_37, %c0_38] : memref<128x16xf32, #tpu.memory_space<vmem>>, vector<8x16xf32>
    tpu.vector_store %arg9[%c0_37, %c0_38], %87 {strides = array<i32>} : memref<128x16xf32, #tpu.memory_space<vmem>>, vector<8x16xf32>,
    %c8 = arith.constant 8 : index
    %c0_39 = arith.constant 0 : index
    %89 = vector.load %arg8[%c8, %c0_39] : memref<128x64xf32, #tpu.memory_space<vmem>>, vector<8x64xf32>
    %cst_40 = arith.constant dense<0.000000e+00> : vector<8x64xf32>
    %90 = tpu.matmul %59, %0, %cst_40 {dimension_numbers = #tpu.dot_dimension_numbers<[1], [0], [0], [1], [0, 0, 1, 1], [], []>} : vector<8x16xf32>, vector<16x64xf32>, vector<8x64xf32> -> vector<8x64xf32>
    %91 = arith.addf %89, %90 : vector<8x64xf32>
    %92 = vector.extract_strided_slice %91 {offsets = [0, 0], sizes = [8, 16], strides = [1, 1]} : vector<8x64xf32> to vector<8x16xf32>
    %93 = arith.negf %92 : vector<8x16xf32>
    %94 = math.exp %93 : vector<8x16xf32>
    %cst_41 = arith.constant 1.000000e+00 : f32
    %95 = vector.broadcast %cst_41 : f32 to vector<8x16xf32>
    %96 = arith.addf %95, %94 : vector<8x16xf32>
    %97 = arith.divf %95, %96 : vector<8x16xf32>
    %98 = vector.extract_strided_slice %91 {offsets = [0, 16], sizes = [8, 16], strides = [1, 1]} : vector<8x64xf32> to vector<8x16xf32>
    %99 = arith.negf %98 : vector<8x16xf32>
    %100 = math.exp %99 : vector<8x16xf32>
    %cst_42 = arith.constant 1.000000e+00 : f32
    %101 = vector.broadcast %cst_42 : f32 to vector<8x16xf32>
    %102 = arith.addf %101, %100 : vector<8x16xf32>
    %103 = arith.divf %101, %102 : vector<8x16xf32>
    %104 = vector.extract_strided_slice %91 {offsets = [0, 32], sizes = [8, 16], strides = [1, 1]} : vector<8x64xf32> to vector<8x16xf32>
    %105 = math.tanh %104 : vector<8x16xf32>
    %106 = vector.extract_strided_slice %91 {offsets = [0, 48], sizes = [8, 16], strides = [1, 1]} : vector<8x64xf32> to vector<8x16xf32>
    %107 = arith.negf %106 : vector<8x16xf32>
    %108 = math.exp %107 : vector<8x16xf32>
    %cst_43 = arith.constant 1.000000e+00 : f32
    %109 = vector.broadcast %cst_43 : f32 to vector<8x16xf32>
    %110 = arith.addf %109, %108 : vector<8x16xf32>
    %111 = arith.divf %109, %110 : vector<8x16xf32>
    %112 = arith.mulf %103, %57 : vector<8x16xf32>
    %113 = arith.mulf %97, %105 : vector<8x16xf32>
    %114 = arith.addf %112, %113 : vector<8x16xf32>
    %115 = math.tanh %114 : vector<8x16xf32>
    %116 = arith.mulf %111, %115 : vector<8x16xf32>
    %117 = tpu.concatenate %116, %87 in 1 : vector<8x16xf32>, vector<8x16xf32> -> vector<8x32xf32>
    %cst_44 = arith.constant dense<0.000000e+00> : vector<8x64xf32>
    %118 = tpu.matmul %117, %1, %cst_44 {dimension_numbers = #tpu.dot_dimension_numbers<[1], [0], [0], [1], [0, 0, 1, 1], [], []>} : vector<8x32xf32>, vector<32x64xf32>, vector<8x64xf32> -> vector<8x64xf32>
    %119 = arith.addf %10, %118 : vector<8x64xf32>
    %120 = vector.extract_strided_slice %119 {offsets = [0, 0], sizes = [8, 16], strides = [1, 1]} : vector<8x64xf32> to vector<8x16xf32>
    %121 = arith.negf %120 : vector<8x16xf32>
    %122 = math.exp %121 : vector<8x16xf32>
    %cst_45 = arith.constant 1.000000e+00 : f32
    %123 = vector.broadcast %cst_45 : f32 to vector<8x16xf32>
    %124 = arith.addf %123, %122 : vector<8x16xf32>
    %125 = arith.divf %123, %124 : vector<8x16xf32>
    %126 = vector.extract_strided_slice %119 {offsets = [0, 16], sizes = [8, 16], strides = [1, 1]} : vector<8x64xf32> to vector<8x16xf32>
    %127 = arith.negf %126 : vector<8x16xf32>
    %128 = math.exp %127 : vector<8x16xf32>
    %cst_46 = arith.constant 1.000000e+00 : f32
    %129 = vector.broadcast %cst_46 : f32 to vector<8x16xf32>
    %130 = arith.addf %129, %128 : vector<8x16xf32>
    %131 = arith.divf %129, %130 : vector<8x16xf32>
    %132 = vector.extract_strided_slice %119 {offsets = [0, 32], sizes = [8, 16], strides = [1, 1]} : vector<8x64xf32> to vector<8x16xf32>
    %133 = math.tanh %132 : vector<8x16xf32>
    %134 = vector.extract_strided_slice %119 {offsets = [0, 48], sizes = [8, 16], strides = [1, 1]} : vector<8x64xf32> to vector<8x16xf32>
    %135 = arith.negf %134 : vector<8x16xf32>
    %136 = math.exp %135 : vector<8x16xf32>
    %cst_47 = arith.constant 1.000000e+00 : f32
    %137 = vector.broadcast %cst_47 : f32 to vector<8x16xf32>
    %138 = arith.addf %137, %136 : vector<8x16xf32>
    %139 = arith.divf %137, %138 : vector<8x16xf32>
    %140 = arith.mulf %131, %85 : vector<8x16xf32>
    %141 = arith.mulf %125, %133 : vector<8x16xf32>
    %142 = arith.addf %140, %141 : vector<8x16xf32>
    %143 = math.tanh %142 : vector<8x16xf32>
    %144 = arith.mulf %139, %143 : vector<8x16xf32>
    %c8_48 = arith.constant 8 : index
    %c0_49 = arith.constant 0 : index
    %145 = vector.load %arg9[%c8_48, %c0_49] : memref<128x16xf32, #tpu.memory_space<vmem>>, vector<8x16xf32>
    tpu.vector_store %arg9[%c8_48, %c0_49], %144 {strides = array<i32>} : memref<128x16xf32, #tpu.memory_space<vmem>>, vector<8x16xf32>,
    %c16_50 = arith.constant 16 : index
    %c0_51 = arith.constant 0 : index
    %146 = vector.load %arg8[%c16_50, %c0_51] : memref<128x64xf32, #tpu.memory_space<vmem>>, vector<8x64xf32>
    %cst_52 = arith.constant dense<0.000000e+00> : vector<8x64xf32>
    %147 = tpu.matmul %116, %0, %cst_52 {dimension_numbers = #tpu.dot_dimension_numbers<[1], [0], [0], [1], [0, 0, 1, 1], [], []>} : vector<8x16xf32>, vector<16x64xf32>, vector<8x64xf32> -> vector<8x64xf32>
    %148 = arith.addf %146, %147 : vector<8x64xf32>
    %149 = vector.extract_strided_slice %148 {offsets = [0, 0], sizes = [8, 16], strides = [1, 1]} : vector<8x64xf32> to vector<8x16xf32>
    %150 = arith.negf %149 : vector<8x16xf32>
    %151 = math.exp %150 : vector<8x16xf32>
    %cst_53 = arith.constant 1.000000e+00 : f32
    %152 = vector.broadcast %cst_53 : f32 to vector<8x16xf32>
    %153 = arith.addf %152, %151 : vector<8x16xf32>
    %154 = arith.divf %152, %153 : vector<8x16xf32>
    %155 = vector.extract_strided_slice %148 {offsets = [0, 16], sizes = [8, 16], strides = [1, 1]} : vector<8x64xf32> to vector<8x16xf32>
    %156 = arith.negf %155 : vector<8x16xf32>
    %157 = math.exp %156 : vector<8x16xf32>
    %cst_54 = arith.constant 1.000000e+00 : f32
    %158 = vector.broadcast %cst_54 : f32 to vector<8x16xf32>
    %159 = arith.addf %158, %157 : vector<8x16xf32>
    %160 = arith.divf %158, %159 : vector<8x16xf32>
    %161 = vector.extract_strided_slice %148 {offsets = [0, 32], sizes = [8, 16], strides = [1, 1]} : vector<8x64xf32> to vector<8x16xf32>
    %162 = math.tanh %161 : vector<8x16xf32>
    %163 = vector.extract_strided_slice %148 {offsets = [0, 48], sizes = [8, 16], strides = [1, 1]} : vector<8x64xf32> to vector<8x16xf32>
    %164 = arith.negf %163 : vector<8x16xf32>
    %165 = math.exp %164 : vector<8x16xf32>
    %cst_55 = arith.constant 1.000000e+00 : f32
    %166 = vector.broadcast %cst_55 : f32 to vector<8x16xf32>
    %167 = arith.addf %166, %165 : vector<8x16xf32>
    %168 = arith.divf %166, %167 : vector<8x16xf32>
    %169 = arith.mulf %160, %114 : vector<8x16xf32>
    %170 = arith.mulf %154, %162 : vector<8x16xf32>
    %171 = arith.addf %169, %170 : vector<8x16xf32>
    %172 = math.tanh %171 : vector<8x16xf32>
    %173 = arith.mulf %168, %172 : vector<8x16xf32>
    %174 = tpu.concatenate %173, %144 in 1 : vector<8x16xf32>, vector<8x16xf32> -> vector<8x32xf32>
    %cst_56 = arith.constant dense<0.000000e+00> : vector<8x64xf32>
    %175 = tpu.matmul %174, %1, %cst_56 {dimension_numbers = #tpu.dot_dimension_numbers<[1], [0], [0], [1], [0, 0, 1, 1], [], []>} : vector<8x32xf32>, vector<32x64xf32>, vector<8x64xf32> -> vector<8x64xf32>
    %176 = arith.addf %10, %175 : vector<8x64xf32>
    %177 = vector.extract_strided_slice %176 {offsets = [0, 0], sizes = [8, 16], strides = [1, 1]} : vector<8x64xf32> to vector<8x16xf32>
    %178 = arith.negf %177 : vector<8x16xf32>
    %179 = math.exp %178 : vector<8x16xf32>
    %cst_57 = arith.constant 1.000000e+00 : f32
    %180 = vector.broadcast %cst_57 : f32 to vector<8x16xf32>
    %181 = arith.addf %180, %179 : vector<8x16xf32>
    %182 = arith.divf %180, %181 : vector<8x16xf32>
    %183 = vector.extract_strided_slice %176 {offsets = [0, 16], sizes = [8, 16], strides = [1, 1]} : vector<8x64xf32> to vector<8x16xf32>
    %184 = arith.negf %183 : vector<8x16xf32>
    %185 = math.exp %184 : vector<8x16xf32>
    %cst_58 = arith.constant 1.000000e+00 : f32
    %186 = vector.broadcast %cst_58 : f32 to vector<8x16xf32>
    %187 = arith.addf %186, %185 : vector<8x16xf32>
    %188 = arith.divf %186, %187 : vector<8x16xf32>
    %189 = vector.extract_strided_slice %176 {offsets = [0, 32], sizes = [8, 16], strides = [1, 1]} : vector<8x64xf32> to vector<8x16xf32>
    %190 = math.tanh %189 : vector<8x16xf32>
    %191 = vector.extract_strided_slice %176 {offsets = [0, 48], sizes = [8, 16], strides = [1, 1]} : vector<8x64xf32> to vector<8x16xf32>
    %192 = arith.negf %191 : vector<8x16xf32>
    %193 = math.exp %192 : vector<8x16xf32>
    %cst_59 = arith.constant 1.000000e+00 : f32
    %194 = vector.broadcast %cst_59 : f32 to vector<8x16xf32>
    %195 = arith.addf %194, %193 : vector<8x16xf32>
    %196 = arith.divf %194, %195 : vector<8x16xf32>
    %197 = arith.mulf %188, %142 : vector<8x16xf32>
    %198 = arith.mulf %182, %190 : vector<8x16xf32>
    %199 = arith.addf %197, %198 : vector<8x16xf32>
    %200 = math.tanh %199 : vector<8x16xf32>
    %201 = arith.mulf %196, %200 : vector<8x16xf32>
    %c16_60 = arith.constant 16 : index
    %c0_61 = arith.constant 0 : index
    %202 = vector.load %arg9[%c16_60, %c0_61] : memref<128x16xf32, #tpu.memory_space<vmem>>, vector<8x16xf32>
    tpu.vector_store %arg9[%c16_60, %c0_61], %201 {strides = array<i32>} : memref<128x16xf32, #tpu.memory_space<vmem>>, vector<8x16xf32>,
    %c24 = arith.constant 24 : index
    %c0_62 = arith.constant 0 : index
    %203 = vector.load %arg8[%c24, %c0_62] : memref<128x64xf32, #tpu.memory_space<vmem>>, vector<8x64xf32>
    %cst_63 = arith.constant dense<0.000000e+00> : vector<8x64xf32>
    %204 = tpu.matmul %173, %0, %cst_63 {dimension_numbers = #tpu.dot_dimension_numbers<[1], [0], [0], [1], [0, 0, 1, 1], [], []>} : vector<8x16xf32>, vector<16x64xf32>, vector<8x64xf32> -> vector<8x64xf32>
    %205 = arith.addf %203, %204 : vector<8x64xf32>
    %206 = vector.extract_strided_slice %205 {offsets = [0, 0], sizes = [8, 16], strides = [1, 1]} : vector<8x64xf32> to vector<8x16xf32>
    %207 = arith.negf %206 : vector<8x16xf32>
    %208 = math.exp %207 : vector<8x16xf32>
    %cst_64 = arith.constant 1.000000e+00 : f32
    %209 = vector.broadcast %cst_64 : f32 to vector<8x16xf32>
    %210 = arith.addf %209, %208 : vector<8x16xf32>
    %211 = arith.divf %209, %210 : vector<8x16xf32>
    %212 = vector.extract_strided_slice %205 {offsets = [0, 16], sizes = [8, 16], strides = [1, 1]} : vector<8x64xf32> to vector<8x16xf32>
    %213 = arith.negf %212 : vector<8x16xf32>
    %214 = math.exp %213 : vector<8x16xf32>
    %cst_65 = arith.constant 1.000000e+00 : f32
    %215 = vector.broadcast %cst_65 : f32 to vector<8x16xf32>
    %216 = arith.addf %215, %214 : vector<8x16xf32>
    %217 = arith.divf %215, %216 : vector<8x16xf32>
    %218 = vector.extract_strided_slice %205 {offsets = [0, 32], sizes = [8, 16], strides = [1, 1]} : vector<8x64xf32> to vector<8x16xf32>
    %219 = math.tanh %218 : vector<8x16xf32>
    %220 = vector.extract_strided_slice %205 {offsets = [0, 48], sizes = [8, 16], strides = [1, 1]} : vector<8x64xf32> to vector<8x16xf32>
    %221 = arith.negf %220 : vector<8x16xf32>
    %222 = math.exp %221 : vector<8x16xf32>
    %cst_66 = arith.constant 1.000000e+00 : f32
    %223 = vector.broadcast %cst_66 : f32 to vector<8x16xf32>
    %224 = arith.addf %223, %222 : vector<8x16xf32>
    %225 = arith.divf %223, %224 : vector<8x16xf32>
    %226 = arith.mulf %217, %171 : vector<8x16xf32>
    %227 = arith.mulf %211, %219 : vector<8x16xf32>
    %228 = arith.addf %226, %227 : vector<8x16xf32>
    %229 = math.tanh %228 : vector<8x16xf32>
    %230 = arith.mulf %225, %229 : vector<8x16xf32>
    %231 = tpu.concatenate %230, %201 in 1 : vector<8x16xf32>, vector<8x16xf32> -> vector<8x32xf32>
    %cst_67 = arith.constant dense<0.000000e+00> : vector<8x64xf32>
    %232 = tpu.matmul %231, %1, %cst_67 {dimension_numbers = #tpu.dot_dimension_numbers<[1], [0], [0], [1], [0, 0, 1, 1], [], []>} : vector<8x32xf32>, vector<32x64xf32>, vector<8x64xf32> -> vector<8x64xf32>
    %233 = arith.addf %10, %232 : vector<8x64xf32>
    %234 = vector.extract_strided_slice %233 {offsets = [0, 0], sizes = [8, 16], strides = [1, 1]} : vector<8x64xf32> to vector<8x16xf32>
    %235 = arith.negf %234 : vector<8x16xf32>
    %236 = math.exp %235 : vector<8x16xf32>
    %cst_68 = arith.constant 1.000000e+00 : f32
    %237 = vector.broadcast %cst_68 : f32 to vector<8x16xf32>
    %238 = arith.addf %237, %236 : vector<8x16xf32>
    %239 = arith.divf %237, %238 : vector<8x16xf32>
    %240 = vector.extract_strided_slice %233 {offsets = [0, 16], sizes = [8, 16], strides = [1, 1]} : vector<8x64xf32> to vector<8x16xf32>
    %241 = arith.negf %240 : vector<8x16xf32>
    %242 = math.exp %241 : vector<8x16xf32>
    %cst_69 = arith.constant 1.000000e+00 : f32
    %243 = vector.broadcast %cst_69 : f32 to vector<8x16xf32>
    %244 = arith.addf %243, %242 : vector<8x16xf32>
    %245 = arith.divf %243, %244 : vector<8x16xf32>
    %246 = vector.extract_strided_slice %233 {offsets = [0, 32], sizes = [8, 16], strides = [1, 1]} : vector<8x64xf32> to vector<8x16xf32>
    %247 = math.tanh %246 : vector<8x16xf32>
    %248 = vector.extract_strided_slice %233 {offsets = [0, 48], sizes = [8, 16], strides = [1, 1]} : vector<8x64xf32> to vector<8x16xf32>
    %249 = arith.negf %248 : vector<8x16xf32>
    %250 = math.exp %249 : vector<8x16xf32>
    %cst_70 = arith.constant 1.000000e+00 : f32
    %251 = vector.broadcast %cst_70 : f32 to vector<8x16xf32>
    %252 = arith.addf %251, %250 : vector<8x16xf32>
    %253 = arith.divf %251, %252 : vector<8x16xf32>
    %254 = arith.mulf %245, %199 : vector<8x16xf32>
    %255 = arith.mulf %239, %247 : vector<8x16xf32>
    %256 = arith.addf %254, %255 : vector<8x16xf32>
    %257 = math.tanh %256 : vector<8x16xf32>
    %258 = arith.mulf %253, %257 : vector<8x16xf32>
    %c24_71 = arith.constant 24 : index
    %c0_72 = arith.constant 0 : index
    %259 = vector.load %arg9[%c24_71, %c0_72] : memref<128x16xf32, #tpu.memory_space<vmem>>, vector<8x16xf32>
    tpu.vector_store %arg9[%c24_71, %c0_72], %258 {strides = array<i32>} : memref<128x16xf32, #tpu.memory_space<vmem>>, vector<8x16xf32>,
    %c32 = arith.constant 32 : index
    %c0_73 = arith.constant 0 : index
    %260 = vector.load %arg8[%c32, %c0_73] : memref<128x64xf32, #tpu.memory_space<vmem>>, vector<8x64xf32>
    %cst_74 = arith.constant dense<0.000000e+00> : vector<8x64xf32>
    %261 = tpu.matmul %230, %0, %cst_74 {dimension_numbers = #tpu.dot_dimension_numbers<[1], [0], [0], [1], [0, 0, 1, 1], [], []>} : vector<8x16xf32>, vector<16x64xf32>, vector<8x64xf32> -> vector<8x64xf32>
    %262 = arith.addf %260, %261 : vector<8x64xf32>
    %263 = vector.extract_strided_slice %262 {offsets = [0, 0], sizes = [8, 16], strides = [1, 1]} : vector<8x64xf32> to vector<8x16xf32>
    %264 = arith.negf %263 : vector<8x16xf32>
    %265 = math.exp %264 : vector<8x16xf32>
    %cst_75 = arith.constant 1.000000e+00 : f32
    %266 = vector.broadcast %cst_75 : f32 to vector<8x16xf32>
    %267 = arith.addf %266, %265 : vector<8x16xf32>
    %268 = arith.divf %266, %267 : vector<8x16xf32>
    %269 = vector.extract_strided_slice %262 {offsets = [0, 16], sizes = [8, 16], strides = [1, 1]} : vector<8x64xf32> to vector<8x16xf32>
    %270 = arith.negf %269 : vector<8x16xf32>
    %271 = math.exp %270 : vector<8x16xf32>
    %cst_76 = arith.constant 1.000000e+00 : f32
    %272 = vector.broadcast %cst_76 : f32 to vector<8x16xf32>
    %273 = arith.addf %272, %271 : vector<8x16xf32>
    %274 = arith.divf %272, %273 : vector<8x16xf32>
    %275 = vector.extract_strided_slice %262 {offsets = [0, 32], sizes = [8, 16], strides = [1, 1]} : vector<8x64xf32> to vector<8x16xf32>
    %276 = math.tanh %275 : vector<8x16xf32>
    %277 = vector.extract_strided_slice %262 {offsets = [0, 48], sizes = [8, 16], strides = [1, 1]} : vector<8x64xf32> to vector<8x16xf32>
    %278 = arith.negf %277 : vector<8x16xf32>
    %279 = math.exp %278 : vector<8x16xf32>
    %cst_77 = arith.constant 1.000000e+00 : f32
    %280 = vector.broadcast %cst_77 : f32 to vector<8x16xf32>
    %281 = arith.addf %280, %279 : vector<8x16xf32>
    %282 = arith.divf %280, %281 : vector<8x16xf32>
    %283 = arith.mulf %274, %228 : vector<8x16xf32>
    %284 = arith.mulf %268, %276 : vector<8x16xf32>
    %285 = arith.addf %283, %284 : vector<8x16xf32>
    %286 = math.tanh %285 : vector<8x16xf32>
    %287 = arith.mulf %282, %286 : vector<8x16xf32>
    %288 = tpu.concatenate %287, %258 in 1 : vector<8x16xf32>, vector<8x16xf32> -> vector<8x32xf32>
    %cst_78 = arith.constant dense<0.000000e+00> : vector<8x64xf32>
    %289 = tpu.matmul %288, %1, %cst_78 {dimension_numbers = #tpu.dot_dimension_numbers<[1], [0], [0], [1], [0, 0, 1, 1], [], []>} : vector<8x32xf32>, vector<32x64xf32>, vector<8x64xf32> -> vector<8x64xf32>
    %290 = arith.addf %10, %289 : vector<8x64xf32>
    %291 = vector.extract_strided_slice %290 {offsets = [0, 0], sizes = [8, 16], strides = [1, 1]} : vector<8x64xf32> to vector<8x16xf32>
    %292 = arith.negf %291 : vector<8x16xf32>
    %293 = math.exp %292 : vector<8x16xf32>
    %cst_79 = arith.constant 1.000000e+00 : f32
    %294 = vector.broadcast %cst_79 : f32 to vector<8x16xf32>
    %295 = arith.addf %294, %293 : vector<8x16xf32>
    %296 = arith.divf %294, %295 : vector<8x16xf32>
    %297 = vector.extract_strided_slice %290 {offsets = [0, 16], sizes = [8, 16], strides = [1, 1]} : vector<8x64xf32> to vector<8x16xf32>
    %298 = arith.negf %297 : vector<8x16xf32>
    %299 = math.exp %298 : vector<8x16xf32>
    %cst_80 = arith.constant 1.000000e+00 : f32
    %300 = vector.broadcast %cst_80 : f32 to vector<8x16xf32>
    %301 = arith.addf %300, %299 : vector<8x16xf32>
    %302 = arith.divf %300, %301 : vector<8x16xf32>
    %303 = vector.extract_strided_slice %290 {offsets = [0, 32], sizes = [8, 16], strides = [1, 1]} : vector<8x64xf32> to vector<8x16xf32>
    %304 = math.tanh %303 : vector<8x16xf32>
    %305 = vector.extract_strided_slice %290 {offsets = [0, 48], sizes = [8, 16], strides = [1, 1]} : vector<8x64xf32> to vector<8x16xf32>
    %306 = arith.negf %305 : vector<8x16xf32>
    %307 = math.exp %306 : vector<8x16xf32>
    %cst_81 = arith.constant 1.000000e+00 : f32
    %308 = vector.broadcast %cst_81 : f32 to vector<8x16xf32>
    %309 = arith.addf %308, %307 : vector<8x16xf32>
    %310 = arith.divf %308, %309 : vector<8x16xf32>
    %311 = arith.mulf %302, %256 : vector<8x16xf32>
    %312 = arith.mulf %296, %304 : vector<8x16xf32>
    %313 = arith.addf %311, %312 : vector<8x16xf32>
    %314 = math.tanh %313 : vector<8x16xf32>
    %315 = arith.mulf %310, %314 : vector<8x16xf32>
    %c32_82 = arith.constant 32 : index
    %c0_83 = arith.constant 0 : index
    %316 = vector.load %arg9[%c32_82, %c0_83] : memref<128x16xf32, #tpu.memory_space<vmem>>, vector<8x16xf32>
    tpu.vector_store %arg9[%c32_82, %c0_83], %315 {strides = array<i32>} : memref<128x16xf32, #tpu.memory_space<vmem>>, vector<8x16xf32>,
    %c40 = arith.constant 40 : index
    %c0_84 = arith.constant 0 : index
    %317 = vector.load %arg8[%c40, %c0_84] : memref<128x64xf32, #tpu.memory_space<vmem>>, vector<8x64xf32>
    %cst_85 = arith.constant dense<0.000000e+00> : vector<8x64xf32>
    %318 = tpu.matmul %287, %0, %cst_85 {dimension_numbers = #tpu.dot_dimension_numbers<[1], [0], [0], [1], [0, 0, 1, 1], [], []>} : vector<8x16xf32>, vector<16x64xf32>, vector<8x64xf32> -> vector<8x64xf32>
    %319 = arith.addf %317, %318 : vector<8x64xf32>
    %320 = vector.extract_strided_slice %319 {offsets = [0, 0], sizes = [8, 16], strides = [1, 1]} : vector<8x64xf32> to vector<8x16xf32>
    %321 = arith.negf %320 : vector<8x16xf32>
    %322 = math.exp %321 : vector<8x16xf32>
    %cst_86 = arith.constant 1.000000e+00 : f32
    %323 = vector.broadcast %cst_86 : f32 to vector<8x16xf32>
    %324 = arith.addf %323, %322 : vector<8x16xf32>
    %325 = arith.divf %323, %324 : vector<8x16xf32>
    %326 = vector.extract_strided_slice %319 {offsets = [0, 16], sizes = [8, 16], strides = [1, 1]} : vector<8x64xf32> to vector<8x16xf32>
    %327 = arith.negf %326 : vector<8x16xf32>
    %328 = math.exp %327 : vector<8x16xf32>
    %cst_87 = arith.constant 1.000000e+00 : f32
    %329 = vector.broadcast %cst_87 : f32 to vector<8x16xf32>
    %330 = arith.addf %329, %328 : vector<8x16xf32>
    %331 = arith.divf %329, %330 : vector<8x16xf32>
    %332 = vector.extract_strided_slice %319 {offsets = [0, 32], sizes = [8, 16], strides = [1, 1]} : vector<8x64xf32> to vector<8x16xf32>
    %333 = math.tanh %332 : vector<8x16xf32>
    %334 = vector.extract_strided_slice %319 {offsets = [0, 48], sizes = [8, 16], strides = [1, 1]} : vector<8x64xf32> to vector<8x16xf32>
    %335 = arith.negf %334 : vector<8x16xf32>
    %336 = math.exp %335 : vector<8x16xf32>
    %cst_88 = arith.constant 1.000000e+00 : f32
    %337 = vector.broadcast %cst_88 : f32 to vector<8x16xf32>
    %338 = arith.addf %337, %336 : vector<8x16xf32>
    %339 = arith.divf %337, %338 : vector<8x16xf32>
    %340 = arith.mulf %331, %285 : vector<8x16xf32>
    %341 = arith.mulf %325, %333 : vector<8x16xf32>
    %342 = arith.addf %340, %341 : vector<8x16xf32>
    %343 = math.tanh %342 : vector<8x16xf32>
    %344 = arith.mulf %339, %343 : vector<8x16xf32>
    %345 = tpu.concatenate %344, %315 in 1 : vector<8x16xf32>, vector<8x16xf32> -> vector<8x32xf32>
    %cst_89 = arith.constant dense<0.000000e+00> : vector<8x64xf32>
    %346 = tpu.matmul %345, %1, %cst_89 {dimension_numbers = #tpu.dot_dimension_numbers<[1], [0], [0], [1], [0, 0, 1, 1], [], []>} : vector<8x32xf32>, vector<32x64xf32>, vector<8x64xf32> -> vector<8x64xf32>
    %347 = arith.addf %10, %346 : vector<8x64xf32>
    %348 = vector.extract_strided_slice %347 {offsets = [0, 0], sizes = [8, 16], strides = [1, 1]} : vector<8x64xf32> to vector<8x16xf32>
    %349 = arith.negf %348 : vector<8x16xf32>
    %350 = math.exp %349 : vector<8x16xf32>
    %cst_90 = arith.constant 1.000000e+00 : f32
    %351 = vector.broadcast %cst_90 : f32 to vector<8x16xf32>
    %352 = arith.addf %351, %350 : vector<8x16xf32>
    %353 = arith.divf %351, %352 : vector<8x16xf32>
    %354 = vector.extract_strided_slice %347 {offsets = [0, 16], sizes = [8, 16], strides = [1, 1]} : vector<8x64xf32> to vector<8x16xf32>
    %355 = arith.negf %354 : vector<8x16xf32>
    %356 = math.exp %355 : vector<8x16xf32>
    %cst_91 = arith.constant 1.000000e+00 : f32
    %357 = vector.broadcast %cst_91 : f32 to vector<8x16xf32>
    %358 = arith.addf %357, %356 : vector<8x16xf32>
    %359 = arith.divf %357, %358 : vector<8x16xf32>
    %360 = vector.extract_strided_slice %347 {offsets = [0, 32], sizes = [8, 16], strides = [1, 1]} : vector<8x64xf32> to vector<8x16xf32>
    %361 = math.tanh %360 : vector<8x16xf32>
    %362 = vector.extract_strided_slice %347 {offsets = [0, 48], sizes = [8, 16], strides = [1, 1]} : vector<8x64xf32> to vector<8x16xf32>
    %363 = arith.negf %362 : vector<8x16xf32>
    %364 = math.exp %363 : vector<8x16xf32>
    %cst_92 = arith.constant 1.000000e+00 : f32
    %365 = vector.broadcast %cst_92 : f32 to vector<8x16xf32>
    %366 = arith.addf %365, %364 : vector<8x16xf32>
    %367 = arith.divf %365, %366 : vector<8x16xf32>
    %368 = arith.mulf %359, %313 : vector<8x16xf32>
    %369 = arith.mulf %353, %361 : vector<8x16xf32>
    %370 = arith.addf %368, %369 : vector<8x16xf32>
    %371 = math.tanh %370 : vector<8x16xf32>
    %372 = arith.mulf %367, %371 : vector<8x16xf32>
    %c40_93 = arith.constant 40 : index
    %c0_94 = arith.constant 0 : index
    %373 = vector.load %arg9[%c40_93, %c0_94] : memref<128x16xf32, #tpu.memory_space<vmem>>, vector<8x16xf32>
    tpu.vector_store %arg9[%c40_93, %c0_94], %372 {strides = array<i32>} : memref<128x16xf32, #tpu.memory_space<vmem>>, vector<8x16xf32>,
    %c48 = arith.constant 48 : index
    %c0_95 = arith.constant 0 : index
    %374 = vector.load %arg8[%c48, %c0_95] : memref<128x64xf32, #tpu.memory_space<vmem>>, vector<8x64xf32>
    %cst_96 = arith.constant dense<0.000000e+00> : vector<8x64xf32>
    %375 = tpu.matmul %344, %0, %cst_96 {dimension_numbers = #tpu.dot_dimension_numbers<[1], [0], [0], [1], [0, 0, 1, 1], [], []>} : vector<8x16xf32>, vector<16x64xf32>, vector<8x64xf32> -> vector<8x64xf32>
    %376 = arith.addf %374, %375 : vector<8x64xf32>
    %377 = vector.extract_strided_slice %376 {offsets = [0, 0], sizes = [8, 16], strides = [1, 1]} : vector<8x64xf32> to vector<8x16xf32>
    %378 = arith.negf %377 : vector<8x16xf32>
    %379 = math.exp %378 : vector<8x16xf32>
    %cst_97 = arith.constant 1.000000e+00 : f32
    %380 = vector.broadcast %cst_97 : f32 to vector<8x16xf32>
    %381 = arith.addf %380, %379 : vector<8x16xf32>
    %382 = arith.divf %380, %381 : vector<8x16xf32>
    %383 = vector.extract_strided_slice %376 {offsets = [0, 16], sizes = [8, 16], strides = [1, 1]} : vector<8x64xf32> to vector<8x16xf32>
    %384 = arith.negf %383 : vector<8x16xf32>
    %385 = math.exp %384 : vector<8x16xf32>
    %cst_98 = arith.constant 1.000000e+00 : f32
    %386 = vector.broadcast %cst_98 : f32 to vector<8x16xf32>
    %387 = arith.addf %386, %385 : vector<8x16xf32>
    %388 = arith.divf %386, %387 : vector<8x16xf32>
    %389 = vector.extract_strided_slice %376 {offsets = [0, 32], sizes = [8, 16], strides = [1, 1]} : vector<8x64xf32> to vector<8x16xf32>
    %390 = math.tanh %389 : vector<8x16xf32>
    %391 = vector.extract_strided_slice %376 {offsets = [0, 48], sizes = [8, 16], strides = [1, 1]} : vector<8x64xf32> to vector<8x16xf32>
    %392 = arith.negf %391 : vector<8x16xf32>
    %393 = math.exp %392 : vector<8x16xf32>
    %cst_99 = arith.constant 1.000000e+00 : f32
    %394 = vector.broadcast %cst_99 : f32 to vector<8x16xf32>
    %395 = arith.addf %394, %393 : vector<8x16xf32>
    %396 = arith.divf %394, %395 : vector<8x16xf32>
    %397 = arith.mulf %388, %342 : vector<8x16xf32>
    %398 = arith.mulf %382, %390 : vector<8x16xf32>
    %399 = arith.addf %397, %398 : vector<8x16xf32>
    %400 = math.tanh %399 : vector<8x16xf32>
    %401 = arith.mulf %396, %400 : vector<8x16xf32>
    %402 = tpu.concatenate %401, %372 in 1 : vector<8x16xf32>, vector<8x16xf32> -> vector<8x32xf32>
    %cst_100 = arith.constant dense<0.000000e+00> : vector<8x64xf32>
    %403 = tpu.matmul %402, %1, %cst_100 {dimension_numbers = #tpu.dot_dimension_numbers<[1], [0], [0], [1], [0, 0, 1, 1], [], []>} : vector<8x32xf32>, vector<32x64xf32>, vector<8x64xf32> -> vector<8x64xf32>
    %404 = arith.addf %10, %403 : vector<8x64xf32>
    %405 = vector.extract_strided_slice %404 {offsets = [0, 0], sizes = [8, 16], strides = [1, 1]} : vector<8x64xf32> to vector<8x16xf32>
    %406 = arith.negf %405 : vector<8x16xf32>
    %407 = math.exp %406 : vector<8x16xf32>
    %cst_101 = arith.constant 1.000000e+00 : f32
    %408 = vector.broadcast %cst_101 : f32 to vector<8x16xf32>
    %409 = arith.addf %408, %407 : vector<8x16xf32>
    %410 = arith.divf %408, %409 : vector<8x16xf32>
    %411 = vector.extract_strided_slice %404 {offsets = [0, 16], sizes = [8, 16], strides = [1, 1]} : vector<8x64xf32> to vector<8x16xf32>
    %412 = arith.negf %411 : vector<8x16xf32>
    %413 = math.exp %412 : vector<8x16xf32>
    %cst_102 = arith.constant 1.000000e+00 : f32
    %414 = vector.broadcast %cst_102 : f32 to vector<8x16xf32>
    %415 = arith.addf %414, %413 : vector<8x16xf32>
    %416 = arith.divf %414, %415 : vector<8x16xf32>
    %417 = vector.extract_strided_slice %404 {offsets = [0, 32], sizes = [8, 16], strides = [1, 1]} : vector<8x64xf32> to vector<8x16xf32>
    %418 = math.tanh %417 : vector<8x16xf32>
    %419 = vector.extract_strided_slice %404 {offsets = [0, 48], sizes = [8, 16], strides = [1, 1]} : vector<8x64xf32> to vector<8x16xf32>
    %420 = arith.negf %419 : vector<8x16xf32>
    %421 = math.exp %420 : vector<8x16xf32>
    %cst_103 = arith.constant 1.000000e+00 : f32
    %422 = vector.broadcast %cst_103 : f32 to vector<8x16xf32>
    %423 = arith.addf %422, %421 : vector<8x16xf32>
    %424 = arith.divf %422, %423 : vector<8x16xf32>
    %425 = arith.mulf %416, %370 : vector<8x16xf32>
    %426 = arith.mulf %410, %418 : vector<8x16xf32>
    %427 = arith.addf %425, %426 : vector<8x16xf32>
    %428 = math.tanh %427 : vector<8x16xf32>
    %429 = arith.mulf %424, %428 : vector<8x16xf32>
    %c48_104 = arith.constant 48 : index
    %c0_105 = arith.constant 0 : index
    %430 = vector.load %arg9[%c48_104, %c0_105] : memref<128x16xf32, #tpu.memory_space<vmem>>, vector<8x16xf32>
    tpu.vector_store %arg9[%c48_104, %c0_105], %429 {strides = array<i32>} : memref<128x16xf32, #tpu.memory_space<vmem>>, vector<8x16xf32>,
    %c56 = arith.constant 56 : index
    %c0_106 = arith.constant 0 : index
    %431 = vector.load %arg8[%c56, %c0_106] : memref<128x64xf32, #tpu.memory_space<vmem>>, vector<8x64xf32>
    %cst_107 = arith.constant dense<0.000000e+00> : vector<8x64xf32>
    %432 = tpu.matmul %401, %0, %cst_107 {dimension_numbers = #tpu.dot_dimension_numbers<[1], [0], [0], [1], [0, 0, 1, 1], [], []>} : vector<8x16xf32>, vector<16x64xf32>, vector<8x64xf32> -> vector<8x64xf32>
    %433 = arith.addf %431, %432 : vector<8x64xf32>
    %434 = vector.extract_strided_slice %433 {offsets = [0, 0], sizes = [8, 16], strides = [1, 1]} : vector<8x64xf32> to vector<8x16xf32>
    %435 = arith.negf %434 : vector<8x16xf32>
    %436 = math.exp %435 : vector<8x16xf32>
    %cst_108 = arith.constant 1.000000e+00 : f32
    %437 = vector.broadcast %cst_108 : f32 to vector<8x16xf32>
    %438 = arith.addf %437, %436 : vector<8x16xf32>
    %439 = arith.divf %437, %438 : vector<8x16xf32>
    %440 = vector.extract_strided_slice %433 {offsets = [0, 16], sizes = [8, 16], strides = [1, 1]} : vector<8x64xf32> to vector<8x16xf32>
    %441 = arith.negf %440 : vector<8x16xf32>
    %442 = math.exp %441 : vector<8x16xf32>
    %cst_109 = arith.constant 1.000000e+00 : f32
    %443 = vector.broadcast %cst_109 : f32 to vector<8x16xf32>
    %444 = arith.addf %443, %442 : vector<8x16xf32>
    %445 = arith.divf %443, %444 : vector<8x16xf32>
    %446 = vector.extract_strided_slice %433 {offsets = [0, 32], sizes = [8, 16], strides = [1, 1]} : vector<8x64xf32> to vector<8x16xf32>
    %447 = math.tanh %446 : vector<8x16xf32>
    %448 = vector.extract_strided_slice %433 {offsets = [0, 48], sizes = [8, 16], strides = [1, 1]} : vector<8x64xf32> to vector<8x16xf32>
    %449 = arith.negf %448 : vector<8x16xf32>
    %450 = math.exp %449 : vector<8x16xf32>
    %cst_110 = arith.constant 1.000000e+00 : f32
    %451 = vector.broadcast %cst_110 : f32 to vector<8x16xf32>
    %452 = arith.addf %451, %450 : vector<8x16xf32>
    %453 = arith.divf %451, %452 : vector<8x16xf32>
    %454 = arith.mulf %445, %399 : vector<8x16xf32>
    %455 = arith.mulf %439, %447 : vector<8x16xf32>
    %456 = arith.addf %454, %455 : vector<8x16xf32>
    %457 = math.tanh %456 : vector<8x16xf32>
    %458 = arith.mulf %453, %457 : vector<8x16xf32>
    %459 = tpu.concatenate %458, %429 in 1 : vector<8x16xf32>, vector<8x16xf32> -> vector<8x32xf32>
    %cst_111 = arith.constant dense<0.000000e+00> : vector<8x64xf32>
    %460 = tpu.matmul %459, %1, %cst_111 {dimension_numbers = #tpu.dot_dimension_numbers<[1], [0], [0], [1], [0, 0, 1, 1], [], []>} : vector<8x32xf32>, vector<32x64xf32>, vector<8x64xf32> -> vector<8x64xf32>
    %461 = arith.addf %10, %460 : vector<8x64xf32>
    %462 = vector.extract_strided_slice %461 {offsets = [0, 0], sizes = [8, 16], strides = [1, 1]} : vector<8x64xf32> to vector<8x16xf32>
    %463 = arith.negf %462 : vector<8x16xf32>
    %464 = math.exp %463 : vector<8x16xf32>
    %cst_112 = arith.constant 1.000000e+00 : f32
    %465 = vector.broadcast %cst_112 : f32 to vector<8x16xf32>
    %466 = arith.addf %465, %464 : vector<8x16xf32>
    %467 = arith.divf %465, %466 : vector<8x16xf32>
    %468 = vector.extract_strided_slice %461 {offsets = [0, 16], sizes = [8, 16], strides = [1, 1]} : vector<8x64xf32> to vector<8x16xf32>
    %469 = arith.negf %468 : vector<8x16xf32>
    %470 = math.exp %469 : vector<8x16xf32>
    %cst_113 = arith.constant 1.000000e+00 : f32
    %471 = vector.broadcast %cst_113 : f32 to vector<8x16xf32>
    %472 = arith.addf %471, %470 : vector<8x16xf32>
    %473 = arith.divf %471, %472 : vector<8x16xf32>
    %474 = vector.extract_strided_slice %461 {offsets = [0, 32], sizes = [8, 16], strides = [1, 1]} : vector<8x64xf32> to vector<8x16xf32>
    %475 = math.tanh %474 : vector<8x16xf32>
    %476 = vector.extract_strided_slice %461 {offsets = [0, 48], sizes = [8, 16], strides = [1, 1]} : vector<8x64xf32> to vector<8x16xf32>
    %477 = arith.negf %476 : vector<8x16xf32>
    %478 = math.exp %477 : vector<8x16xf32>
    %cst_114 = arith.constant 1.000000e+00 : f32
    %479 = vector.broadcast %cst_114 : f32 to vector<8x16xf32>
    %480 = arith.addf %479, %478 : vector<8x16xf32>
    %481 = arith.divf %479, %480 : vector<8x16xf32>
    %482 = arith.mulf %473, %427 : vector<8x16xf32>
    %483 = arith.mulf %467, %475 : vector<8x16xf32>
    %484 = arith.addf %482, %483 : vector<8x16xf32>
    %485 = math.tanh %484 : vector<8x16xf32>
    %486 = arith.mulf %481, %485 : vector<8x16xf32>
    %c56_115 = arith.constant 56 : index
    %c0_116 = arith.constant 0 : index
    %487 = vector.load %arg9[%c56_115, %c0_116] : memref<128x16xf32, #tpu.memory_space<vmem>>, vector<8x16xf32>
    tpu.vector_store %arg9[%c56_115, %c0_116], %486 {strides = array<i32>} : memref<128x16xf32, #tpu.memory_space<vmem>>, vector<8x16xf32>,
    %c64 = arith.constant 64 : index
    %c0_117 = arith.constant 0 : index
    %488 = vector.load %arg8[%c64, %c0_117] : memref<128x64xf32, #tpu.memory_space<vmem>>, vector<8x64xf32>
    %cst_118 = arith.constant dense<0.000000e+00> : vector<8x64xf32>
    %489 = tpu.matmul %458, %0, %cst_118 {dimension_numbers = #tpu.dot_dimension_numbers<[1], [0], [0], [1], [0, 0, 1, 1], [], []>} : vector<8x16xf32>, vector<16x64xf32>, vector<8x64xf32> -> vector<8x64xf32>
    %490 = arith.addf %488, %489 : vector<8x64xf32>
    %491 = vector.extract_strided_slice %490 {offsets = [0, 0], sizes = [8, 16], strides = [1, 1]} : vector<8x64xf32> to vector<8x16xf32>
    %492 = arith.negf %491 : vector<8x16xf32>
    %493 = math.exp %492 : vector<8x16xf32>
    %cst_119 = arith.constant 1.000000e+00 : f32
    %494 = vector.broadcast %cst_119 : f32 to vector<8x16xf32>
    %495 = arith.addf %494, %493 : vector<8x16xf32>
    %496 = arith.divf %494, %495 : vector<8x16xf32>
    %497 = vector.extract_strided_slice %490 {offsets = [0, 16], sizes = [8, 16], strides = [1, 1]} : vector<8x64xf32> to vector<8x16xf32>
    %498 = arith.negf %497 : vector<8x16xf32>
    %499 = math.exp %498 : vector<8x16xf32>
    %cst_120 = arith.constant 1.000000e+00 : f32
    %500 = vector.broadcast %cst_120 : f32 to vector<8x16xf32>
    %501 = arith.addf %500, %499 : vector<8x16xf32>
    %502 = arith.divf %500, %501 : vector<8x16xf32>
    %503 = vector.extract_strided_slice %490 {offsets = [0, 32], sizes = [8, 16], strides = [1, 1]} : vector<8x64xf32> to vector<8x16xf32>
    %504 = math.tanh %503 : vector<8x16xf32>
    %505 = vector.extract_strided_slice %490 {offsets = [0, 48], sizes = [8, 16], strides = [1, 1]} : vector<8x64xf32> to vector<8x16xf32>
    %506 = arith.negf %505 : vector<8x16xf32>
    %507 = math.exp %506 : vector<8x16xf32>
    %cst_121 = arith.constant 1.000000e+00 : f32
    %508 = vector.broadcast %cst_121 : f32 to vector<8x16xf32>
    %509 = arith.addf %508, %507 : vector<8x16xf32>
    %510 = arith.divf %508, %509 : vector<8x16xf32>
    %511 = arith.mulf %502, %456 : vector<8x16xf32>
    %512 = arith.mulf %496, %504 : vector<8x16xf32>
    %513 = arith.addf %511, %512 : vector<8x16xf32>
    %514 = math.tanh %513 : vector<8x16xf32>
    %515 = arith.mulf %510, %514 : vector<8x16xf32>
    %516 = tpu.concatenate %515, %486 in 1 : vector<8x16xf32>, vector<8x16xf32> -> vector<8x32xf32>
    %cst_122 = arith.constant dense<0.000000e+00> : vector<8x64xf32>
    %517 = tpu.matmul %516, %1, %cst_122 {dimension_numbers = #tpu.dot_dimension_numbers<[1], [0], [0], [1], [0, 0, 1, 1], [], []>} : vector<8x32xf32>, vector<32x64xf32>, vector<8x64xf32> -> vector<8x64xf32>
    %518 = arith.addf %10, %517 : vector<8x64xf32>
    %519 = vector.extract_strided_slice %518 {offsets = [0, 0], sizes = [8, 16], strides = [1, 1]} : vector<8x64xf32> to vector<8x16xf32>
    %520 = arith.negf %519 : vector<8x16xf32>
    %521 = math.exp %520 : vector<8x16xf32>
    %cst_123 = arith.constant 1.000000e+00 : f32
    %522 = vector.broadcast %cst_123 : f32 to vector<8x16xf32>
    %523 = arith.addf %522, %521 : vector<8x16xf32>
    %524 = arith.divf %522, %523 : vector<8x16xf32>
    %525 = vector.extract_strided_slice %518 {offsets = [0, 16], sizes = [8, 16], strides = [1, 1]} : vector<8x64xf32> to vector<8x16xf32>
    %526 = arith.negf %525 : vector<8x16xf32>
    %527 = math.exp %526 : vector<8x16xf32>
    %cst_124 = arith.constant 1.000000e+00 : f32
    %528 = vector.broadcast %cst_124 : f32 to vector<8x16xf32>
    %529 = arith.addf %528, %527 : vector<8x16xf32>
    %530 = arith.divf %528, %529 : vector<8x16xf32>
    %531 = vector.extract_strided_slice %518 {offsets = [0, 32], sizes = [8, 16], strides = [1, 1]} : vector<8x64xf32> to vector<8x16xf32>
    %532 = math.tanh %531 : vector<8x16xf32>
    %533 = vector.extract_strided_slice %518 {offsets = [0, 48], sizes = [8, 16], strides = [1, 1]} : vector<8x64xf32> to vector<8x16xf32>
    %534 = arith.negf %533 : vector<8x16xf32>
    %535 = math.exp %534 : vector<8x16xf32>
    %cst_125 = arith.constant 1.000000e+00 : f32
    %536 = vector.broadcast %cst_125 : f32 to vector<8x16xf32>
    %537 = arith.addf %536, %535 : vector<8x16xf32>
    %538 = arith.divf %536, %537 : vector<8x16xf32>
    %539 = arith.mulf %530, %484 : vector<8x16xf32>
    %540 = arith.mulf %524, %532 : vector<8x16xf32>
    %541 = arith.addf %539, %540 : vector<8x16xf32>
    %542 = math.tanh %541 : vector<8x16xf32>
    %543 = arith.mulf %538, %542 : vector<8x16xf32>
    %c64_126 = arith.constant 64 : index
    %c0_127 = arith.constant 0 : index
    %544 = vector.load %arg9[%c64_126, %c0_127] : memref<128x16xf32, #tpu.memory_space<vmem>>, vector<8x16xf32>
    tpu.vector_store %arg9[%c64_126, %c0_127], %543 {strides = array<i32>} : memref<128x16xf32, #tpu.memory_space<vmem>>, vector<8x16xf32>,
    %c72 = arith.constant 72 : index
    %c0_128 = arith.constant 0 : index
    %545 = vector.load %arg8[%c72, %c0_128] : memref<128x64xf32, #tpu.memory_space<vmem>>, vector<8x64xf32>
    %cst_129 = arith.constant dense<0.000000e+00> : vector<8x64xf32>
    %546 = tpu.matmul %515, %0, %cst_129 {dimension_numbers = #tpu.dot_dimension_numbers<[1], [0], [0], [1], [0, 0, 1, 1], [], []>} : vector<8x16xf32>, vector<16x64xf32>, vector<8x64xf32> -> vector<8x64xf32>
    %547 = arith.addf %545, %546 : vector<8x64xf32>
    %548 = vector.extract_strided_slice %547 {offsets = [0, 0], sizes = [8, 16], strides = [1, 1]} : vector<8x64xf32> to vector<8x16xf32>
    %549 = arith.negf %548 : vector<8x16xf32>
    %550 = math.exp %549 : vector<8x16xf32>
    %cst_130 = arith.constant 1.000000e+00 : f32
    %551 = vector.broadcast %cst_130 : f32 to vector<8x16xf32>
    %552 = arith.addf %551, %550 : vector<8x16xf32>
    %553 = arith.divf %551, %552 : vector<8x16xf32>
    %554 = vector.extract_strided_slice %547 {offsets = [0, 16], sizes = [8, 16], strides = [1, 1]} : vector<8x64xf32> to vector<8x16xf32>
    %555 = arith.negf %554 : vector<8x16xf32>
    %556 = math.exp %555 : vector<8x16xf32>
    %cst_131 = arith.constant 1.000000e+00 : f32
    %557 = vector.broadcast %cst_131 : f32 to vector<8x16xf32>
    %558 = arith.addf %557, %556 : vector<8x16xf32>
    %559 = arith.divf %557, %558 : vector<8x16xf32>
    %560 = vector.extract_strided_slice %547 {offsets = [0, 32], sizes = [8, 16], strides = [1, 1]} : vector<8x64xf32> to vector<8x16xf32>
    %561 = math.tanh %560 : vector<8x16xf32>
    %562 = vector.extract_strided_slice %547 {offsets = [0, 48], sizes = [8, 16], strides = [1, 1]} : vector<8x64xf32> to vector<8x16xf32>
    %563 = arith.negf %562 : vector<8x16xf32>
    %564 = math.exp %563 : vector<8x16xf32>
    %cst_132 = arith.constant 1.000000e+00 : f32
    %565 = vector.broadcast %cst_132 : f32 to vector<8x16xf32>
    %566 = arith.addf %565, %564 : vector<8x16xf32>
    %567 = arith.divf %565, %566 : vector<8x16xf32>
    %568 = arith.mulf %559, %513 : vector<8x16xf32>
    %569 = arith.mulf %553, %561 : vector<8x16xf32>
    %570 = arith.addf %568, %569 : vector<8x16xf32>
    %571 = math.tanh %570 : vector<8x16xf32>
    %572 = arith.mulf %567, %571 : vector<8x16xf32>
    %573 = tpu.concatenate %572, %543 in 1 : vector<8x16xf32>, vector<8x16xf32> -> vector<8x32xf32>
    %cst_133 = arith.constant dense<0.000000e+00> : vector<8x64xf32>
    %574 = tpu.matmul %573, %1, %cst_133 {dimension_numbers = #tpu.dot_dimension_numbers<[1], [0], [0], [1], [0, 0, 1, 1], [], []>} : vector<8x32xf32>, vector<32x64xf32>, vector<8x64xf32> -> vector<8x64xf32>
    %575 = arith.addf %10, %574 : vector<8x64xf32>
    %576 = vector.extract_strided_slice %575 {offsets = [0, 0], sizes = [8, 16], strides = [1, 1]} : vector<8x64xf32> to vector<8x16xf32>
    %577 = arith.negf %576 : vector<8x16xf32>
    %578 = math.exp %577 : vector<8x16xf32>
    %cst_134 = arith.constant 1.000000e+00 : f32
    %579 = vector.broadcast %cst_134 : f32 to vector<8x16xf32>
    %580 = arith.addf %579, %578 : vector<8x16xf32>
    %581 = arith.divf %579, %580 : vector<8x16xf32>
    %582 = vector.extract_strided_slice %575 {offsets = [0, 16], sizes = [8, 16], strides = [1, 1]} : vector<8x64xf32> to vector<8x16xf32>
    %583 = arith.negf %582 : vector<8x16xf32>
    %584 = math.exp %583 : vector<8x16xf32>
    %cst_135 = arith.constant 1.000000e+00 : f32
    %585 = vector.broadcast %cst_135 : f32 to vector<8x16xf32>
    %586 = arith.addf %585, %584 : vector<8x16xf32>
    %587 = arith.divf %585, %586 : vector<8x16xf32>
    %588 = vector.extract_strided_slice %575 {offsets = [0, 32], sizes = [8, 16], strides = [1, 1]} : vector<8x64xf32> to vector<8x16xf32>
    %589 = math.tanh %588 : vector<8x16xf32>
    %590 = vector.extract_strided_slice %575 {offsets = [0, 48], sizes = [8, 16], strides = [1, 1]} : vector<8x64xf32> to vector<8x16xf32>
    %591 = arith.negf %590 : vector<8x16xf32>
    %592 = math.exp %591 : vector<8x16xf32>
    %cst_136 = arith.constant 1.000000e+00 : f32
    %593 = vector.broadcast %cst_136 : f32 to vector<8x16xf32>
    %594 = arith.addf %593, %592 : vector<8x16xf32>
    %595 = arith.divf %593, %594 : vector<8x16xf32>
    %596 = arith.mulf %587, %541 : vector<8x16xf32>
    %597 = arith.mulf %581, %589 : vector<8x16xf32>
    %598 = arith.addf %596, %597 : vector<8x16xf32>
    %599 = math.tanh %598 : vector<8x16xf32>
    %600 = arith.mulf %595, %599 : vector<8x16xf32>
    %c72_137 = arith.constant 72 : index
    %c0_138 = arith.constant 0 : index
    %601 = vector.load %arg9[%c72_137, %c0_138] : memref<128x16xf32, #tpu.memory_space<vmem>>, vector<8x16xf32>
    tpu.vector_store %arg9[%c72_137, %c0_138], %600 {strides = array<i32>} : memref<128x16xf32, #tpu.memory_space<vmem>>, vector<8x16xf32>,
    %c80 = arith.constant 80 : index
    %c0_139 = arith.constant 0 : index
    %602 = vector.load %arg8[%c80, %c0_139] : memref<128x64xf32, #tpu.memory_space<vmem>>, vector<8x64xf32>
    %cst_140 = arith.constant dense<0.000000e+00> : vector<8x64xf32>
    %603 = tpu.matmul %572, %0, %cst_140 {dimension_numbers = #tpu.dot_dimension_numbers<[1], [0], [0], [1], [0, 0, 1, 1], [], []>} : vector<8x16xf32>, vector<16x64xf32>, vector<8x64xf32> -> vector<8x64xf32>
    %604 = arith.addf %602, %603 : vector<8x64xf32>
    %605 = vector.extract_strided_slice %604 {offsets = [0, 0], sizes = [8, 16], strides = [1, 1]} : vector<8x64xf32> to vector<8x16xf32>
    %606 = arith.negf %605 : vector<8x16xf32>
    %607 = math.exp %606 : vector<8x16xf32>
    %cst_141 = arith.constant 1.000000e+00 : f32
    %608 = vector.broadcast %cst_141 : f32 to vector<8x16xf32>
    %609 = arith.addf %608, %607 : vector<8x16xf32>
    %610 = arith.divf %608, %609 : vector<8x16xf32>
    %611 = vector.extract_strided_slice %604 {offsets = [0, 16], sizes = [8, 16], strides = [1, 1]} : vector<8x64xf32> to vector<8x16xf32>
    %612 = arith.negf %611 : vector<8x16xf32>
    %613 = math.exp %612 : vector<8x16xf32>
    %cst_142 = arith.constant 1.000000e+00 : f32
    %614 = vector.broadcast %cst_142 : f32 to vector<8x16xf32>
    %615 = arith.addf %614, %613 : vector<8x16xf32>
    %616 = arith.divf %614, %615 : vector<8x16xf32>
    %617 = vector.extract_strided_slice %604 {offsets = [0, 32], sizes = [8, 16], strides = [1, 1]} : vector<8x64xf32> to vector<8x16xf32>
    %618 = math.tanh %617 : vector<8x16xf32>
    %619 = vector.extract_strided_slice %604 {offsets = [0, 48], sizes = [8, 16], strides = [1, 1]} : vector<8x64xf32> to vector<8x16xf32>
    %620 = arith.negf %619 : vector<8x16xf32>
    %621 = math.exp %620 : vector<8x16xf32>
    %cst_143 = arith.constant 1.000000e+00 : f32
    %622 = vector.broadcast %cst_143 : f32 to vector<8x16xf32>
    %623 = arith.addf %622, %621 : vector<8x16xf32>
    %624 = arith.divf %622, %623 : vector<8x16xf32>
    %625 = arith.mulf %616, %570 : vector<8x16xf32>
    %626 = arith.mulf %610, %618 : vector<8x16xf32>
    %627 = arith.addf %625, %626 : vector<8x16xf32>
    %628 = math.tanh %627 : vector<8x16xf32>
    %629 = arith.mulf %624, %628 : vector<8x16xf32>
    %630 = tpu.concatenate %629, %600 in 1 : vector<8x16xf32>, vector<8x16xf32> -> vector<8x32xf32>
    %cst_144 = arith.constant dense<0.000000e+00> : vector<8x64xf32>
    %631 = tpu.matmul %630, %1, %cst_144 {dimension_numbers = #tpu.dot_dimension_numbers<[1], [0], [0], [1], [0, 0, 1, 1], [], []>} : vector<8x32xf32>, vector<32x64xf32>, vector<8x64xf32> -> vector<8x64xf32>
    %632 = arith.addf %10, %631 : vector<8x64xf32>
    %633 = vector.extract_strided_slice %632 {offsets = [0, 0], sizes = [8, 16], strides = [1, 1]} : vector<8x64xf32> to vector<8x16xf32>
    %634 = arith.negf %633 : vector<8x16xf32>
    %635 = math.exp %634 : vector<8x16xf32>
    %cst_145 = arith.constant 1.000000e+00 : f32
    %636 = vector.broadcast %cst_145 : f32 to vector<8x16xf32>
    %637 = arith.addf %636, %635 : vector<8x16xf32>
    %638 = arith.divf %636, %637 : vector<8x16xf32>
    %639 = vector.extract_strided_slice %632 {offsets = [0, 16], sizes = [8, 16], strides = [1, 1]} : vector<8x64xf32> to vector<8x16xf32>
    %640 = arith.negf %639 : vector<8x16xf32>
    %641 = math.exp %640 : vector<8x16xf32>
    %cst_146 = arith.constant 1.000000e+00 : f32
    %642 = vector.broadcast %cst_146 : f32 to vector<8x16xf32>
    %643 = arith.addf %642, %641 : vector<8x16xf32>
    %644 = arith.divf %642, %643 : vector<8x16xf32>
    %645 = vector.extract_strided_slice %632 {offsets = [0, 32], sizes = [8, 16], strides = [1, 1]} : vector<8x64xf32> to vector<8x16xf32>
    %646 = math.tanh %645 : vector<8x16xf32>
    %647 = vector.extract_strided_slice %632 {offsets = [0, 48], sizes = [8, 16], strides = [1, 1]} : vector<8x64xf32> to vector<8x16xf32>
    %648 = arith.negf %647 : vector<8x16xf32>
    %649 = math.exp %648 : vector<8x16xf32>
    %cst_147 = arith.constant 1.000000e+00 : f32
    %650 = vector.broadcast %cst_147 : f32 to vector<8x16xf32>
    %651 = arith.addf %650, %649 : vector<8x16xf32>
    %652 = arith.divf %650, %651 : vector<8x16xf32>
    %653 = arith.mulf %644, %598 : vector<8x16xf32>
    %654 = arith.mulf %638, %646 : vector<8x16xf32>
    %655 = arith.addf %653, %654 : vector<8x16xf32>
    %656 = math.tanh %655 : vector<8x16xf32>
    %657 = arith.mulf %652, %656 : vector<8x16xf32>
    %c80_148 = arith.constant 80 : index
    %c0_149 = arith.constant 0 : index
    %658 = vector.load %arg9[%c80_148, %c0_149] : memref<128x16xf32, #tpu.memory_space<vmem>>, vector<8x16xf32>
    tpu.vector_store %arg9[%c80_148, %c0_149], %657 {strides = array<i32>} : memref<128x16xf32, #tpu.memory_space<vmem>>, vector<8x16xf32>,
    %c88 = arith.constant 88 : index
    %c0_150 = arith.constant 0 : index
    %659 = vector.load %arg8[%c88, %c0_150] : memref<128x64xf32, #tpu.memory_space<vmem>>, vector<8x64xf32>
    %cst_151 = arith.constant dense<0.000000e+00> : vector<8x64xf32>
    %660 = tpu.matmul %629, %0, %cst_151 {dimension_numbers = #tpu.dot_dimension_numbers<[1], [0], [0], [1], [0, 0, 1, 1], [], []>} : vector<8x16xf32>, vector<16x64xf32>, vector<8x64xf32> -> vector<8x64xf32>
    %661 = arith.addf %659, %660 : vector<8x64xf32>
    %662 = vector.extract_strided_slice %661 {offsets = [0, 0], sizes = [8, 16], strides = [1, 1]} : vector<8x64xf32> to vector<8x16xf32>
    %663 = arith.negf %662 : vector<8x16xf32>
    %664 = math.exp %663 : vector<8x16xf32>
    %cst_152 = arith.constant 1.000000e+00 : f32
    %665 = vector.broadcast %cst_152 : f32 to vector<8x16xf32>
    %666 = arith.addf %665, %664 : vector<8x16xf32>
    %667 = arith.divf %665, %666 : vector<8x16xf32>
    %668 = vector.extract_strided_slice %661 {offsets = [0, 16], sizes = [8, 16], strides = [1, 1]} : vector<8x64xf32> to vector<8x16xf32>
    %669 = arith.negf %668 : vector<8x16xf32>
    %670 = math.exp %669 : vector<8x16xf32>
    %cst_153 = arith.constant 1.000000e+00 : f32
    %671 = vector.broadcast %cst_153 : f32 to vector<8x16xf32>
    %672 = arith.addf %671, %670 : vector<8x16xf32>
    %673 = arith.divf %671, %672 : vector<8x16xf32>
    %674 = vector.extract_strided_slice %661 {offsets = [0, 32], sizes = [8, 16], strides = [1, 1]} : vector<8x64xf32> to vector<8x16xf32>
    %675 = math.tanh %674 : vector<8x16xf32>
    %676 = vector.extract_strided_slice %661 {offsets = [0, 48], sizes = [8, 16], strides = [1, 1]} : vector<8x64xf32> to vector<8x16xf32>
    %677 = arith.negf %676 : vector<8x16xf32>
    %678 = math.exp %677 : vector<8x16xf32>
    %cst_154 = arith.constant 1.000000e+00 : f32
    %679 = vector.broadcast %cst_154 : f32 to vector<8x16xf32>
    %680 = arith.addf %679, %678 : vector<8x16xf32>
    %681 = arith.divf %679, %680 : vector<8x16xf32>
    %682 = arith.mulf %673, %627 : vector<8x16xf32>
    %683 = arith.mulf %667, %675 : vector<8x16xf32>
    %684 = arith.addf %682, %683 : vector<8x16xf32>
    %685 = math.tanh %684 : vector<8x16xf32>
    %686 = arith.mulf %681, %685 : vector<8x16xf32>
    %687 = tpu.concatenate %686, %657 in 1 : vector<8x16xf32>, vector<8x16xf32> -> vector<8x32xf32>
    %cst_155 = arith.constant dense<0.000000e+00> : vector<8x64xf32>
    %688 = tpu.matmul %687, %1, %cst_155 {dimension_numbers = #tpu.dot_dimension_numbers<[1], [0], [0], [1], [0, 0, 1, 1], [], []>} : vector<8x32xf32>, vector<32x64xf32>, vector<8x64xf32> -> vector<8x64xf32>
    %689 = arith.addf %10, %688 : vector<8x64xf32>
    %690 = vector.extract_strided_slice %689 {offsets = [0, 0], sizes = [8, 16], strides = [1, 1]} : vector<8x64xf32> to vector<8x16xf32>
    %691 = arith.negf %690 : vector<8x16xf32>
    %692 = math.exp %691 : vector<8x16xf32>
    %cst_156 = arith.constant 1.000000e+00 : f32
    %693 = vector.broadcast %cst_156 : f32 to vector<8x16xf32>
    %694 = arith.addf %693, %692 : vector<8x16xf32>
    %695 = arith.divf %693, %694 : vector<8x16xf32>
    %696 = vector.extract_strided_slice %689 {offsets = [0, 16], sizes = [8, 16], strides = [1, 1]} : vector<8x64xf32> to vector<8x16xf32>
    %697 = arith.negf %696 : vector<8x16xf32>
    %698 = math.exp %697 : vector<8x16xf32>
    %cst_157 = arith.constant 1.000000e+00 : f32
    %699 = vector.broadcast %cst_157 : f32 to vector<8x16xf32>
    %700 = arith.addf %699, %698 : vector<8x16xf32>
    %701 = arith.divf %699, %700 : vector<8x16xf32>
    %702 = vector.extract_strided_slice %689 {offsets = [0, 32], sizes = [8, 16], strides = [1, 1]} : vector<8x64xf32> to vector<8x16xf32>
    %703 = math.tanh %702 : vector<8x16xf32>
    %704 = vector.extract_strided_slice %689 {offsets = [0, 48], sizes = [8, 16], strides = [1, 1]} : vector<8x64xf32> to vector<8x16xf32>
    %705 = arith.negf %704 : vector<8x16xf32>
    %706 = math.exp %705 : vector<8x16xf32>
    %cst_158 = arith.constant 1.000000e+00 : f32
    %707 = vector.broadcast %cst_158 : f32 to vector<8x16xf32>
    %708 = arith.addf %707, %706 : vector<8x16xf32>
    %709 = arith.divf %707, %708 : vector<8x16xf32>
    %710 = arith.mulf %701, %655 : vector<8x16xf32>
    %711 = arith.mulf %695, %703 : vector<8x16xf32>
    %712 = arith.addf %710, %711 : vector<8x16xf32>
    %713 = math.tanh %712 : vector<8x16xf32>
    %714 = arith.mulf %709, %713 : vector<8x16xf32>
    %c88_159 = arith.constant 88 : index
    %c0_160 = arith.constant 0 : index
    %715 = vector.load %arg9[%c88_159, %c0_160] : memref<128x16xf32, #tpu.memory_space<vmem>>, vector<8x16xf32>
    tpu.vector_store %arg9[%c88_159, %c0_160], %714 {strides = array<i32>} : memref<128x16xf32, #tpu.memory_space<vmem>>, vector<8x16xf32>,
    %c96 = arith.constant 96 : index
    %c0_161 = arith.constant 0 : index
    %716 = vector.load %arg8[%c96, %c0_161] : memref<128x64xf32, #tpu.memory_space<vmem>>, vector<8x64xf32>
    %cst_162 = arith.constant dense<0.000000e+00> : vector<8x64xf32>
    %717 = tpu.matmul %686, %0, %cst_162 {dimension_numbers = #tpu.dot_dimension_numbers<[1], [0], [0], [1], [0, 0, 1, 1], [], []>} : vector<8x16xf32>, vector<16x64xf32>, vector<8x64xf32> -> vector<8x64xf32>
    %718 = arith.addf %716, %717 : vector<8x64xf32>
    %719 = vector.extract_strided_slice %718 {offsets = [0, 0], sizes = [8, 16], strides = [1, 1]} : vector<8x64xf32> to vector<8x16xf32>
    %720 = arith.negf %719 : vector<8x16xf32>
    %721 = math.exp %720 : vector<8x16xf32>
    %cst_163 = arith.constant 1.000000e+00 : f32
    %722 = vector.broadcast %cst_163 : f32 to vector<8x16xf32>
    %723 = arith.addf %722, %721 : vector<8x16xf32>
    %724 = arith.divf %722, %723 : vector<8x16xf32>
    %725 = vector.extract_strided_slice %718 {offsets = [0, 16], sizes = [8, 16], strides = [1, 1]} : vector<8x64xf32> to vector<8x16xf32>
    %726 = arith.negf %725 : vector<8x16xf32>
    %727 = math.exp %726 : vector<8x16xf32>
    %cst_164 = arith.constant 1.000000e+00 : f32
    %728 = vector.broadcast %cst_164 : f32 to vector<8x16xf32>
    %729 = arith.addf %728, %727 : vector<8x16xf32>
    %730 = arith.divf %728, %729 : vector<8x16xf32>
    %731 = vector.extract_strided_slice %718 {offsets = [0, 32], sizes = [8, 16], strides = [1, 1]} : vector<8x64xf32> to vector<8x16xf32>
    %732 = math.tanh %731 : vector<8x16xf32>
    %733 = vector.extract_strided_slice %718 {offsets = [0, 48], sizes = [8, 16], strides = [1, 1]} : vector<8x64xf32> to vector<8x16xf32>
    %734 = arith.negf %733 : vector<8x16xf32>
    %735 = math.exp %734 : vector<8x16xf32>
    %cst_165 = arith.constant 1.000000e+00 : f32
    %736 = vector.broadcast %cst_165 : f32 to vector<8x16xf32>
    %737 = arith.addf %736, %735 : vector<8x16xf32>
    %738 = arith.divf %736, %737 : vector<8x16xf32>
    %739 = arith.mulf %730, %684 : vector<8x16xf32>
    %740 = arith.mulf %724, %732 : vector<8x16xf32>
    %741 = arith.addf %739, %740 : vector<8x16xf32>
    %742 = math.tanh %741 : vector<8x16xf32>
    %743 = arith.mulf %738, %742 : vector<8x16xf32>
    %744 = tpu.concatenate %743, %714 in 1 : vector<8x16xf32>, vector<8x16xf32> -> vector<8x32xf32>
    %cst_166 = arith.constant dense<0.000000e+00> : vector<8x64xf32>
    %745 = tpu.matmul %744, %1, %cst_166 {dimension_numbers = #tpu.dot_dimension_numbers<[1], [0], [0], [1], [0, 0, 1, 1], [], []>} : vector<8x32xf32>, vector<32x64xf32>, vector<8x64xf32> -> vector<8x64xf32>
    %746 = arith.addf %10, %745 : vector<8x64xf32>
    %747 = vector.extract_strided_slice %746 {offsets = [0, 0], sizes = [8, 16], strides = [1, 1]} : vector<8x64xf32> to vector<8x16xf32>
    %748 = arith.negf %747 : vector<8x16xf32>
    %749 = math.exp %748 : vector<8x16xf32>
    %cst_167 = arith.constant 1.000000e+00 : f32
    %750 = vector.broadcast %cst_167 : f32 to vector<8x16xf32>
    %751 = arith.addf %750, %749 : vector<8x16xf32>
    %752 = arith.divf %750, %751 : vector<8x16xf32>
    %753 = vector.extract_strided_slice %746 {offsets = [0, 16], sizes = [8, 16], strides = [1, 1]} : vector<8x64xf32> to vector<8x16xf32>
    %754 = arith.negf %753 : vector<8x16xf32>
    %755 = math.exp %754 : vector<8x16xf32>
    %cst_168 = arith.constant 1.000000e+00 : f32
    %756 = vector.broadcast %cst_168 : f32 to vector<8x16xf32>
    %757 = arith.addf %756, %755 : vector<8x16xf32>
    %758 = arith.divf %756, %757 : vector<8x16xf32>
    %759 = vector.extract_strided_slice %746 {offsets = [0, 32], sizes = [8, 16], strides = [1, 1]} : vector<8x64xf32> to vector<8x16xf32>
    %760 = math.tanh %759 : vector<8x16xf32>
    %761 = vector.extract_strided_slice %746 {offsets = [0, 48], sizes = [8, 16], strides = [1, 1]} : vector<8x64xf32> to vector<8x16xf32>
    %762 = arith.negf %761 : vector<8x16xf32>
    %763 = math.exp %762 : vector<8x16xf32>
    %cst_169 = arith.constant 1.000000e+00 : f32
    %764 = vector.broadcast %cst_169 : f32 to vector<8x16xf32>
    %765 = arith.addf %764, %763 : vector<8x16xf32>
    %766 = arith.divf %764, %765 : vector<8x16xf32>
    %767 = arith.mulf %758, %712 : vector<8x16xf32>
    %768 = arith.mulf %752, %760 : vector<8x16xf32>
    %769 = arith.addf %767, %768 : vector<8x16xf32>
    %770 = math.tanh %769 : vector<8x16xf32>
    %771 = arith.mulf %766, %770 : vector<8x16xf32>
    %c96_170 = arith.constant 96 : index
    %c0_171 = arith.constant 0 : index
    %772 = vector.load %arg9[%c96_170, %c0_171] : memref<128x16xf32, #tpu.memory_space<vmem>>, vector<8x16xf32>
    tpu.vector_store %arg9[%c96_170, %c0_171], %771 {strides = array<i32>} : memref<128x16xf32, #tpu.memory_space<vmem>>, vector<8x16xf32>,
    %c104 = arith.constant 104 : index
    %c0_172 = arith.constant 0 : index
    %773 = vector.load %arg8[%c104, %c0_172] : memref<128x64xf32, #tpu.memory_space<vmem>>, vector<8x64xf32>
    %cst_173 = arith.constant dense<0.000000e+00> : vector<8x64xf32>
    %774 = tpu.matmul %743, %0, %cst_173 {dimension_numbers = #tpu.dot_dimension_numbers<[1], [0], [0], [1], [0, 0, 1, 1], [], []>} : vector<8x16xf32>, vector<16x64xf32>, vector<8x64xf32> -> vector<8x64xf32>
    %775 = arith.addf %773, %774 : vector<8x64xf32>
    %776 = vector.extract_strided_slice %775 {offsets = [0, 0], sizes = [8, 16], strides = [1, 1]} : vector<8x64xf32> to vector<8x16xf32>
    %777 = arith.negf %776 : vector<8x16xf32>
    %778 = math.exp %777 : vector<8x16xf32>
    %cst_174 = arith.constant 1.000000e+00 : f32
    %779 = vector.broadcast %cst_174 : f32 to vector<8x16xf32>
    %780 = arith.addf %779, %778 : vector<8x16xf32>
    %781 = arith.divf %779, %780 : vector<8x16xf32>
    %782 = vector.extract_strided_slice %775 {offsets = [0, 16], sizes = [8, 16], strides = [1, 1]} : vector<8x64xf32> to vector<8x16xf32>
    %783 = arith.negf %782 : vector<8x16xf32>
    %784 = math.exp %783 : vector<8x16xf32>
    %cst_175 = arith.constant 1.000000e+00 : f32
    %785 = vector.broadcast %cst_175 : f32 to vector<8x16xf32>
    %786 = arith.addf %785, %784 : vector<8x16xf32>
    %787 = arith.divf %785, %786 : vector<8x16xf32>
    %788 = vector.extract_strided_slice %775 {offsets = [0, 32], sizes = [8, 16], strides = [1, 1]} : vector<8x64xf32> to vector<8x16xf32>
    %789 = math.tanh %788 : vector<8x16xf32>
    %790 = vector.extract_strided_slice %775 {offsets = [0, 48], sizes = [8, 16], strides = [1, 1]} : vector<8x64xf32> to vector<8x16xf32>
    %791 = arith.negf %790 : vector<8x16xf32>
    %792 = math.exp %791 : vector<8x16xf32>
    %cst_176 = arith.constant 1.000000e+00 : f32
    %793 = vector.broadcast %cst_176 : f32 to vector<8x16xf32>
    %794 = arith.addf %793, %792 : vector<8x16xf32>
    %795 = arith.divf %793, %794 : vector<8x16xf32>
    %796 = arith.mulf %787, %741 : vector<8x16xf32>
    %797 = arith.mulf %781, %789 : vector<8x16xf32>
    %798 = arith.addf %796, %797 : vector<8x16xf32>
    %799 = math.tanh %798 : vector<8x16xf32>
    %800 = arith.mulf %795, %799 : vector<8x16xf32>
    %801 = tpu.concatenate %800, %771 in 1 : vector<8x16xf32>, vector<8x16xf32> -> vector<8x32xf32>
    %cst_177 = arith.constant dense<0.000000e+00> : vector<8x64xf32>
    %802 = tpu.matmul %801, %1, %cst_177 {dimension_numbers = #tpu.dot_dimension_numbers<[1], [0], [0], [1], [0, 0, 1, 1], [], []>} : vector<8x32xf32>, vector<32x64xf32>, vector<8x64xf32> -> vector<8x64xf32>
    %803 = arith.addf %10, %802 : vector<8x64xf32>
    %804 = vector.extract_strided_slice %803 {offsets = [0, 0], sizes = [8, 16], strides = [1, 1]} : vector<8x64xf32> to vector<8x16xf32>
    %805 = arith.negf %804 : vector<8x16xf32>
    %806 = math.exp %805 : vector<8x16xf32>
    %cst_178 = arith.constant 1.000000e+00 : f32
    %807 = vector.broadcast %cst_178 : f32 to vector<8x16xf32>
    %808 = arith.addf %807, %806 : vector<8x16xf32>
    %809 = arith.divf %807, %808 : vector<8x16xf32>
    %810 = vector.extract_strided_slice %803 {offsets = [0, 16], sizes = [8, 16], strides = [1, 1]} : vector<8x64xf32> to vector<8x16xf32>
    %811 = arith.negf %810 : vector<8x16xf32>
    %812 = math.exp %811 : vector<8x16xf32>
    %cst_179 = arith.constant 1.000000e+00 : f32
    %813 = vector.broadcast %cst_179 : f32 to vector<8x16xf32>
    %814 = arith.addf %813, %812 : vector<8x16xf32>
    %815 = arith.divf %813, %814 : vector<8x16xf32>
    %816 = vector.extract_strided_slice %803 {offsets = [0, 32], sizes = [8, 16], strides = [1, 1]} : vector<8x64xf32> to vector<8x16xf32>
    %817 = math.tanh %816 : vector<8x16xf32>
    %818 = vector.extract_strided_slice %803 {offsets = [0, 48], sizes = [8, 16], strides = [1, 1]} : vector<8x64xf32> to vector<8x16xf32>
    %819 = arith.negf %818 : vector<8x16xf32>
    %820 = math.exp %819 : vector<8x16xf32>
    %cst_180 = arith.constant 1.000000e+00 : f32
    %821 = vector.broadcast %cst_180 : f32 to vector<8x16xf32>
    %822 = arith.addf %821, %820 : vector<8x16xf32>
    %823 = arith.divf %821, %822 : vector<8x16xf32>
    %824 = arith.mulf %815, %769 : vector<8x16xf32>
    %825 = arith.mulf %809, %817 : vector<8x16xf32>
    %826 = arith.addf %824, %825 : vector<8x16xf32>
    %827 = math.tanh %826 : vector<8x16xf32>
    %828 = arith.mulf %823, %827 : vector<8x16xf32>
    %c104_181 = arith.constant 104 : index
    %c0_182 = arith.constant 0 : index
    %829 = vector.load %arg9[%c104_181, %c0_182] : memref<128x16xf32, #tpu.memory_space<vmem>>, vector<8x16xf32>
    tpu.vector_store %arg9[%c104_181, %c0_182], %828 {strides = array<i32>} : memref<128x16xf32, #tpu.memory_space<vmem>>, vector<8x16xf32>,
    %c112 = arith.constant 112 : index
    %c0_183 = arith.constant 0 : index
    %830 = vector.load %arg8[%c112, %c0_183] : memref<128x64xf32, #tpu.memory_space<vmem>>, vector<8x64xf32>
    %cst_184 = arith.constant dense<0.000000e+00> : vector<8x64xf32>
    %831 = tpu.matmul %800, %0, %cst_184 {dimension_numbers = #tpu.dot_dimension_numbers<[1], [0], [0], [1], [0, 0, 1, 1], [], []>} : vector<8x16xf32>, vector<16x64xf32>, vector<8x64xf32> -> vector<8x64xf32>
    %832 = arith.addf %830, %831 : vector<8x64xf32>
    %833 = vector.extract_strided_slice %832 {offsets = [0, 0], sizes = [8, 16], strides = [1, 1]} : vector<8x64xf32> to vector<8x16xf32>
    %834 = arith.negf %833 : vector<8x16xf32>
    %835 = math.exp %834 : vector<8x16xf32>
    %cst_185 = arith.constant 1.000000e+00 : f32
    %836 = vector.broadcast %cst_185 : f32 to vector<8x16xf32>
    %837 = arith.addf %836, %835 : vector<8x16xf32>
    %838 = arith.divf %836, %837 : vector<8x16xf32>
    %839 = vector.extract_strided_slice %832 {offsets = [0, 16], sizes = [8, 16], strides = [1, 1]} : vector<8x64xf32> to vector<8x16xf32>
    %840 = arith.negf %839 : vector<8x16xf32>
    %841 = math.exp %840 : vector<8x16xf32>
    %cst_186 = arith.constant 1.000000e+00 : f32
    %842 = vector.broadcast %cst_186 : f32 to vector<8x16xf32>
    %843 = arith.addf %842, %841 : vector<8x16xf32>
    %844 = arith.divf %842, %843 : vector<8x16xf32>
    %845 = vector.extract_strided_slice %832 {offsets = [0, 32], sizes = [8, 16], strides = [1, 1]} : vector<8x64xf32> to vector<8x16xf32>
    %846 = math.tanh %845 : vector<8x16xf32>
    %847 = vector.extract_strided_slice %832 {offsets = [0, 48], sizes = [8, 16], strides = [1, 1]} : vector<8x64xf32> to vector<8x16xf32>
    %848 = arith.negf %847 : vector<8x16xf32>
    %849 = math.exp %848 : vector<8x16xf32>
    %cst_187 = arith.constant 1.000000e+00 : f32
    %850 = vector.broadcast %cst_187 : f32 to vector<8x16xf32>
    %851 = arith.addf %850, %849 : vector<8x16xf32>
    %852 = arith.divf %850, %851 : vector<8x16xf32>
    %853 = arith.mulf %844, %798 : vector<8x16xf32>
    %854 = arith.mulf %838, %846 : vector<8x16xf32>
    %855 = arith.addf %853, %854 : vector<8x16xf32>
    %856 = math.tanh %855 : vector<8x16xf32>
    %857 = arith.mulf %852, %856 : vector<8x16xf32>
    %858 = tpu.concatenate %857, %828 in 1 : vector<8x16xf32>, vector<8x16xf32> -> vector<8x32xf32>
    %cst_188 = arith.constant dense<0.000000e+00> : vector<8x64xf32>
    %859 = tpu.matmul %858, %1, %cst_188 {dimension_numbers = #tpu.dot_dimension_numbers<[1], [0], [0], [1], [0, 0, 1, 1], [], []>} : vector<8x32xf32>, vector<32x64xf32>, vector<8x64xf32> -> vector<8x64xf32>
    %860 = arith.addf %10, %859 : vector<8x64xf32>
    %861 = vector.extract_strided_slice %860 {offsets = [0, 0], sizes = [8, 16], strides = [1, 1]} : vector<8x64xf32> to vector<8x16xf32>
    %862 = arith.negf %861 : vector<8x16xf32>
    %863 = math.exp %862 : vector<8x16xf32>
    %cst_189 = arith.constant 1.000000e+00 : f32
    %864 = vector.broadcast %cst_189 : f32 to vector<8x16xf32>
    %865 = arith.addf %864, %863 : vector<8x16xf32>
    %866 = arith.divf %864, %865 : vector<8x16xf32>
    %867 = vector.extract_strided_slice %860 {offsets = [0, 16], sizes = [8, 16], strides = [1, 1]} : vector<8x64xf32> to vector<8x16xf32>
    %868 = arith.negf %867 : vector<8x16xf32>
    %869 = math.exp %868 : vector<8x16xf32>
    %cst_190 = arith.constant 1.000000e+00 : f32
    %870 = vector.broadcast %cst_190 : f32 to vector<8x16xf32>
    %871 = arith.addf %870, %869 : vector<8x16xf32>
    %872 = arith.divf %870, %871 : vector<8x16xf32>
    %873 = vector.extract_strided_slice %860 {offsets = [0, 32], sizes = [8, 16], strides = [1, 1]} : vector<8x64xf32> to vector<8x16xf32>
    %874 = math.tanh %873 : vector<8x16xf32>
    %875 = vector.extract_strided_slice %860 {offsets = [0, 48], sizes = [8, 16], strides = [1, 1]} : vector<8x64xf32> to vector<8x16xf32>
    %876 = arith.negf %875 : vector<8x16xf32>
    %877 = math.exp %876 : vector<8x16xf32>
    %cst_191 = arith.constant 1.000000e+00 : f32
    %878 = vector.broadcast %cst_191 : f32 to vector<8x16xf32>
    %879 = arith.addf %878, %877 : vector<8x16xf32>
    %880 = arith.divf %878, %879 : vector<8x16xf32>
    %881 = arith.mulf %872, %826 : vector<8x16xf32>
    %882 = arith.mulf %866, %874 : vector<8x16xf32>
    %883 = arith.addf %881, %882 : vector<8x16xf32>
    %884 = math.tanh %883 : vector<8x16xf32>
    %885 = arith.mulf %880, %884 : vector<8x16xf32>
    %c112_192 = arith.constant 112 : index
    %c0_193 = arith.constant 0 : index
    %886 = vector.load %arg9[%c112_192, %c0_193] : memref<128x16xf32, #tpu.memory_space<vmem>>, vector<8x16xf32>
    tpu.vector_store %arg9[%c112_192, %c0_193], %885 {strides = array<i32>} : memref<128x16xf32, #tpu.memory_space<vmem>>, vector<8x16xf32>,
    %c120 = arith.constant 120 : index
    %c0_194 = arith.constant 0 : index
    %887 = vector.load %arg8[%c120, %c0_194] : memref<128x64xf32, #tpu.memory_space<vmem>>, vector<8x64xf32>
    %cst_195 = arith.constant dense<0.000000e+00> : vector<8x64xf32>
    %888 = tpu.matmul %857, %0, %cst_195 {dimension_numbers = #tpu.dot_dimension_numbers<[1], [0], [0], [1], [0, 0, 1, 1], [], []>} : vector<8x16xf32>, vector<16x64xf32>, vector<8x64xf32> -> vector<8x64xf32>
    %889 = arith.addf %887, %888 : vector<8x64xf32>
    %890 = vector.extract_strided_slice %889 {offsets = [0, 0], sizes = [8, 16], strides = [1, 1]} : vector<8x64xf32> to vector<8x16xf32>
    %891 = arith.negf %890 : vector<8x16xf32>
    %892 = math.exp %891 : vector<8x16xf32>
    %cst_196 = arith.constant 1.000000e+00 : f32
    %893 = vector.broadcast %cst_196 : f32 to vector<8x16xf32>
    %894 = arith.addf %893, %892 : vector<8x16xf32>
    %895 = arith.divf %893, %894 : vector<8x16xf32>
    %896 = vector.extract_strided_slice %889 {offsets = [0, 16], sizes = [8, 16], strides = [1, 1]} : vector<8x64xf32> to vector<8x16xf32>
    %897 = arith.negf %896 : vector<8x16xf32>
    %898 = math.exp %897 : vector<8x16xf32>
    %cst_197 = arith.constant 1.000000e+00 : f32
    %899 = vector.broadcast %cst_197 : f32 to vector<8x16xf32>
    %900 = arith.addf %899, %898 : vector<8x16xf32>
    %901 = arith.divf %899, %900 : vector<8x16xf32>
    %902 = vector.extract_strided_slice %889 {offsets = [0, 32], sizes = [8, 16], strides = [1, 1]} : vector<8x64xf32> to vector<8x16xf32>
    %903 = math.tanh %902 : vector<8x16xf32>
    %904 = vector.extract_strided_slice %889 {offsets = [0, 48], sizes = [8, 16], strides = [1, 1]} : vector<8x64xf32> to vector<8x16xf32>
    %905 = arith.negf %904 : vector<8x16xf32>
    %906 = math.exp %905 : vector<8x16xf32>
    %cst_198 = arith.constant 1.000000e+00 : f32
    %907 = vector.broadcast %cst_198 : f32 to vector<8x16xf32>
    %908 = arith.addf %907, %906 : vector<8x16xf32>
    %909 = arith.divf %907, %908 : vector<8x16xf32>
    %910 = arith.mulf %901, %855 : vector<8x16xf32>
    %911 = arith.mulf %895, %903 : vector<8x16xf32>
    %912 = arith.addf %910, %911 : vector<8x16xf32>
    %913 = math.tanh %912 : vector<8x16xf32>
    %914 = arith.mulf %909, %913 : vector<8x16xf32>
    %915 = tpu.concatenate %914, %885 in 1 : vector<8x16xf32>, vector<8x16xf32> -> vector<8x32xf32>
    %cst_199 = arith.constant dense<0.000000e+00> : vector<8x64xf32>
    %916 = tpu.matmul %915, %1, %cst_199 {dimension_numbers = #tpu.dot_dimension_numbers<[1], [0], [0], [1], [0, 0, 1, 1], [], []>} : vector<8x32xf32>, vector<32x64xf32>, vector<8x64xf32> -> vector<8x64xf32>
    %917 = arith.addf %10, %916 : vector<8x64xf32>
    %918 = vector.extract_strided_slice %917 {offsets = [0, 0], sizes = [8, 16], strides = [1, 1]} : vector<8x64xf32> to vector<8x16xf32>
    %919 = arith.negf %918 : vector<8x16xf32>
    %920 = math.exp %919 : vector<8x16xf32>
    %cst_200 = arith.constant 1.000000e+00 : f32
    %921 = vector.broadcast %cst_200 : f32 to vector<8x16xf32>
    %922 = arith.addf %921, %920 : vector<8x16xf32>
    %923 = arith.divf %921, %922 : vector<8x16xf32>
    %924 = vector.extract_strided_slice %917 {offsets = [0, 16], sizes = [8, 16], strides = [1, 1]} : vector<8x64xf32> to vector<8x16xf32>
    %925 = arith.negf %924 : vector<8x16xf32>
    %926 = math.exp %925 : vector<8x16xf32>
    %cst_201 = arith.constant 1.000000e+00 : f32
    %927 = vector.broadcast %cst_201 : f32 to vector<8x16xf32>
    %928 = arith.addf %927, %926 : vector<8x16xf32>
    %929 = arith.divf %927, %928 : vector<8x16xf32>
    %930 = vector.extract_strided_slice %917 {offsets = [0, 32], sizes = [8, 16], strides = [1, 1]} : vector<8x64xf32> to vector<8x16xf32>
    %931 = math.tanh %930 : vector<8x16xf32>
    %932 = vector.extract_strided_slice %917 {offsets = [0, 48], sizes = [8, 16], strides = [1, 1]} : vector<8x64xf32> to vector<8x16xf32>
    %933 = arith.negf %932 : vector<8x16xf32>
    %934 = math.exp %933 : vector<8x16xf32>
    %cst_202 = arith.constant 1.000000e+00 : f32
    %935 = vector.broadcast %cst_202 : f32 to vector<8x16xf32>
    %936 = arith.addf %935, %934 : vector<8x16xf32>
    %937 = arith.divf %935, %936 : vector<8x16xf32>
    %938 = arith.mulf %929, %883 : vector<8x16xf32>
    %939 = arith.mulf %923, %931 : vector<8x16xf32>
    %940 = arith.addf %938, %939 : vector<8x16xf32>
    %941 = math.tanh %940 : vector<8x16xf32>
    %942 = arith.mulf %937, %941 : vector<8x16xf32>
    %c120_203 = arith.constant 120 : index
    %c0_204 = arith.constant 0 : index
    %943 = vector.load %arg9[%c120_203, %c0_204] : memref<128x16xf32, #tpu.memory_space<vmem>>, vector<8x16xf32>
    tpu.vector_store %arg9[%c120_203, %c0_204], %942 {strides = array<i32>} : memref<128x16xf32, #tpu.memory_space<vmem>>, vector<8x16xf32>,
    %c0_205 = arith.constant 0 : index
    %c0_206 = arith.constant 0 : index
    %944 = vector.load %arg9[%c0_205, %c0_206] : memref<128x16xf32, #tpu.memory_space<vmem>>, vector<128x16xf32>
    %945 = vector.broadcast %5 : vector<1x16xf32> to vector<128x16xf32>
    %946 = arith.mulf %944, %945 : vector<128x16xf32>
    %cst_207 = arith.constant dense<0.000000e+00> : vector<128xf32>
    %947 = vector.multi_reduction <add>, %946, %cst_207 [1] : vector<128x16xf32> to vector<128xf32>
    %948 = vector.shape_cast %947 : vector<128xf32> to vector<128x1xf32>
    %949 = vector.broadcast %8 : vector<1x1xf32> to vector<128x1xf32>
    %950 = arith.addf %948, %949 : vector<128x1xf32>
    %c0_208 = arith.constant 0 : index
    %c0_209 = arith.constant 0 : index
    %951 = vector.load %arg5[%c0_208, %c0_209] : memref<128x1xf32, #tpu.memory_space<vmem>>, vector<128x1xf32>
    tpu.vector_store %arg5[%c0_208, %c0_209], %950 {strides = array<i32>} : memref<128x1xf32, #tpu.memory_space<vmem>>, vector<128x1xf32>,
    %c0_210 = arith.constant 0 : index
    %c0_211 = arith.constant 0 : index
    %c0_212 = arith.constant 0 : index
    %952 = vector.load %arg6[%c0_210, %c0_211, %c0_212] : memref<2x8x16xf32, #tpu.memory_space<vmem>>, vector<1x8x16xf32>
    %953 = vector.shape_cast %952 : vector<1x8x16xf32> to vector<8x16xf32>
    %954 = vector.shape_cast %914 : vector<8x16xf32> to vector<1x8x16xf32>
    tpu.vector_store %arg6[%c0_210, %c0_211, %c0_212], %954 {strides = array<i32>} : memref<2x8x16xf32, #tpu.memory_space<vmem>>, vector<1x8x16xf32>,
    %c1_213 = arith.constant 1 : index
    %c0_214 = arith.constant 0 : index
    %c0_215 = arith.constant 0 : index
    %955 = vector.load %arg6[%c1_213, %c0_214, %c0_215] : memref<2x8x16xf32, #tpu.memory_space<vmem>>, vector<1x8x16xf32>
    %956 = vector.shape_cast %955 : vector<1x8x16xf32> to vector<8x16xf32>
    %957 = vector.shape_cast %942 : vector<8x16xf32> to vector<1x8x16xf32>
    tpu.vector_store %arg6[%c1_213, %c0_214, %c0_215], %957 {strides = array<i32>} : memref<2x8x16xf32, #tpu.memory_space<vmem>>, vector<1x8x16xf32>,
    %c0_216 = arith.constant 0 : index
    %c0_217 = arith.constant 0 : index
    %c0_218 = arith.constant 0 : index
    %958 = vector.load %arg7[%c0_216, %c0_217, %c0_218] : memref<2x8x16xf32, #tpu.memory_space<vmem>>, vector<1x8x16xf32>
    %959 = vector.shape_cast %958 : vector<1x8x16xf32> to vector<8x16xf32>
    %960 = vector.shape_cast %912 : vector<8x16xf32> to vector<1x8x16xf32>
    tpu.vector_store %arg7[%c0_216, %c0_217, %c0_218], %960 {strides = array<i32>} : memref<2x8x16xf32, #tpu.memory_space<vmem>>, vector<1x8x16xf32>,
    %c1_219 = arith.constant 1 : index
    %c0_220 = arith.constant 0 : index
    %c0_221 = arith.constant 0 : index
    %961 = vector.load %arg7[%c1_219, %c0_220, %c0_221] : memref<2x8x16xf32, #tpu.memory_space<vmem>>, vector<1x8x16xf32>
    %962 = vector.shape_cast %961 : vector<1x8x16xf32> to vector<8x16xf32>
    %963 = vector.shape_cast %940 : vector<8x16xf32> to vector<1x8x16xf32>
    tpu.vector_store %arg7[%c1_219, %c0_220, %c0_221], %963 {strides = array<i32>} : memref<2x8x16xf32, #tpu.memory_space<vmem>>, vector<1x8x16xf32>,
    return
  }
}

</mosaic_0001>

<llo_original>
// kernel: tpu_custom_call.1
$region0: #{tpu_custom_call.1}
  #allocation0 [shape = 'u32[]', space=smem, size = 0x4, offset = 0x4, fixed_abs, tag = 'smem constant byte address 0x4 - core index']
  #allocation1 [shape = 'u32[72,128]{1,0:T(1,128)}', space=vmem, size = 0x9000, scoped, tag = 'internal scratch']
  #allocation2 [shape = 'f32[128,64]{1,0:T(8,128)}', space=vmem, size = 0x10000, scoped, tag = 'scratch operand']
  #allocation3 [shape = 'f32[128,16]{1,0:T(8,128)}', space=vmem, size = 0x10000, scoped, tag = 'scratch operand']
  %s0 = inlined_call_operand.vmem [shape: f32[128,1], index: 0, kind: input, shape index: {}]
  %s1 = inlined_call_operand.vmem [shape: f32[2,8,16], index: 1, kind: input, shape index: {}]
  %s2 = inlined_call_operand.vmem [shape: f32[2,8,16], index: 2, kind: input, shape index: {}]
  %s3 = inlined_call_operand.vmem [shape: f32[48,64], index: 3, kind: input, shape index: {}]
  %s4 = inlined_call_operand.vmem [shape: f32[4,64], index: 4, kind: input, shape index: {}]
  %s5 = inlined_call_operand.vmem [shape: f32[128,1], index: 5, kind: output, shape index: {0}]
  %s6 = inlined_call_operand.hbm [shape: f32[2,8,16], index: 6, kind: output, shape index: {1}]
  %s7 = inlined_call_operand.hbm [shape: f32[2,8,16], index: 7, kind: output, shape index: {2}]
  %8 = xla_tuple %s5, %s6, %s7
  %s9 = sld [smem:[#allocation0]]
  $region46: #{tpu_custom_call.1} parent=0
    _
  %s11 = ssub.s32 1, %s9
  %s12 = scalar_select 0, %s11, %s9
  $region1: #{tpu_custom_call.1} parent=0
    #allocation4 [shape = 'u8[8192]{0}', space=vmem, size = 0x2000, scoped, tag = 'output window, operand 1, single buffered']
    #allocation5 [shape = 's32[1]{0}', space=sflag, size = 0x4, scoped, tag = 'scoped memory for tpu_custom_call.1']
    #allocation6 [shape = 'u8[8192]{0}', space=vmem, size = 0x2000, scoped, tag = 'output window, operand 2, single buffered']
    #allocation7 [shape = 's32[1]{0}', space=sflag, size = 0x4, scoped, tag = 'scoped memory for tpu_custom_call.1']
    %13 = vsyncpa [#allocation5], 0
    %14 = vsyncpa [#allocation7], 0
    // Predicated region
    $region2: #{tpu_custom_call.1} parent=1 // pred_check
      _
    $region3: #{tpu_custom_call.1} parent=1 // pred_check_branch
      %16 = sbr.rel (0) target = $region5
    $region4: #{tpu_custom_call.1} parent=1 // pred_region
      _
    $region5: #{tpu_custom_call.1} parent=1 // pred_fallthru
      _
    // Predicated region
    $region6: #{tpu_custom_call.1} parent=1 // pred_check
      _
    $region7: #{tpu_custom_call.1} parent=1 // pred_check_branch
      %18 = sbr.rel (0) target = $region9
    $region8: #{tpu_custom_call.1} parent=1 // pred_region
      _
    $region9: #{tpu_custom_call.1} parent=1 // pred_fallthru
      _
    // Predicated region
    $region10: #{tpu_custom_call.1} parent=1 // pred_check
      _
    $region11: #{tpu_custom_call.1} parent=1 // pred_check_branch
      %20 = sbr.rel (0) target = $region13
    $region12: #{tpu_custom_call.1} parent=1 // pred_region
      _
    $region13: #{tpu_custom_call.1} parent=1 // pred_fallthru
      _
    // Predicated region
    $region14: #{tpu_custom_call.1} parent=1 // pred_check
      _
    $region15: #{tpu_custom_call.1} parent=1 // pred_check_branch
      %22 = sbr.rel (0) target = $region17
    $region16: #{tpu_custom_call.1} parent=1 // pred_region
      _
    $region17: #{tpu_custom_call.1} parent=1 // pred_fallthru
      _
    // Predicated region
    $region18: #{tpu_custom_call.1} parent=1 // pred_check
      _
    $region19: #{tpu_custom_call.1} parent=1 // pred_check_branch
      %24 = sbr.rel (0) target = $region21
    $region20: #{tpu_custom_call.1} parent=1 // pred_region
      _
    $region21: #{tpu_custom_call.1} parent=1 // pred_fallthru
      _
    %v25 = vld [vmem:[%s3] sm:$0xff]
    %v26 = vld [vmem:[%s3 + $0x8] sm:$0xff]
    %v27 = vld [vmem:[%s3 + $0x10] sm:$0xff]
    %v28 = vld [vmem:[%s3 + $0x18] sm:$0xff]
    %v29 = vld [vmem:[%s3 + $0x20] sm:$0xff]
    %v30 = vld [vmem:[%s3 + $0x28] sm:$0xff]
    %v31 = vld [vmem:[%s4] sm:$0x1]
    %v32 = vld [vmem:[%s4 + $0x1] sm:$0x1]
    %v33 = vld [vmem:[%s4 + $0x2] sm:$0x1]
    %v34 = vld [vmem:[%s4 + $0x3] sm:$0x1]
    %v35 = vperm.slane %v33, 0
    %v36 = vld [vmem:[%s0] sm:$0xff]
    %v37 = vld [vmem:[%s0 + $0x8] sm:$0xff]
    %v38 = vld [vmem:[%s0 + $0x10] sm:$0xff]
    %v39 = vld [vmem:[%s0 + $0x18] sm:$0xff]
    %v40 = vld [vmem:[%s0 + $0x20] sm:$0xff]
    %v41 = vld [vmem:[%s0 + $0x28] sm:$0xff]
    %v42 = vld [vmem:[%s0 + $0x30] sm:$0xff]
    %v43 = vld [vmem:[%s0 + $0x38] sm:$0xff]
    %v44 = vld [vmem:[%s0 + $0x40] sm:$0xff]
    %v45 = vld [vmem:[%s0 + $0x48] sm:$0xff]
    %v46 = vld [vmem:[%s0 + $0x50] sm:$0xff]
    %v47 = vld [vmem:[%s0 + $0x58] sm:$0xff]
    %v48 = vld [vmem:[%s0 + $0x60] sm:$0xff]
    %v49 = vld [vmem:[%s0 + $0x68] sm:$0xff]
    %v50 = vld [vmem:[%s0 + $0x70] sm:$0xff]
    %v51 = vld [vmem:[%s0 + $0x78] sm:$0xff]
    %v52 = vperm.slane %v34, 0
    %54 = vrot.lane.b32.xlu0 %v52, 112
    %v55 = vpop.permute.xlu0 %54
    %v57 = vmul.f32 %v36, %v55
    %v58 = vmul.f32 %v37, %v55
    %v59 = vmul.f32 %v38, %v55
    %v60 = vmul.f32 %v39, %v55
    %v61 = vmul.f32 %v40, %v55
    %v62 = vmul.f32 %v41, %v55
    %v63 = vmul.f32 %v42, %v55
    %v64 = vmul.f32 %v43, %v55
    %v65 = vmul.f32 %v44, %v55
    %v66 = vmul.f32 %v45, %v55
    %v67 = vmul.f32 %v46, %v55
    %v68 = vmul.f32 %v47, %v55
    %v69 = vmul.f32 %v48, %v55
    %v70 = vmul.f32 %v49, %v55
    %v71 = vmul.f32 %v50, %v55
    %v72 = vmul.f32 %v51, %v55
    %73 = vrot.lane.b32.xlu0 %v52, 111
    %v74 = vpop.permute.xlu0 %73
    %v76 = vadd.f32 %v57, %v74
    %v77 = vadd.f32 %v58, %v74
    %v78 = vadd.f32 %v59, %v74
    %v79 = vadd.f32 %v60, %v74
    %v80 = vadd.f32 %v61, %v74
    %v81 = vadd.f32 %v62, %v74
    %v82 = vadd.f32 %v63, %v74
    %v83 = vadd.f32 %v64, %v74
    %v84 = vadd.f32 %v65, %v74
    %v85 = vadd.f32 %v66, %v74
    %v86 = vadd.f32 %v67, %v74
    %v87 = vadd.f32 %v68, %v74
    %v88 = vadd.f32 %v69, %v74
    %v89 = vadd.f32 %v70, %v74
    %v90 = vadd.f32 %v71, %v74
    %v91 = vadd.f32 %v72, %v74
    %v92 = vmax.f32 %v76, 0.0
    %v93 = vmax.f32 %v77, 0.0
    %v94 = vmax.f32 %v78, 0.0
    %v95 = vmax.f32 %v79, 0.0
    %v96 = vmax.f32 %v80, 0.0
    %v97 = vmax.f32 %v81, 0.0
    %v98 = vmax.f32 %v82, 0.0
    %v99 = vmax.f32 %v83, 0.0
    %v100 = vmax.f32 %v84, 0.0
    %v101 = vmax.f32 %v85, 0.0
    %v102 = vmax.f32 %v86, 0.0
    %v103 = vmax.f32 %v87, 0.0
    %v104 = vmax.f32 %v88, 0.0
    %v105 = vmax.f32 %v89, 0.0
    %v106 = vmax.f32 %v90, 0.0
    %v107 = vmax.f32 %v91, 0.0
    %109 = vset.pattern.permute.xlu0 0
    %110 = vperm.xlu0 %109, %v92
    %v111 = vpop.permute.xlu0 %110
    %114 = vset.pattern.permute.xlu0 0
    %115 = vperm.xlu0 %114, %v93
    %v116 = vpop.permute.xlu0 %115
    %119 = vset.pattern.permute.xlu0 0
    %120 = vperm.xlu0 %119, %v94
    %v121 = vpop.permute.xlu0 %120
    %124 = vset.pattern.permute.xlu0 0
    %125 = vperm.xlu0 %124, %v95
    %v126 = vpop.permute.xlu0 %125
    %129 = vset.pattern.permute.xlu0 0
    %130 = vperm.xlu0 %129, %v96
    %v131 = vpop.permute.xlu0 %130
    %134 = vset.pattern.permute.xlu0 0
    %135 = vperm.xlu0 %134, %v97
    %v136 = vpop.permute.xlu0 %135
    %139 = vset.pattern.permute.xlu0 0
    %140 = vperm.xlu0 %139, %v98
    %v141 = vpop.permute.xlu0 %140
    %144 = vset.pattern.permute.xlu0 0
    %145 = vperm.xlu0 %144, %v99
    %v146 = vpop.permute.xlu0 %145
    %149 = vset.pattern.permute.xlu0 0
    %150 = vperm.xlu0 %149, %v100
    %v151 = vpop.permute.xlu0 %150
    %154 = vset.pattern.permute.xlu0 0
    %155 = vperm.xlu0 %154, %v101
    %v156 = vpop.permute.xlu0 %155
    %159 = vset.pattern.permute.xlu0 0
    %160 = vperm.xlu0 %159, %v102
    %v161 = vpop.permute.xlu0 %160
    %164 = vset.pattern.permute.xlu0 0
    %165 = vperm.xlu0 %164, %v103
    %v166 = vpop.permute.xlu0 %165
    %169 = vset.pattern.permute.xlu0 0
    %170 = vperm.xlu0 %169, %v104
    %v171 = vpop.permute.xlu0 %170
    %174 = vset.pattern.permute.xlu0 0
    %175 = vperm.xlu0 %174, %v105
    %v176 = vpop.permute.xlu0 %175
    %179 = vset.pattern.permute.xlu0 0
    %180 = vperm.xlu0 %179, %v106
    %v181 = vpop.permute.xlu0 %180
    %184 = vset.pattern.permute.xlu0 0
    %185 = vperm.xlu0 %184, %v107
    %v186 = vpop.permute.xlu0 %185
    %v188 = vperm.slane %v31, 0
    %v189 = vmul.f32 %v111, %v188
    %v190 = vmul.f32 %v116, %v188
    %v191 = vmul.f32 %v121, %v188
    %v192 = vmul.f32 %v126, %v188
    %v193 = vmul.f32 %v131, %v188
    %v194 = vmul.f32 %v136, %v188
    %v195 = vmul.f32 %v141, %v188
    %v196 = vmul.f32 %v146, %v188
    %v197 = vmul.f32 %v151, %v188
    %v198 = vmul.f32 %v156, %v188
    %v199 = vmul.f32 %v161, %v188
    %v200 = vmul.f32 %v166, %v188
    %v201 = vmul.f32 %v171, %v188
    %v202 = vmul.f32 %v176, %v188
    %v203 = vmul.f32 %v181, %v188
    %v204 = vmul.f32 %v186, %v188
    %v205 = vperm.slane %v32, 0
    %v206 = vadd.f32 %v189, %v205
    %v207 = vadd.f32 %v190, %v205
    %v208 = vadd.f32 %v191, %v205
    %v209 = vadd.f32 %v192, %v205
    %v210 = vadd.f32 %v193, %v205
    %v211 = vadd.f32 %v194, %v205
    %v212 = vadd.f32 %v195, %v205
    %v213 = vadd.f32 %v196, %v205
    %v214 = vadd.f32 %v197, %v205
    %v215 = vadd.f32 %v198, %v205
    %v216 = vadd.f32 %v199, %v205
    %v217 = vadd.f32 %v200, %v205
    %v218 = vadd.f32 %v201, %v205
    %v219 = vadd.f32 %v202, %v205
    %v220 = vadd.f32 %v203, %v205
    %v221 = vadd.f32 %v204, %v205
    %vm222 = vcmask 523264
    %223 = vst.msk [vmem:[#allocation2] sm:$0xff] %vm222, %v206
    %224 = vst.msk [vmem:[#allocation2 + $0x8] sm:$0xff] %vm222, %v207
    %225 = vst.msk [vmem:[#allocation2 + $0x10] sm:$0xff] %vm222, %v208
    %226 = vst.msk [vmem:[#allocation2 + $0x18] sm:$0xff] %vm222, %v209
    %227 = vst.msk [vmem:[#allocation2 + $0x20] sm:$0xff] %vm222, %v210
    %228 = vst.msk [vmem:[#allocation2 + $0x28] sm:$0xff] %vm222, %v211
    %229 = vst.msk [vmem:[#allocation2 + $0x30] sm:$0xff] %vm222, %v212
    %230 = vst.msk [vmem:[#allocation2 + $0x38] sm:$0xff] %vm222, %v213
    %231 = vst.msk [vmem:[#allocation2 + $0x40] sm:$0xff] %vm222, %v214
    %232 = vst.msk [vmem:[#allocation2 + $0x48] sm:$0xff] %vm222, %v215
    %233 = vst.msk [vmem:[#allocation2 + $0x50] sm:$0xff] %vm222, %v216
    %234 = vst.msk [vmem:[#allocation2 + $0x58] sm:$0xff] %vm222, %v217
    %235 = vst.msk [vmem:[#allocation2 + $0x60] sm:$0xff] %vm222, %v218
    %236 = vst.msk [vmem:[#allocation2 + $0x68] sm:$0xff] %vm222, %v219
    %237 = vst.msk [vmem:[#allocation2 + $0x70] sm:$0xff] %vm222, %v220
    %238 = vst.msk [vmem:[#allocation2 + $0x78] sm:$0xff] %vm222, %v221
    %v239 = vld [vmem:[%s1] sm:$0xff]
    %s240 = scalar_lea.vmem %s1, 8
    %v241 = vld [vmem:[%s240] sm:$0xff]
    %v242 = vld [vmem:[%s2] sm:$0xff]
    %s243 = scalar_lea.vmem %s2, 8
    %v244 = vld [vmem:[%s243] sm:$0xff]
    %v245 = vld [vmem:[#allocation2] sm:$0xff]
    %vm246 = vcmask 130048
    %v248 = vsel %vm246, %v239, 0
    %250 = vmatpush.msra.mxu0 0.0
    %251 = vmatpush.msra.mxu0 0.0
    %252 = vmatpush.msra.mxu0 0.0
    %253 = vmatpush.msra.mxu0 0.0
    %254 = vmatpush.msra.mxu0 0.0
    %255 = vmatpush.msra.mxu0 0.0
    %256 = vmatpush.msra.mxu0 0.0
    %257 = vmatpush.msra.mxu0 0.0
    %258 = vmatpush.msra.mxu0 0.0
    %259 = vmatpush.msra.mxu0 0.0
    %260 = vmatpush.msra.mxu0 0.0
    %261 = vmatpush.msra.mxu0 0.0
    %262 = vmatpush.msra.mxu0 0.0
    %263 = vmatpush.msra.mxu0 0.0
    %264 = vmatpush.msra.mxu0 %v26
    %265 = vmatpush.msra.mxu0 %v25
    %266 = vmatmul.f32.gmra.mxu0 %v248
    %v267 = vpop.f32.mrf.mxu0
    %v268 = vadd.f32 0.0, %v267
    %269 = vdwg.mxu0
    %v270 = vadd.f32 %v245, %v268
    %v271 = vxor.u32 %v270, 2147483648
    %v272 = vmul.f32 %v271, 1.442695
    %v273 = vpow.pop %v272
    %v274 = vadd.f32 %v273, 1.0
    %v275 = vrcp.pop %v274
    %v276 = vmul.f32 %v274, %v275
    %v277 = vsub.f32 1.0, %v276
    %v278 = vmul.f32 %v275, %v277
    %v279 = vadd.f32 %v275, %v278
    %vm280 = vweird.f32 %v274
    %vm281 = vweird.f32 %v275
    %vm282 = vmor %vm280, %vm281
    %v283 = vsel %vm282, %v275, %v279
    %v284 = vand.u32 2147483647, %v274
    %vm285 = vcmp.eq.f32.partialorder %v284, 8.507059e+37
    %v286 = vand.u32 %v274, 2147483648
    %v287 = vor.u32 1.1754944e-38, %v286
    %v288 = vsel %vm285, %v287, %v283
    %v289 = vmul.f32 1.0, %v288
    %v290 = vtanh.pop %v270
    %292 = vrot.lane.b32.xlu0 %v242, 16
    %v293 = vpop.permute.xlu0 %292
    %v295 = vmul.f32 %v289, %v293
    %297 = vrot.lane.b32.xlu0 %v290, 96
    %v298 = vpop.permute.xlu0 %297
    %v300 = vmul.f32 %v289, %v298
    %302 = vrot.lane.b32.xlu0 %v300, 16
    %v303 = vpop.permute.xlu0 %302
    %v305 = vadd.f32 %v295, %v303
    %v306 = vtanh.pop %v305
    %308 = vrot.lane.b32.xlu0 %v306, 32
    %v309 = vpop.permute.xlu0 %308
    %v311 = vmul.f32 %v289, %v309
    %313 = vrot.lane.b32.xlu0 %v311, 80
    %v314 = vpop.permute.xlu0 %313
    %317 = vrot.lane.b32.xlu0 %v241, 16
    %v318 = vpop.permute.xlu0 %317
    %v320 = vsel %vm246, %v314, %v318
    %vm321 = vcmask 261120
    %v323 = vsel %vm321, %v320, 0
    %325 = vmatpush.msra.mxu0 0.0
    %326 = vmatpush.msra.mxu0 0.0
    %327 = vmatpush.msra.mxu0 0.0
    %328 = vmatpush.msra.mxu0 0.0
    %329 = vmatpush.msra.mxu0 0.0
    %330 = vmatpush.msra.mxu0 0.0
    %331 = vmatpush.msra.mxu0 0.0
    %332 = vmatpush.msra.mxu0 0.0
    %333 = vmatpush.msra.mxu0 0.0
    %334 = vmatpush.msra.mxu0 0.0
    %335 = vmatpush.msra.mxu0 0.0
    %336 = vmatpush.msra.mxu0 0.0
    %337 = vmatpush.msra.mxu0 %v30
    %338 = vmatpush.msra.mxu0 %v29
    %339 = vmatpush.msra.mxu0 %v28
    %340 = vmatpush.msra.mxu0 %v27
    %341 = vmatmul.f32.gmra.mxu0 %v323
    %v342 = vpop.f32.mrf.mxu0
    %v343 = vadd.f32 0.0, %v342
    %344 = vdwg.mxu0
    %v345 = vadd.f32 %v35, %v343
    %v346 = vxor.u32 %v345, 2147483648
    %v347 = vmul.f32 %v346, 1.442695
    %v348 = vpow.pop %v347
    %v349 = vadd.f32 %v348, 1.0
    %v350 = vrcp.pop %v349
    %v351 = vmul.f32 %v349, %v350
    %v352 = vsub.f32 1.0, %v351
    %v353 = vmul.f32 %v350, %v352
    %v354 = vadd.f32 %v350, %v353
    %vm355 = vweird.f32 %v349
    %vm356 = vweird.f32 %v350
    %vm357 = vmor %vm355, %vm356
    %v358 = vsel %vm357, %v350, %v354
    %v359 = vand.u32 2147483647, %v349
    %vm360 = vcmp.eq.f32.partialorder %v359, 8.507059e+37
    %v361 = vand.u32 %v349, 2147483648
    %v362 = vor.u32 1.1754944e-38, %v361
    %v363 = vsel %vm360, %v362, %v358
    %v364 = vmul.f32 1.0, %v363
    %v365 = vtanh.pop %v345
    %367 = vrot.lane.b32.xlu0 %v244, 16
    %v368 = vpop.permute.xlu0 %367
    %v370 = vmul.f32 %v364, %v368
    %372 = vrot.lane.b32.xlu0 %v365, 96
    %v373 = vpop.permute.xlu0 %372
    %v375 = vmul.f32 %v364, %v373
    %377 = vrot.lane.b32.xlu0 %v375, 16
    %v378 = vpop.permute.xlu0 %377
    %v380 = vadd.f32 %v370, %v378
    %v381 = vtanh.pop %v380
    %383 = vrot.lane.b32.xlu0 %v381, 32
    %v384 = vpop.permute.xlu0 %383
    %v386 = vmul.f32 %v364, %v384
    %388 = vrot.lane.b32.xlu0 %v386, 80
    %v389 = vpop.permute.xlu0 %388
    %391 = vst.msk [vmem:[#allocation3] sm:$0xff] %vm246, %v389
    %v392 = vld [vmem:[#allocation2 + $0x8] sm:$0xff]
    %v393 = vsel %vm246, %v314, 0
    %395 = vmatpush.msra.mxu0 0.0
    %396 = vmatpush.msra.mxu0 0.0
    %397 = vmatpush.msra.mxu0 0.0
    %398 = vmatpush.msra.mxu0 0.0
    %399 = vmatpush.msra.mxu0 0.0
    %400 = vmatpush.msra.mxu0 0.0
    %401 = vmatpush.msra.mxu0 0.0
    %402 = vmatpush.msra.mxu0 0.0
    %403 = vmatpush.msra.mxu0 0.0
    %404 = vmatpush.msra.mxu0 0.0
    %405 = vmatpush.msra.mxu0 0.0
    %406 = vmatpush.msra.mxu0 0.0
    %407 = vmatpush.msra.mxu0 0.0
    %408 = vmatpush.msra.mxu0 0.0
    %409 = vmatpush.msra.mxu0 %v26
    %410 = vmatpush.msra.mxu0 %v25
    %411 = vmatmul.f32.gmra.mxu0 %v393
    %v412 = vpop.f32.mrf.mxu0
    %v413 = vadd.f32 0.0, %v412
    %414 = vdwg.mxu0
    %v415 = vadd.f32 %v392, %v413
    %v416 = vxor.u32 %v415, 2147483648
    %v417 = vmul.f32 %v416, 1.442695
    %v418 = vpow.pop %v417
    %v419 = vadd.f32 %v418, 1.0
    %v420 = vrcp.pop %v419
    %v421 = vmul.f32 %v419, %v420
    %v422 = vsub.f32 1.0, %v421
    %v423 = vmul.f32 %v420, %v422
    %v424 = vadd.f32 %v420, %v423
    %vm425 = vweird.f32 %v419
    %vm426 = vweird.f32 %v420
    %vm427 = vmor %vm425, %vm426
    %v428 = vsel %vm427, %v420, %v424
    %v429 = vand.u32 2147483647, %v419
    %vm430 = vcmp.eq.f32.partialorder %v429, 8.507059e+37
    %v431 = vand.u32 %v419, 2147483648
    %v432 = vor.u32 1.1754944e-38, %v431
    %v433 = vsel %vm430, %v432, %v428
    %v434 = vmul.f32 1.0, %v433
    %v435 = vtanh.pop %v415
    %v436 = vmul.f32 %v434, %v305
    %438 = vrot.lane.b32.xlu0 %v435, 96
    %v439 = vpop.permute.xlu0 %438
    %v441 = vmul.f32 %v434, %v439
    %443 = vrot.lane.b32.xlu0 %v441, 16
    %v444 = vpop.permute.xlu0 %443
    %v446 = vadd.f32 %v436, %v444
    %v447 = vtanh.pop %v446
    %449 = vrot.lane.b32.xlu0 %v447, 32
    %v450 = vpop.permute.xlu0 %449
    %v452 = vmul.f32 %v434, %v450
    %454 = vrot.lane.b32.xlu0 %v452, 80
    %v455 = vpop.permute.xlu0 %454
    %457 = vrot.lane.b32.xlu0 %v386, 96
    %v458 = vpop.permute.xlu0 %457
    %v460 = vsel %vm246, %v455, %v458
    %v462 = vsel %vm321, %v460, 0
    %464 = vmatpush.msra.mxu0 0.0
    %465 = vmatpush.msra.mxu0 0.0
    %466 = vmatpush.msra.mxu0 0.0
    %467 = vmatpush.msra.mxu0 0.0
    %468 = vmatpush.msra.mxu0 0.0
    %469 = vmatpush.msra.mxu0 0.0
    %470 = vmatpush.msra.mxu0 0.0
    %471 = vmatpush.msra.mxu0 0.0
    %472 = vmatpush.msra.mxu0 0.0
    %473 = vmatpush.msra.mxu0 0.0
    %474 = vmatpush.msra.mxu0 0.0
    %475 = vmatpush.msra.mxu0 0.0
    %476 = vmatpush.msra.mxu0 %v30
    %477 = vmatpush.msra.mxu0 %v29
    %478 = vmatpush.msra.mxu0 %v28
    %479 = vmatpush.msra.mxu0 %v27
    %480 = vmatmul.f32.gmra.mxu0 %v462
    %v481 = vpop.f32.mrf.mxu0
    %v482 = vadd.f32 0.0, %v481
    %483 = vdwg.mxu0
    %v484 = vadd.f32 %v35, %v482
    %v485 = vxor.u32 %v484, 2147483648
    %v486 = vmul.f32 %v485, 1.442695
    %v487 = vpow.pop %v486
    %v488 = vadd.f32 %v487, 1.0
    %v489 = vrcp.pop %v488
    %v490 = vmul.f32 %v488, %v489
    %v491 = vsub.f32 1.0, %v490
    %v492 = vmul.f32 %v489, %v491
    %v493 = vadd.f32 %v489, %v492
    %vm494 = vweird.f32 %v488
    %vm495 = vweird.f32 %v489
    %vm496 = vmor %vm494, %vm495
    %v497 = vsel %vm496, %v489, %v493
    %v498 = vand.u32 2147483647, %v488
    %vm499 = vcmp.eq.f32.partialorder %v498, 8.507059e+37
    %v500 = vand.u32 %v488, 2147483648
    %v501 = vor.u32 1.1754944e-38, %v500
    %v502 = vsel %vm499, %v501, %v497
    %v503 = vmul.f32 1.0, %v502
    %v504 = vtanh.pop %v484
    %v505 = vmul.f32 %v503, %v380
    %507 = vrot.lane.b32.xlu0 %v504, 96
    %v508 = vpop.permute.xlu0 %507
    %v510 = vmul.f32 %v503, %v508
    %512 = vrot.lane.b32.xlu0 %v510, 16
    %v513 = vpop.permute.xlu0 %512
    %v515 = vadd.f32 %v505, %v513
    %v516 = vtanh.pop %v515
    %518 = vrot.lane.b32.xlu0 %v516, 32
    %v519 = vpop.permute.xlu0 %518
    %v521 = vmul.f32 %v503, %v519
    %523 = vrot.lane.b32.xlu0 %v521, 80
    %v524 = vpop.permute.xlu0 %523
    %526 = vst.msk [vmem:[#allocation3 + $0x8] sm:$0xff] %vm246, %v524
    %v527 = vld [vmem:[#allocation2 + $0x10] sm:$0xff]
    %v528 = vsel %vm246, %v455, 0
    %530 = vmatpush.msra.mxu0 0.0
    %531 = vmatpush.msra.mxu0 0.0
    %532 = vmatpush.msra.mxu0 0.0
    %533 = vmatpush.msra.mxu0 0.0
    %534 = vmatpush.msra.mxu0 0.0
    %535 = vmatpush.msra.mxu0 0.0
    %536 = vmatpush.msra.mxu0 0.0
    %537 = vmatpush.msra.mxu0 0.0
    %538 = vmatpush.msra.mxu0 0.0
    %539 = vmatpush.msra.mxu0 0.0
    %540 = vmatpush.msra.mxu0 0.0
    %541 = vmatpush.msra.mxu0 0.0
    %542 = vmatpush.msra.mxu0 0.0
    %543 = vmatpush.msra.mxu0 0.0
    %544 = vmatpush.msra.mxu0 %v26
    %545 = vmatpush.msra.mxu0 %v25
    %546 = vmatmul.f32.gmra.mxu0 %v528
    %v547 = vpop.f32.mrf.mxu0
    %v548 = vadd.f32 0.0, %v547
    %549 = vdwg.mxu0
    %v550 = vadd.f32 %v527, %v548
    %v551 = vxor.u32 %v550, 2147483648
    %v552 = vmul.f32 %v551, 1.442695
    %v553 = vpow.pop %v552
    %v554 = vadd.f32 %v553, 1.0
    %v555 = vrcp.pop %v554
    %v556 = vmul.f32 %v554, %v555
    %v557 = vsub.f32 1.0, %v556
    %v558 = vmul.f32 %v555, %v557
    %v559 = vadd.f32 %v555, %v558
    %vm560 = vweird.f32 %v554
    %vm561 = vweird.f32 %v555
    %vm562 = vmor %vm560, %vm561
    %v563 = vsel %vm562, %v555, %v559
    %v564 = vand.u32 2147483647, %v554
    %vm565 = vcmp.eq.f32.partialorder %v564, 8.507059e+37
    %v566 = vand.u32 %v554, 2147483648
    %v567 = vor.u32 1.1754944e-38, %v566
    %v568 = vsel %vm565, %v567, %v563
    %v569 = vmul.f32 1.0, %v568
    %v570 = vtanh.pop %v550
    %v571 = vmul.f32 %v569, %v446
    %573 = vrot.lane.b32.xlu0 %v570, 96
    %v574 = vpop.permute.xlu0 %573
    %v576 = vmul.f32 %v569, %v574
    %578 = vrot.lane.b32.xlu0 %v576, 16
    %v579 = vpop.permute.xlu0 %578
    %v581 = vadd.f32 %v571, %v579
    %v582 = vtanh.pop %v581
    %584 = vrot.lane.b32.xlu0 %v582, 32
    %v585 = vpop.permute.xlu0 %584
    %v587 = vmul.f32 %v569, %v585
    %589 = vrot.lane.b32.xlu0 %v587, 80
    %v590 = vpop.permute.xlu0 %589
    %592 = vrot.lane.b32.xlu0 %v521, 96
    %v593 = vpop.permute.xlu0 %592
    %v595 = vsel %vm246, %v590, %v593
    %v597 = vsel %vm321, %v595, 0
    %599 = vmatpush.msra.mxu0 0.0
    %600 = vmatpush.msra.mxu0 0.0
    %601 = vmatpush.msra.mxu0 0.0
    %602 = vmatpush.msra.mxu0 0.0
    %603 = vmatpush.msra.mxu0 0.0
    %604 = vmatpush.msra.mxu0 0.0
    %605 = vmatpush.msra.mxu0 0.0
    %606 = vmatpush.msra.mxu0 0.0
    %607 = vmatpush.msra.mxu0 0.0
    %608 = vmatpush.msra.mxu0 0.0
    %609 = vmatpush.msra.mxu0 0.0
    %610 = vmatpush.msra.mxu0 0.0
    %611 = vmatpush.msra.mxu0 %v30
    %612 = vmatpush.msra.mxu0 %v29
    %613 = vmatpush.msra.mxu0 %v28
    %614 = vmatpush.msra.mxu0 %v27
    %615 = vmatmul.f32.gmra.mxu0 %v597
    %v616 = vpop.f32.mrf.mxu0
    %v617 = vadd.f32 0.0, %v616
    %618 = vdwg.mxu0
    %v619 = vadd.f32 %v35, %v617
    %v620 = vxor.u32 %v619, 2147483648
    %v621 = vmul.f32 %v620, 1.442695
    %v622 = vpow.pop %v621
    %v623 = vadd.f32 %v622, 1.0
    %v624 = vrcp.pop %v623
    %v625 = vmul.f32 %v623, %v624
    %v626 = vsub.f32 1.0, %v625
    %v627 = vmul.f32 %v624, %v626
    %v628 = vadd.f32 %v624, %v627
    %vm629 = vweird.f32 %v623
    %vm630 = vweird.f32 %v624
    %vm631 = vmor %vm629, %vm630
    %v632 = vsel %vm631, %v624, %v628
    %v633 = vand.u32 2147483647, %v623
    %vm634 = vcmp.eq.f32.partialorder %v633, 8.507059e+37
    %v635 = vand.u32 %v623, 2147483648
    %v636 = vor.u32 1.1754944e-38, %v635
    %v637 = vsel %vm634, %v636, %v632
    %v638 = vmul.f32 1.0, %v637
    %v639 = vtanh.pop %v619
    %v640 = vmul.f32 %v638, %v515
    %642 = vrot.lane.b32.xlu0 %v639, 96
    %v643 = vpop.permute.xlu0 %642
    %v645 = vmul.f32 %v638, %v643
    %647 = vrot.lane.b32.xlu0 %v645, 16
    %v648 = vpop.permute.xlu0 %647
    %v650 = vadd.f32 %v640, %v648
    %v651 = vtanh.pop %v650
    %653 = vrot.lane.b32.xlu0 %v651, 32
    %v654 = vpop.permute.xlu0 %653
    %v656 = vmul.f32 %v638, %v654
    %658 = vrot.lane.b32.xlu0 %v656, 80
    %v659 = vpop.permute.xlu0 %658
    %661 = vst.msk [vmem:[#allocation3 + $0x10] sm:$0xff] %vm246, %v659
    %v662 = vld [vmem:[#allocation2 + $0x18] sm:$0xff]
    %v663 = vsel %vm246, %v590, 0
    %665 = vmatpush.msra.mxu0 0.0
    %666 = vmatpush.msra.mxu0 0.0
    %667 = vmatpush.msra.mxu0 0.0
    %668 = vmatpush.msra.mxu0 0.0
    %669 = vmatpush.msra.mxu0 0.0
    %670 = vmatpush.msra.mxu0 0.0
    %671 = vmatpush.msra.mxu0 0.0
    %672 = vmatpush.msra.mxu0 0.0
    %673 = vmatpush.msra.mxu0 0.0
    %674 = vmatpush.msra.mxu0 0.0
    %675 = vmatpush.msra.mxu0 0.0
    %676 = vmatpush.msra.mxu0 0.0
    %677 = vmatpush.msra.mxu0 0.0
    %678 = vmatpush.msra.mxu0 0.0
    %679 = vmatpush.msra.mxu0 %v26
    %680 = vmatpush.msra.mxu0 %v25
    %681 = vmatmul.f32.gmra.mxu0 %v663
    %v682 = vpop.f32.mrf.mxu0
    %v683 = vadd.f32 0.0, %v682
    %684 = vdwg.mxu0
    %v685 = vadd.f32 %v662, %v683
    %v686 = vxor.u32 %v685, 2147483648
    %v687 = vmul.f32 %v686, 1.442695
    %v688 = vpow.pop %v687
    %v689 = vadd.f32 %v688, 1.0
    %v690 = vrcp.pop %v689
    %v691 = vmul.f32 %v689, %v690
    %v692 = vsub.f32 1.0, %v691
    %v693 = vmul.f32 %v690, %v692
    %v694 = vadd.f32 %v690, %v693
    %vm695 = vweird.f32 %v689
    %vm696 = vweird.f32 %v690
    %vm697 = vmor %vm695, %vm696
    %v698 = vsel %vm697, %v690, %v694
    %v699 = vand.u32 2147483647, %v689
    %vm700 = vcmp.eq.f32.partialorder %v699, 8.507059e+37
    %v701 = vand.u32 %v689, 2147483648
    %v702 = vor.u32 1.1754944e-38, %v701
    %v703 = vsel %vm700, %v702, %v698
    %v704 = vmul.f32 1.0, %v703
    %v705 = vtanh.pop %v685
    %v706 = vmul.f32 %v704, %v581
    %708 = vrot.lane.b32.xlu0 %v705, 96
    %v709 = vpop.permute.xlu0 %708
    %v711 = vmul.f32 %v704, %v709
    %713 = vrot.lane.b32.xlu0 %v711, 16
    %v714 = vpop.permute.xlu0 %713
    %v716 = vadd.f32 %v706, %v714
    %v717 = vtanh.pop %v716
    %719 = vrot.lane.b32.xlu0 %v717, 32
    %v720 = vpop.permute.xlu0 %719
    %v722 = vmul.f32 %v704, %v720
    %724 = vrot.lane.b32.xlu0 %v722, 80
    %v725 = vpop.permute.xlu0 %724
    %727 = vrot.lane.b32.xlu0 %v656, 96
    %v728 = vpop.permute.xlu0 %727
    %v730 = vsel %vm246, %v725, %v728
    %v732 = vsel %vm321, %v730, 0
    %734 = vmatpush.msra.mxu0 0.0
    %735 = vmatpush.msra.mxu0 0.0
    %736 = vmatpush.msra.mxu0 0.0
    %737 = vmatpush.msra.mxu0 0.0
    %738 = vmatpush.msra.mxu0 0.0
    %739 = vmatpush.msra.mxu0 0.0
    %740 = vmatpush.msra.mxu0 0.0
    %741 = vmatpush.msra.mxu0 0.0
    %742 = vmatpush.msra.mxu0 0.0
    %743 = vmatpush.msra.mxu0 0.0
    %744 = vmatpush.msra.mxu0 0.0
    %745 = vmatpush.msra.mxu0 0.0
    %746 = vmatpush.msra.mxu0 %v30
    %747 = vmatpush.msra.mxu0 %v29
    %748 = vmatpush.msra.mxu0 %v28
    %749 = vmatpush.msra.mxu0 %v27
    %750 = vmatmul.f32.gmra.mxu0 %v732
    %v751 = vpop.f32.mrf.mxu0
    %v752 = vadd.f32 0.0, %v751
    %753 = vdwg.mxu0
    %v754 = vadd.f32 %v35, %v752
    %v755 = vxor.u32 %v754, 2147483648
    %v756 = vmul.f32 %v755, 1.442695
    %v757 = vpow.pop %v756
    %v758 = vadd.f32 %v757, 1.0
    %v759 = vrcp.pop %v758
    %v760 = vmul.f32 %v758, %v759
    %v761 = vsub.f32 1.0, %v760
    %v762 = vmul.f32 %v759, %v761
    %v763 = vadd.f32 %v759, %v762
    %vm764 = vweird.f32 %v758
    %vm765 = vweird.f32 %v759
    %vm766 = vmor %vm764, %vm765
    %v767 = vsel %vm766, %v759, %v763
    %v768 = vand.u32 2147483647, %v758
    %vm769 = vcmp.eq.f32.partialorder %v768, 8.507059e+37
    %v770 = vand.u32 %v758, 2147483648
    %v771 = vor.u32 1.1754944e-38, %v770
    %v772 = vsel %vm769, %v771, %v767
    %v773 = vmul.f32 1.0, %v772
    %v774 = vtanh.pop %v754
    %v775 = vmul.f32 %v773, %v650
    %777 = vrot.lane.b32.xlu0 %v774, 96
    %v778 = vpop.permute.xlu0 %777
    %v780 = vmul.f32 %v773, %v778
    %782 = vrot.lane.b32.xlu0 %v780, 16
    %v783 = vpop.permute.xlu0 %782
    %v785 = vadd.f32 %v775, %v783
    %v786 = vtanh.pop %v785
    %788 = vrot.lane.b32.xlu0 %v786, 32
    %v789 = vpop.permute.xlu0 %788
    %v791 = vmul.f32 %v773, %v789
    %793 = vrot.lane.b32.xlu0 %v791, 80
    %v794 = vpop.permute.xlu0 %793
    %796 = vst.msk [vmem:[#allocation3 + $0x18] sm:$0xff] %vm246, %v794
    %v797 = vld [vmem:[#allocation2 + $0x20] sm:$0xff]
    %v798 = vsel %vm246, %v725, 0
    %800 = vmatpush.msra.mxu0 0.0
    %801 = vmatpush.msra.mxu0 0.0
    %802 = vmatpush.msra.mxu0 0.0
    %803 = vmatpush.msra.mxu0 0.0
    %804 = vmatpush.msra.mxu0 0.0
    %805 = vmatpush.msra.mxu0 0.0
    %806 = vmatpush.msra.mxu0 0.0
    %807 = vmatpush.msra.mxu0 0.0
    %808 = vmatpush.msra.mxu0 0.0
    %809 = vmatpush.msra.mxu0 0.0
    %810 = vmatpush.msra.mxu0 0.0
    %811 = vmatpush.msra.mxu0 0.0
    %812 = vmatpush.msra.mxu0 0.0
    %813 = vmatpush.msra.mxu0 0.0
    %814 = vmatpush.msra.mxu0 %v26
    %815 = vmatpush.msra.mxu0 %v25
    %816 = vmatmul.f32.gmra.mxu0 %v798
    %v817 = vpop.f32.mrf.mxu0
    %v818 = vadd.f32 0.0, %v817
    %819 = vdwg.mxu0
    %v820 = vadd.f32 %v797, %v818
    %v821 = vxor.u32 %v820, 2147483648
    %v822 = vmul.f32 %v821, 1.442695
    %v823 = vpow.pop %v822
    %v824 = vadd.f32 %v823, 1.0
    %v825 = vrcp.pop %v824
    %v826 = vmul.f32 %v824, %v825
    %v827 = vsub.f32 1.0, %v826
    %v828 = vmul.f32 %v825, %v827
    %v829 = vadd.f32 %v825, %v828
    %vm830 = vweird.f32 %v824
    %vm831 = vweird.f32 %v825
    %vm832 = vmor %vm830, %vm831
    %v833 = vsel %vm832, %v825, %v829
    %v834 = vand.u32 2147483647, %v824
    %vm835 = vcmp.eq.f32.partialorder %v834, 8.507059e+37
    %v836 = vand.u32 %v824, 2147483648
    %v837 = vor.u32 1.1754944e-38, %v836
    %v838 = vsel %vm835, %v837, %v833
    %v839 = vmul.f32 1.0, %v838
    %v840 = vtanh.pop %v820
    %v841 = vmul.f32 %v839, %v716
    %843 = vrot.lane.b32.xlu0 %v840, 96
    %v844 = vpop.permute.xlu0 %843
    %v846 = vmul.f32 %v839, %v844
    %848 = vrot.lane.b32.xlu0 %v846, 16
    %v849 = vpop.permute.xlu0 %848
    %v851 = vadd.f32 %v841, %v849
    %v852 = vtanh.pop %v851
    %854 = vrot.lane.b32.xlu0 %v852, 32
    %v855 = vpop.permute.xlu0 %854
    %v857 = vmul.f32 %v839, %v855
    %859 = vrot.lane.b32.xlu0 %v857, 80
    %v860 = vpop.permute.xlu0 %859
    %862 = vrot.lane.b32.xlu0 %v791, 96
    %v863 = vpop.permute.xlu0 %862
    %v865 = vsel %vm246, %v860, %v863
    %v867 = vsel %vm321, %v865, 0
    %869 = vmatpush.msra.mxu0 0.0
    %870 = vmatpush.msra.mxu0 0.0
    %871 = vmatpush.msra.mxu0 0.0
    %872 = vmatpush.msra.mxu0 0.0
    %873 = vmatpush.msra.mxu0 0.0
    %874 = vmatpush.msra.mxu0 0.0
    %875 = vmatpush.msra.mxu0 0.0
    %876 = vmatpush.msra.mxu0 0.0
    %877 = vmatpush.msra.mxu0 0.0
    %878 = vmatpush.msra.mxu0 0.0
    %879 = vmatpush.msra.mxu0 0.0
    %880 = vmatpush.msra.mxu0 0.0
    %881 = vmatpush.msra.mxu0 %v30
    %882 = vmatpush.msra.mxu0 %v29
    %883 = vmatpush.msra.mxu0 %v28
    %884 = vmatpush.msra.mxu0 %v27
    %885 = vmatmul.f32.gmra.mxu0 %v867
    %v886 = vpop.f32.mrf.mxu0
    %v887 = vadd.f32 0.0, %v886
    %888 = vdwg.mxu0
    %v889 = vadd.f32 %v35, %v887
    %v890 = vxor.u32 %v889, 2147483648
    %v891 = vmul.f32 %v890, 1.442695
    %v892 = vpow.pop %v891
    %v893 = vadd.f32 %v892, 1.0
    %v894 = vrcp.pop %v893
    %v895 = vmul.f32 %v893, %v894
    %v896 = vsub.f32 1.0, %v895
    %v897 = vmul.f32 %v894, %v896
    %v898 = vadd.f32 %v894, %v897
    %vm899 = vweird.f32 %v893
    %vm900 = vweird.f32 %v894
    %vm901 = vmor %vm899, %vm900
    %v902 = vsel %vm901, %v894, %v898
    %v903 = vand.u32 2147483647, %v893
    %vm904 = vcmp.eq.f32.partialorder %v903, 8.507059e+37
    %v905 = vand.u32 %v893, 2147483648
    %v906 = vor.u32 1.1754944e-38, %v905
    %v907 = vsel %vm904, %v906, %v902
    %v908 = vmul.f32 1.0, %v907
    %v909 = vtanh.pop %v889
    %v910 = vmul.f32 %v908, %v785
    %912 = vrot.lane.b32.xlu0 %v909, 96
    %v913 = vpop.permute.xlu0 %912
    %v915 = vmul.f32 %v908, %v913
    %917 = vrot.lane.b32.xlu0 %v915, 16
    %v918 = vpop.permute.xlu0 %917
    %v920 = vadd.f32 %v910, %v918
    %v921 = vtanh.pop %v920
    %923 = vrot.lane.b32.xlu0 %v921, 32
    %v924 = vpop.permute.xlu0 %923
    %v926 = vmul.f32 %v908, %v924
    %928 = vrot.lane.b32.xlu0 %v926, 80
    %v929 = vpop.permute.xlu0 %928
    %931 = vst.msk [vmem:[#allocation3 + $0x20] sm:$0xff] %vm246, %v929
    %v932 = vld [vmem:[#allocation2 + $0x28] sm:$0xff]
    %v933 = vsel %vm246, %v860, 0
    %935 = vmatpush.msra.mxu0 0.0
    %936 = vmatpush.msra.mxu0 0.0
    %937 = vmatpush.msra.mxu0 0.0
    %938 = vmatpush.msra.mxu0 0.0
    %939 = vmatpush.msra.mxu0 0.0
    %940 = vmatpush.msra.mxu0 0.0
    %941 = vmatpush.msra.mxu0 0.0
    %942 = vmatpush.msra.mxu0 0.0
    %943 = vmatpush.msra.mxu0 0.0
    %944 = vmatpush.msra.mxu0 0.0
    %945 = vmatpush.msra.mxu0 0.0
    %946 = vmatpush.msra.mxu0 0.0
    %947 = vmatpush.msra.mxu0 0.0
    %948 = vmatpush.msra.mxu0 0.0
    %949 = vmatpush.msra.mxu0 %v26
    %950 = vmatpush.msra.mxu0 %v25
    %951 = vmatmul.f32.gmra.mxu0 %v933
    %v952 = vpop.f32.mrf.mxu0
    %v953 = vadd.f32 0.0, %v952
    %954 = vdwg.mxu0
    %v955 = vadd.f32 %v932, %v953
    %v956 = vxor.u32 %v955, 2147483648
    %v957 = vmul.f32 %v956, 1.442695
    %v958 = vpow.pop %v957
    %v959 = vadd.f32 %v958, 1.0
    %v960 = vrcp.pop %v959
    %v961 = vmul.f32 %v959, %v960
    %v962 = vsub.f32 1.0, %v961
    %v963 = vmul.f32 %v960, %v962
    %v964 = vadd.f32 %v960, %v963
    %vm965 = vweird.f32 %v959
    %vm966 = vweird.f32 %v960
    %vm967 = vmor %vm965, %vm966
    %v968 = vsel %vm967, %v960, %v964
    %v969 = vand.u32 2147483647, %v959
    %vm970 = vcmp.eq.f32.partialorder %v969, 8.507059e+37
    %v971 = vand.u32 %v959, 2147483648
    %v972 = vor.u32 1.1754944e-38, %v971
    %v973 = vsel %vm970, %v972, %v968
    %v974 = vmul.f32 1.0, %v973
    %v975 = vtanh.pop %v955
    %v976 = vmul.f32 %v974, %v851
    %978 = vrot.lane.b32.xlu0 %v975, 96
    %v979 = vpop.permute.xlu0 %978
    %v981 = vmul.f32 %v974, %v979
    %983 = vrot.lane.b32.xlu0 %v981, 16
    %v984 = vpop.permute.xlu0 %983
    %v986 = vadd.f32 %v976, %v984
    %v987 = vtanh.pop %v986
    %989 = vrot.lane.b32.xlu0 %v987, 32
    %v990 = vpop.permute.xlu0 %989
    %v992 = vmul.f32 %v974, %v990
    %994 = vrot.lane.b32.xlu0 %v992, 80
    %v995 = vpop.permute.xlu0 %994
    %997 = vrot.lane.b32.xlu0 %v926, 96
    %v998 = vpop.permute.xlu0 %997
    %v1000 = vsel %vm246, %v995, %v998
    %v1002 = vsel %vm321, %v1000, 0
    %1004 = vmatpush.msra.mxu0 0.0
    %1005 = vmatpush.msra.mxu0 0.0
    %1006 = vmatpush.msra.mxu0 0.0
    %1007 = vmatpush.msra.mxu0 0.0
    %1008 = vmatpush.msra.mxu0 0.0
    %1009 = vmatpush.msra.mxu0 0.0
    %1010 = vmatpush.msra.mxu0 0.0
    %1011 = vmatpush.msra.mxu0 0.0
    %1012 = vmatpush.msra.mxu0 0.0
    %1013 = vmatpush.msra.mxu0 0.0
    %1014 = vmatpush.msra.mxu0 0.0
    %1015 = vmatpush.msra.mxu0 0.0
    %1016 = vmatpush.msra.mxu0 %v30
    %1017 = vmatpush.msra.mxu0 %v29
    %1018 = vmatpush.msra.mxu0 %v28
    %1019 = vmatpush.msra.mxu0 %v27
    %1020 = vmatmul.f32.gmra.mxu0 %v1002
    %v1021 = vpop.f32.mrf.mxu0
    %v1022 = vadd.f32 0.0, %v1021
    %1023 = vdwg.mxu0
    %v1024 = vadd.f32 %v35, %v1022
    %v1025 = vxor.u32 %v1024, 2147483648
    %v1026 = vmul.f32 %v1025, 1.442695
    %v1027 = vpow.pop %v1026
    %v1028 = vadd.f32 %v1027, 1.0
    %v1029 = vrcp.pop %v1028
    %v1030 = vmul.f32 %v1028, %v1029
    %v1031 = vsub.f32 1.0, %v1030
    %v1032 = vmul.f32 %v1029, %v1031
    %v1033 = vadd.f32 %v1029, %v1032
    %vm1034 = vweird.f32 %v1028
    %vm1035 = vweird.f32 %v1029
    %vm1036 = vmor %vm1034, %vm1035
    %v1037 = vsel %vm1036, %v1029, %v1033
    %v1038 = vand.u32 2147483647, %v1028
    %vm1039 = vcmp.eq.f32.partialorder %v1038, 8.507059e+37
    %v1040 = vand.u32 %v1028, 2147483648
    %v1041 = vor.u32 1.1754944e-38, %v1040
    %v1042 = vsel %vm1039, %v1041, %v1037
    %v1043 = vmul.f32 1.0, %v1042
    %v1044 = vtanh.pop %v1024
    %v1045 = vmul.f32 %v1043, %v920
    %1047 = vrot.lane.b32.xlu0 %v1044, 96
    %v1048 = vpop.permute.xlu0 %1047
    %v1050 = vmul.f32 %v1043, %v1048
    %1052 = vrot.lane.b32.xlu0 %v1050, 16
    %v1053 = vpop.permute.xlu0 %1052
    %v1055 = vadd.f32 %v1045, %v1053
    %v1056 = vtanh.pop %v1055
    %1058 = vrot.lane.b32.xlu0 %v1056, 32
    %v1059 = vpop.permute.xlu0 %1058
    %v1061 = vmul.f32 %v1043, %v1059
    %1063 = vrot.lane.b32.xlu0 %v1061, 80
    %v1064 = vpop.permute.xlu0 %1063
    %1066 = vst.msk [vmem:[#allocation3 + $0x28] sm:$0xff] %vm246, %v1064
    %v1067 = vld [vmem:[#allocation2 + $0x30] sm:$0xff]
    %v1068 = vsel %vm246, %v995, 0
    %1070 = vmatpush.msra.mxu0 0.0
    %1071 = vmatpush.msra.mxu0 0.0
    %1072 = vmatpush.msra.mxu0 0.0
    %1073 = vmatpush.msra.mxu0 0.0
    %1074 = vmatpush.msra.mxu0 0.0
    %1075 = vmatpush.msra.mxu0 0.0
    %1076 = vmatpush.msra.mxu0 0.0
    %1077 = vmatpush.msra.mxu0 0.0
    %1078 = vmatpush.msra.mxu0 0.0
    %1079 = vmatpush.msra.mxu0 0.0
    %1080 = vmatpush.msra.mxu0 0.0
    %1081 = vmatpush.msra.mxu0 0.0
    %1082 = vmatpush.msra.mxu0 0.0
    %1083 = vmatpush.msra.mxu0 0.0
    %1084 = vmatpush.msra.mxu0 %v26
    %1085 = vmatpush.msra.mxu0 %v25
    %1086 = vmatmul.f32.gmra.mxu0 %v1068
    %v1087 = vpop.f32.mrf.mxu0
    %v1088 = vadd.f32 0.0, %v1087
    %1089 = vdwg.mxu0
    %v1090 = vadd.f32 %v1067, %v1088
    %v1091 = vxor.u32 %v1090, 2147483648
    %v1092 = vmul.f32 %v1091, 1.442695
    %v1093 = vpow.pop %v1092
    %v1094 = vadd.f32 %v1093, 1.0
    %v1095 = vrcp.pop %v1094
    %v1096 = vmul.f32 %v1094, %v1095
    %v1097 = vsub.f32 1.0, %v1096
    %v1098 = vmul.f32 %v1095, %v1097
    %v1099 = vadd.f32 %v1095, %v1098
    %vm1100 = vweird.f32 %v1094
    %vm1101 = vweird.f32 %v1095
    %vm1102 = vmor %vm1100, %vm1101
    %v1103 = vsel %vm1102, %v1095, %v1099
    %v1104 = vand.u32 2147483647, %v1094
    %vm1105 = vcmp.eq.f32.partialorder %v1104, 8.507059e+37
    %v1106 = vand.u32 %v1094, 2147483648
    %v1107 = vor.u32 1.1754944e-38, %v1106
    %v1108 = vsel %vm1105, %v1107, %v1103
    %v1109 = vmul.f32 1.0, %v1108
    %v1110 = vtanh.pop %v1090
    %v1111 = vmul.f32 %v1109, %v986
    %1113 = vrot.lane.b32.xlu0 %v1110, 96
    %v1114 = vpop.permute.xlu0 %1113
    %v1116 = vmul.f32 %v1109, %v1114
    %1118 = vrot.lane.b32.xlu0 %v1116, 16
    %v1119 = vpop.permute.xlu0 %1118
    %v1121 = vadd.f32 %v1111, %v1119
    %v1122 = vtanh.pop %v1121
    %1124 = vrot.lane.b32.xlu0 %v1122, 32
    %v1125 = vpop.permute.xlu0 %1124
    %v1127 = vmul.f32 %v1109, %v1125
    %1129 = vrot.lane.b32.xlu0 %v1127, 80
    %v1130 = vpop.permute.xlu0 %1129
    %1132 = vrot.lane.b32.xlu0 %v1061, 96
    %v1133 = vpop.permute.xlu0 %1132
    %v1135 = vsel %vm246, %v1130, %v1133
    %v1137 = vsel %vm321, %v1135, 0
    %1139 = vmatpush.msra.mxu0 0.0
    %1140 = vmatpush.msra.mxu0 0.0
    %1141 = vmatpush.msra.mxu0 0.0
    %1142 = vmatpush.msra.mxu0 0.0
    %1143 = vmatpush.msra.mxu0 0.0
    %1144 = vmatpush.msra.mxu0 0.0
    %1145 = vmatpush.msra.mxu0 0.0
    %1146 = vmatpush.msra.mxu0 0.0
    %1147 = vmatpush.msra.mxu0 0.0
    %1148 = vmatpush.msra.mxu0 0.0
    %1149 = vmatpush.msra.mxu0 0.0
    %1150 = vmatpush.msra.mxu0 0.0
    %1151 = vmatpush.msra.mxu0 %v30
    %1152 = vmatpush.msra.mxu0 %v29
    %1153 = vmatpush.msra.mxu0 %v28
    %1154 = vmatpush.msra.mxu0 %v27
    %1155 = vmatmul.f32.gmra.mxu0 %v1137
    %v1156 = vpop.f32.mrf.mxu0
    %v1157 = vadd.f32 0.0, %v1156
    %1158 = vdwg.mxu0
    %v1159 = vadd.f32 %v35, %v1157
    %v1160 = vxor.u32 %v1159, 2147483648
    %v1161 = vmul.f32 %v1160, 1.442695
    %v1162 = vpow.pop %v1161
    %v1163 = vadd.f32 %v1162, 1.0
    %v1164 = vrcp.pop %v1163
    %v1165 = vmul.f32 %v1163, %v1164
    %v1166 = vsub.f32 1.0, %v1165
    %v1167 = vmul.f32 %v1164, %v1166
    %v1168 = vadd.f32 %v1164, %v1167
    %vm1169 = vweird.f32 %v1163
    %vm1170 = vweird.f32 %v1164
    %vm1171 = vmor %vm1169, %vm1170
    %v1172 = vsel %vm1171, %v1164, %v1168
    %v1173 = vand.u32 2147483647, %v1163
    %vm1174 = vcmp.eq.f32.partialorder %v1173, 8.507059e+37
    %v1175 = vand.u32 %v1163, 2147483648
    %v1176 = vor.u32 1.1754944e-38, %v1175
    %v1177 = vsel %vm1174, %v1176, %v1172
    %v1178 = vmul.f32 1.0, %v1177
    %v1179 = vtanh.pop %v1159
    %v1180 = vmul.f32 %v1178, %v1055
    %1182 = vrot.lane.b32.xlu0 %v1179, 96
    %v1183 = vpop.permute.xlu0 %1182
    %v1185 = vmul.f32 %v1178, %v1183
    %1187 = vrot.lane.b32.xlu0 %v1185, 16
    %v1188 = vpop.permute.xlu0 %1187
    %v1190 = vadd.f32 %v1180, %v1188
    %v1191 = vtanh.pop %v1190
    %1193 = vrot.lane.b32.xlu0 %v1191, 32
    %v1194 = vpop.permute.xlu0 %1193
    %v1196 = vmul.f32 %v1178, %v1194
    %1198 = vrot.lane.b32.xlu0 %v1196, 80
    %v1199 = vpop.permute.xlu0 %1198
    %1201 = vst.msk [vmem:[#allocation3 + $0x30] sm:$0xff] %vm246, %v1199
    %v1202 = vld [vmem:[#allocation2 + $0x38] sm:$0xff]
    %v1203 = vsel %vm246, %v1130, 0
    %1205 = vmatpush.msra.mxu0 0.0
    %1206 = vmatpush.msra.mxu0 0.0
    %1207 = vmatpush.msra.mxu0 0.0
    %1208 = vmatpush.msra.mxu0 0.0
    %1209 = vmatpush.msra.mxu0 0.0
    %1210 = vmatpush.msra.mxu0 0.0
    %1211 = vmatpush.msra.mxu0 0.0
    %1212 = vmatpush.msra.mxu0 0.0
    %1213 = vmatpush.msra.mxu0 0.0
    %1214 = vmatpush.msra.mxu0 0.0
    %1215 = vmatpush.msra.mxu0 0.0
    %1216 = vmatpush.msra.mxu0 0.0
    %1217 = vmatpush.msra.mxu0 0.0
    %1218 = vmatpush.msra.mxu0 0.0
    %1219 = vmatpush.msra.mxu0 %v26
    %1220 = vmatpush.msra.mxu0 %v25
    %1221 = vmatmul.f32.gmra.mxu0 %v1203
    %v1222 = vpop.f32.mrf.mxu0
    %v1223 = vadd.f32 0.0, %v1222
    %1224 = vdwg.mxu0
    %v1225 = vadd.f32 %v1202, %v1223
    %v1226 = vxor.u32 %v1225, 2147483648
    %v1227 = vmul.f32 %v1226, 1.442695
    %v1228 = vpow.pop %v1227
    %v1229 = vadd.f32 %v1228, 1.0
    %v1230 = vrcp.pop %v1229
    %v1231 = vmul.f32 %v1229, %v1230
    %v1232 = vsub.f32 1.0, %v1231
    %v1233 = vmul.f32 %v1230, %v1232
    %v1234 = vadd.f32 %v1230, %v1233
    %vm1235 = vweird.f32 %v1229
    %vm1236 = vweird.f32 %v1230
    %vm1237 = vmor %vm1235, %vm1236
    %v1238 = vsel %vm1237, %v1230, %v1234
    %v1239 = vand.u32 2147483647, %v1229
    %vm1240 = vcmp.eq.f32.partialorder %v1239, 8.507059e+37
    %v1241 = vand.u32 %v1229, 2147483648
    %v1242 = vor.u32 1.1754944e-38, %v1241
    %v1243 = vsel %vm1240, %v1242, %v1238
    %v1244 = vmul.f32 1.0, %v1243
    %v1245 = vtanh.pop %v1225
    %v1246 = vmul.f32 %v1244, %v1121
    %1248 = vrot.lane.b32.xlu0 %v1245, 96
    %v1249 = vpop.permute.xlu0 %1248
    %v1251 = vmul.f32 %v1244, %v1249
    %1253 = vrot.lane.b32.xlu0 %v1251, 16
    %v1254 = vpop.permute.xlu0 %1253
    %v1256 = vadd.f32 %v1246, %v1254
    %v1257 = vtanh.pop %v1256
    %1259 = vrot.lane.b32.xlu0 %v1257, 32
    %v1260 = vpop.permute.xlu0 %1259
    %v1262 = vmul.f32 %v1244, %v1260
    %1264 = vrot.lane.b32.xlu0 %v1262, 80
    %v1265 = vpop.permute.xlu0 %1264
    %1267 = vrot.lane.b32.xlu0 %v1196, 96
    %v1268 = vpop.permute.xlu0 %1267
    %v1270 = vsel %vm246, %v1265, %v1268
    %v1272 = vsel %vm321, %v1270, 0
    %1274 = vmatpush.msra.mxu0 0.0
    %1275 = vmatpush.msra.mxu0 0.0
    %1276 = vmatpush.msra.mxu0 0.0
    %1277 = vmatpush.msra.mxu0 0.0
    %1278 = vmatpush.msra.mxu0 0.0
    %1279 = vmatpush.msra.mxu0 0.0
    %1280 = vmatpush.msra.mxu0 0.0
    %1281 = vmatpush.msra.mxu0 0.0
    %1282 = vmatpush.msra.mxu0 0.0
    %1283 = vmatpush.msra.mxu0 0.0
    %1284 = vmatpush.msra.mxu0 0.0
    %1285 = vmatpush.msra.mxu0 0.0
    %1286 = vmatpush.msra.mxu0 %v30
    %1287 = vmatpush.msra.mxu0 %v29
    %1288 = vmatpush.msra.mxu0 %v28
    %1289 = vmatpush.msra.mxu0 %v27
    %1290 = vmatmul.f32.gmra.mxu0 %v1272
    %v1291 = vpop.f32.mrf.mxu0
    %v1292 = vadd.f32 0.0, %v1291
    %1293 = vdwg.mxu0
    %v1294 = vadd.f32 %v35, %v1292
    %v1295 = vxor.u32 %v1294, 2147483648
    %v1296 = vmul.f32 %v1295, 1.442695
    %v1297 = vpow.pop %v1296
    %v1298 = vadd.f32 %v1297, 1.0
    %v1299 = vrcp.pop %v1298
    %v1300 = vmul.f32 %v1298, %v1299
    %v1301 = vsub.f32 1.0, %v1300
    %v1302 = vmul.f32 %v1299, %v1301
    %v1303 = vadd.f32 %v1299, %v1302
    %vm1304 = vweird.f32 %v1298
    %vm1305 = vweird.f32 %v1299
    %vm1306 = vmor %vm1304, %vm1305
    %v1307 = vsel %vm1306, %v1299, %v1303
    %v1308 = vand.u32 2147483647, %v1298
    %vm1309 = vcmp.eq.f32.partialorder %v1308, 8.507059e+37
    %v1310 = vand.u32 %v1298, 2147483648
    %v1311 = vor.u32 1.1754944e-38, %v1310
    %v1312 = vsel %vm1309, %v1311, %v1307
    %v1313 = vmul.f32 1.0, %v1312
    %v1314 = vtanh.pop %v1294
    %v1315 = vmul.f32 %v1313, %v1190
    %1317 = vrot.lane.b32.xlu0 %v1314, 96
    %v1318 = vpop.permute.xlu0 %1317
    %v1320 = vmul.f32 %v1313, %v1318
    %1322 = vrot.lane.b32.xlu0 %v1320, 16
    %v1323 = vpop.permute.xlu0 %1322
    %v1325 = vadd.f32 %v1315, %v1323
    %v1326 = vtanh.pop %v1325
    %1328 = vrot.lane.b32.xlu0 %v1326, 32
    %v1329 = vpop.permute.xlu0 %1328
    %v1331 = vmul.f32 %v1313, %v1329
    %1333 = vrot.lane.b32.xlu0 %v1331, 80
    %v1334 = vpop.permute.xlu0 %1333
    %1336 = vst.msk [vmem:[#allocation3 + $0x38] sm:$0xff] %vm246, %v1334
    %v1337 = vld [vmem:[#allocation2 + $0x40] sm:$0xff]
    %v1338 = vsel %vm246, %v1265, 0
    %1340 = vmatpush.msra.mxu0 0.0
    %1341 = vmatpush.msra.mxu0 0.0
    %1342 = vmatpush.msra.mxu0 0.0
    %1343 = vmatpush.msra.mxu0 0.0
    %1344 = vmatpush.msra.mxu0 0.0
    %1345 = vmatpush.msra.mxu0 0.0
    %1346 = vmatpush.msra.mxu0 0.0
    %1347 = vmatpush.msra.mxu0 0.0
    %1348 = vmatpush.msra.mxu0 0.0
    %1349 = vmatpush.msra.mxu0 0.0
    %1350 = vmatpush.msra.mxu0 0.0
    %1351 = vmatpush.msra.mxu0 0.0
    %1352 = vmatpush.msra.mxu0 0.0
    %1353 = vmatpush.msra.mxu0 0.0
    %1354 = vmatpush.msra.mxu0 %v26
    %1355 = vmatpush.msra.mxu0 %v25
    %1356 = vmatmul.f32.gmra.mxu0 %v1338
    %v1357 = vpop.f32.mrf.mxu0
    %v1358 = vadd.f32 0.0, %v1357
    %1359 = vdwg.mxu0
    %v1360 = vadd.f32 %v1337, %v1358
    %v1361 = vxor.u32 %v1360, 2147483648
    %v1362 = vmul.f32 %v1361, 1.442695
    %v1363 = vpow.pop %v1362
    %v1364 = vadd.f32 %v1363, 1.0
    %v1365 = vrcp.pop %v1364
    %v1366 = vmul.f32 %v1364, %v1365
    %v1367 = vsub.f32 1.0, %v1366
    %v1368 = vmul.f32 %v1365, %v1367
    %v1369 = vadd.f32 %v1365, %v1368
    %vm1370 = vweird.f32 %v1364
    %vm1371 = vweird.f32 %v1365
    %vm1372 = vmor %vm1370, %vm1371
    %v1373 = vsel %vm1372, %v1365, %v1369
    %v1374 = vand.u32 2147483647, %v1364
    %vm1375 = vcmp.eq.f32.partialorder %v1374, 8.507059e+37
    %v1376 = vand.u32 %v1364, 2147483648
    %v1377 = vor.u32 1.1754944e-38, %v1376
    %v1378 = vsel %vm1375, %v1377, %v1373
    %v1379 = vmul.f32 1.0, %v1378
    %v1380 = vtanh.pop %v1360
    %v1381 = vmul.f32 %v1379, %v1256
    %1383 = vrot.lane.b32.xlu0 %v1380, 96
    %v1384 = vpop.permute.xlu0 %1383
    %v1386 = vmul.f32 %v1379, %v1384
    %1388 = vrot.lane.b32.xlu0 %v1386, 16
    %v1389 = vpop.permute.xlu0 %1388
    %v1391 = vadd.f32 %v1381, %v1389
    %v1392 = vtanh.pop %v1391
    %1394 = vrot.lane.b32.xlu0 %v1392, 32
    %v1395 = vpop.permute.xlu0 %1394
    %v1397 = vmul.f32 %v1379, %v1395
    %1399 = vrot.lane.b32.xlu0 %v1397, 80
    %v1400 = vpop.permute.xlu0 %1399
    %1402 = vrot.lane.b32.xlu0 %v1331, 96
    %v1403 = vpop.permute.xlu0 %1402
    %v1405 = vsel %vm246, %v1400, %v1403
    %v1407 = vsel %vm321, %v1405, 0
    %1409 = vmatpush.msra.mxu0 0.0
    %1410 = vmatpush.msra.mxu0 0.0
    %1411 = vmatpush.msra.mxu0 0.0
    %1412 = vmatpush.msra.mxu0 0.0
    %1413 = vmatpush.msra.mxu0 0.0
    %1414 = vmatpush.msra.mxu0 0.0
    %1415 = vmatpush.msra.mxu0 0.0
    %1416 = vmatpush.msra.mxu0 0.0
    %1417 = vmatpush.msra.mxu0 0.0
    %1418 = vmatpush.msra.mxu0 0.0
    %1419 = vmatpush.msra.mxu0 0.0
    %1420 = vmatpush.msra.mxu0 0.0
    %1421 = vmatpush.msra.mxu0 %v30
    %1422 = vmatpush.msra.mxu0 %v29
    %1423 = vmatpush.msra.mxu0 %v28
    %1424 = vmatpush.msra.mxu0 %v27
    %1425 = vmatmul.f32.gmra.mxu0 %v1407
    %v1426 = vpop.f32.mrf.mxu0
    %v1427 = vadd.f32 0.0, %v1426
    %1428 = vdwg.mxu0
    %v1429 = vadd.f32 %v35, %v1427
    %v1430 = vxor.u32 %v1429, 2147483648
    %v1431 = vmul.f32 %v1430, 1.442695
    %v1432 = vpow.pop %v1431
    %v1433 = vadd.f32 %v1432, 1.0
    %v1434 = vrcp.pop %v1433
    %v1435 = vmul.f32 %v1433, %v1434
    %v1436 = vsub.f32 1.0, %v1435
    %v1437 = vmul.f32 %v1434, %v1436
    %v1438 = vadd.f32 %v1434, %v1437
    %vm1439 = vweird.f32 %v1433
    %vm1440 = vweird.f32 %v1434
    %vm1441 = vmor %vm1439, %vm1440
    %v1442 = vsel %vm1441, %v1434, %v1438
    %v1443 = vand.u32 2147483647, %v1433
    %vm1444 = vcmp.eq.f32.partialorder %v1443, 8.507059e+37
    %v1445 = vand.u32 %v1433, 2147483648
    %v1446 = vor.u32 1.1754944e-38, %v1445
    %v1447 = vsel %vm1444, %v1446, %v1442
    %v1448 = vmul.f32 1.0, %v1447
    %v1449 = vtanh.pop %v1429
    %v1450 = vmul.f32 %v1448, %v1325
    %1452 = vrot.lane.b32.xlu0 %v1449, 96
    %v1453 = vpop.permute.xlu0 %1452
    %v1455 = vmul.f32 %v1448, %v1453
    %1457 = vrot.lane.b32.xlu0 %v1455, 16
    %v1458 = vpop.permute.xlu0 %1457
    %v1460 = vadd.f32 %v1450, %v1458
    %v1461 = vtanh.pop %v1460
    %1463 = vrot.lane.b32.xlu0 %v1461, 32
    %v1464 = vpop.permute.xlu0 %1463
    %v1466 = vmul.f32 %v1448, %v1464
    %1468 = vrot.lane.b32.xlu0 %v1466, 80
    %v1469 = vpop.permute.xlu0 %1468
    %1471 = vst.msk [vmem:[#allocation3 + $0x40] sm:$0xff] %vm246, %v1469
    %v1472 = vld [vmem:[#allocation2 + $0x48] sm:$0xff]
    %v1473 = vsel %vm246, %v1400, 0
    %1475 = vmatpush.msra.mxu0 0.0
    %1476 = vmatpush.msra.mxu0 0.0
    %1477 = vmatpush.msra.mxu0 0.0
    %1478 = vmatpush.msra.mxu0 0.0
    %1479 = vmatpush.msra.mxu0 0.0
    %1480 = vmatpush.msra.mxu0 0.0
    %1481 = vmatpush.msra.mxu0 0.0
    %1482 = vmatpush.msra.mxu0 0.0
    %1483 = vmatpush.msra.mxu0 0.0
    %1484 = vmatpush.msra.mxu0 0.0
    %1485 = vmatpush.msra.mxu0 0.0
    %1486 = vmatpush.msra.mxu0 0.0
    %1487 = vmatpush.msra.mxu0 0.0
    %1488 = vmatpush.msra.mxu0 0.0
    %1489 = vmatpush.msra.mxu0 %v26
    %1490 = vmatpush.msra.mxu0 %v25
    %1491 = vmatmul.f32.gmra.mxu0 %v1473
    %v1492 = vpop.f32.mrf.mxu0
    %v1493 = vadd.f32 0.0, %v1492
    %1494 = vdwg.mxu0
    %v1495 = vadd.f32 %v1472, %v1493
    %v1496 = vxor.u32 %v1495, 2147483648
    %v1497 = vmul.f32 %v1496, 1.442695
    %v1498 = vpow.pop %v1497
    %v1499 = vadd.f32 %v1498, 1.0
    %v1500 = vrcp.pop %v1499
    %v1501 = vmul.f32 %v1499, %v1500
    %v1502 = vsub.f32 1.0, %v1501
    %v1503 = vmul.f32 %v1500, %v1502
    %v1504 = vadd.f32 %v1500, %v1503
    %vm1505 = vweird.f32 %v1499
    %vm1506 = vweird.f32 %v1500
    %vm1507 = vmor %vm1505, %vm1506
    %v1508 = vsel %vm1507, %v1500, %v1504
    %v1509 = vand.u32 2147483647, %v1499
    %vm1510 = vcmp.eq.f32.partialorder %v1509, 8.507059e+37
    %v1511 = vand.u32 %v1499, 2147483648
    %v1512 = vor.u32 1.1754944e-38, %v1511
    %v1513 = vsel %vm1510, %v1512, %v1508
    %v1514 = vmul.f32 1.0, %v1513
    %v1515 = vtanh.pop %v1495
    %v1516 = vmul.f32 %v1514, %v1391
    %1518 = vrot.lane.b32.xlu0 %v1515, 96
    %v1519 = vpop.permute.xlu0 %1518
    %v1521 = vmul.f32 %v1514, %v1519
    %1523 = vrot.lane.b32.xlu0 %v1521, 16
    %v1524 = vpop.permute.xlu0 %1523
    %v1526 = vadd.f32 %v1516, %v1524
    %v1527 = vtanh.pop %v1526
    %1529 = vrot.lane.b32.xlu0 %v1527, 32
    %v1530 = vpop.permute.xlu0 %1529
    %v1532 = vmul.f32 %v1514, %v1530
    %1534 = vrot.lane.b32.xlu0 %v1532, 80
    %v1535 = vpop.permute.xlu0 %1534
    %1537 = vrot.lane.b32.xlu0 %v1466, 96
    %v1538 = vpop.permute.xlu0 %1537
    %v1540 = vsel %vm246, %v1535, %v1538
    %v1542 = vsel %vm321, %v1540, 0
    %1544 = vmatpush.msra.mxu0 0.0
    %1545 = vmatpush.msra.mxu0 0.0
    %1546 = vmatpush.msra.mxu0 0.0
    %1547 = vmatpush.msra.mxu0 0.0
    %1548 = vmatpush.msra.mxu0 0.0
    %1549 = vmatpush.msra.mxu0 0.0
    %1550 = vmatpush.msra.mxu0 0.0
    %1551 = vmatpush.msra.mxu0 0.0
    %1552 = vmatpush.msra.mxu0 0.0
    %1553 = vmatpush.msra.mxu0 0.0
    %1554 = vmatpush.msra.mxu0 0.0
    %1555 = vmatpush.msra.mxu0 0.0
    %1556 = vmatpush.msra.mxu0 %v30
    %1557 = vmatpush.msra.mxu0 %v29
    %1558 = vmatpush.msra.mxu0 %v28
    %1559 = vmatpush.msra.mxu0 %v27
    %1560 = vmatmul.f32.gmra.mxu0 %v1542
    %v1561 = vpop.f32.mrf.mxu0
    %v1562 = vadd.f32 0.0, %v1561
    %1563 = vdwg.mxu0
    %v1564 = vadd.f32 %v35, %v1562
    %v1565 = vxor.u32 %v1564, 2147483648
    %v1566 = vmul.f32 %v1565, 1.442695
    %v1567 = vpow.pop %v1566
    %v1568 = vadd.f32 %v1567, 1.0
    %v1569 = vrcp.pop %v1568
    %v1570 = vmul.f32 %v1568, %v1569
    %v1571 = vsub.f32 1.0, %v1570
    %v1572 = vmul.f32 %v1569, %v1571
    %v1573 = vadd.f32 %v1569, %v1572
    %vm1574 = vweird.f32 %v1568
    %vm1575 = vweird.f32 %v1569
    %vm1576 = vmor %vm1574, %vm1575
    %v1577 = vsel %vm1576, %v1569, %v1573
    %v1578 = vand.u32 2147483647, %v1568
    %vm1579 = vcmp.eq.f32.partialorder %v1578, 8.507059e+37
    %v1580 = vand.u32 %v1568, 2147483648
    %v1581 = vor.u32 1.1754944e-38, %v1580
    %v1582 = vsel %vm1579, %v1581, %v1577
    %v1583 = vmul.f32 1.0, %v1582
    %v1584 = vtanh.pop %v1564
    %v1585 = vmul.f32 %v1583, %v1460
    %1587 = vrot.lane.b32.xlu0 %v1584, 96
    %v1588 = vpop.permute.xlu0 %1587
    %v1590 = vmul.f32 %v1583, %v1588
    %1592 = vrot.lane.b32.xlu0 %v1590, 16
    %v1593 = vpop.permute.xlu0 %1592
    %v1595 = vadd.f32 %v1585, %v1593
    %v1596 = vtanh.pop %v1595
    %1598 = vrot.lane.b32.xlu0 %v1596, 32
    %v1599 = vpop.permute.xlu0 %1598
    %v1601 = vmul.f32 %v1583, %v1599
    %1603 = vrot.lane.b32.xlu0 %v1601, 80
    %v1604 = vpop.permute.xlu0 %1603
    %1606 = vst.msk [vmem:[#allocation3 + $0x48] sm:$0xff] %vm246, %v1604
    %v1607 = vld [vmem:[#allocation2 + $0x50] sm:$0xff]
    %v1608 = vsel %vm246, %v1535, 0
    %1610 = vmatpush.msra.mxu0 0.0
    %1611 = vmatpush.msra.mxu0 0.0
    %1612 = vmatpush.msra.mxu0 0.0
    %1613 = vmatpush.msra.mxu0 0.0
    %1614 = vmatpush.msra.mxu0 0.0
    %1615 = vmatpush.msra.mxu0 0.0
    %1616 = vmatpush.msra.mxu0 0.0
    %1617 = vmatpush.msra.mxu0 0.0
    %1618 = vmatpush.msra.mxu0 0.0
    %1619 = vmatpush.msra.mxu0 0.0
    %1620 = vmatpush.msra.mxu0 0.0
    %1621 = vmatpush.msra.mxu0 0.0
    %1622 = vmatpush.msra.mxu0 0.0
    %1623 = vmatpush.msra.mxu0 0.0
    %1624 = vmatpush.msra.mxu0 %v26
    %1625 = vmatpush.msra.mxu0 %v25
    %1626 = vmatmul.f32.gmra.mxu0 %v1608
    %v1627 = vpop.f32.mrf.mxu0
    %v1628 = vadd.f32 0.0, %v1627
    %1629 = vdwg.mxu0
    %v1630 = vadd.f32 %v1607, %v1628
    %v1631 = vxor.u32 %v1630, 2147483648
    %v1632 = vmul.f32 %v1631, 1.442695
    %v1633 = vpow.pop %v1632
    %v1634 = vadd.f32 %v1633, 1.0
    %v1635 = vrcp.pop %v1634
    %v1636 = vmul.f32 %v1634, %v1635
    %v1637 = vsub.f32 1.0, %v1636
    %v1638 = vmul.f32 %v1635, %v1637
    %v1639 = vadd.f32 %v1635, %v1638
    %vm1640 = vweird.f32 %v1634
    %vm1641 = vweird.f32 %v1635
    %vm1642 = vmor %vm1640, %vm1641
    %v1643 = vsel %vm1642, %v1635, %v1639
    %v1644 = vand.u32 2147483647, %v1634
    %vm1645 = vcmp.eq.f32.partialorder %v1644, 8.507059e+37
    %v1646 = vand.u32 %v1634, 2147483648
    %v1647 = vor.u32 1.1754944e-38, %v1646
    %v1648 = vsel %vm1645, %v1647, %v1643
    %v1649 = vmul.f32 1.0, %v1648
    %v1650 = vtanh.pop %v1630
    %v1651 = vmul.f32 %v1649, %v1526
    %1653 = vrot.lane.b32.xlu0 %v1650, 96
    %v1654 = vpop.permute.xlu0 %1653
    %v1656 = vmul.f32 %v1649, %v1654
    %1658 = vrot.lane.b32.xlu0 %v1656, 16
    %v1659 = vpop.permute.xlu0 %1658
    %v1661 = vadd.f32 %v1651, %v1659
    %v1662 = vtanh.pop %v1661
    %1664 = vrot.lane.b32.xlu0 %v1662, 32
    %v1665 = vpop.permute.xlu0 %1664
    %v1667 = vmul.f32 %v1649, %v1665
    %1669 = vrot.lane.b32.xlu0 %v1667, 80
    %v1670 = vpop.permute.xlu0 %1669
    %1672 = vrot.lane.b32.xlu0 %v1601, 96
    %v1673 = vpop.permute.xlu0 %1672
    %v1675 = vsel %vm246, %v1670, %v1673
    %v1677 = vsel %vm321, %v1675, 0
    %1679 = vmatpush.msra.mxu0 0.0
    %1680 = vmatpush.msra.mxu0 0.0
    %1681 = vmatpush.msra.mxu0 0.0
    %1682 = vmatpush.msra.mxu0 0.0
    %1683 = vmatpush.msra.mxu0 0.0
    %1684 = vmatpush.msra.mxu0 0.0
    %1685 = vmatpush.msra.mxu0 0.0
    %1686 = vmatpush.msra.mxu0 0.0
    %1687 = vmatpush.msra.mxu0 0.0
    %1688 = vmatpush.msra.mxu0 0.0
    %1689 = vmatpush.msra.mxu0 0.0
    %1690 = vmatpush.msra.mxu0 0.0
    %1691 = vmatpush.msra.mxu0 %v30
    %1692 = vmatpush.msra.mxu0 %v29
    %1693 = vmatpush.msra.mxu0 %v28
    %1694 = vmatpush.msra.mxu0 %v27
    %1695 = vmatmul.f32.gmra.mxu0 %v1677
    %v1696 = vpop.f32.mrf.mxu0
    %v1697 = vadd.f32 0.0, %v1696
    %1698 = vdwg.mxu0
    %v1699 = vadd.f32 %v35, %v1697
    %v1700 = vxor.u32 %v1699, 2147483648
    %v1701 = vmul.f32 %v1700, 1.442695
    %v1702 = vpow.pop %v1701
    %v1703 = vadd.f32 %v1702, 1.0
    %v1704 = vrcp.pop %v1703
    %v1705 = vmul.f32 %v1703, %v1704
    %v1706 = vsub.f32 1.0, %v1705
    %v1707 = vmul.f32 %v1704, %v1706
    %v1708 = vadd.f32 %v1704, %v1707
    %vm1709 = vweird.f32 %v1703
    %vm1710 = vweird.f32 %v1704
    %vm1711 = vmor %vm1709, %vm1710
    %v1712 = vsel %vm1711, %v1704, %v1708
    %v1713 = vand.u32 2147483647, %v1703
    %vm1714 = vcmp.eq.f32.partialorder %v1713, 8.507059e+37
    %v1715 = vand.u32 %v1703, 2147483648
    %v1716 = vor.u32 1.1754944e-38, %v1715
    %v1717 = vsel %vm1714, %v1716, %v1712
    %v1718 = vmul.f32 1.0, %v1717
    %v1719 = vtanh.pop %v1699
    %v1720 = vmul.f32 %v1718, %v1595
    %1722 = vrot.lane.b32.xlu0 %v1719, 96
    %v1723 = vpop.permute.xlu0 %1722
    %v1725 = vmul.f32 %v1718, %v1723
    %1727 = vrot.lane.b32.xlu0 %v1725, 16
    %v1728 = vpop.permute.xlu0 %1727
    %v1730 = vadd.f32 %v1720, %v1728
    %v1731 = vtanh.pop %v1730
    %1733 = vrot.lane.b32.xlu0 %v1731, 32
    %v1734 = vpop.permute.xlu0 %1733
    %v1736 = vmul.f32 %v1718, %v1734
    %1738 = vrot.lane.b32.xlu0 %v1736, 80
    %v1739 = vpop.permute.xlu0 %1738
    %1741 = vst.msk [vmem:[#allocation3 + $0x50] sm:$0xff] %vm246, %v1739
    %v1742 = vld [vmem:[#allocation2 + $0x58] sm:$0xff]
    %v1743 = vsel %vm246, %v1670, 0
    %1745 = vmatpush.msra.mxu0 0.0
    %1746 = vmatpush.msra.mxu0 0.0
    %1747 = vmatpush.msra.mxu0 0.0
    %1748 = vmatpush.msra.mxu0 0.0
    %1749 = vmatpush.msra.mxu0 0.0
    %1750 = vmatpush.msra.mxu0 0.0
    %1751 = vmatpush.msra.mxu0 0.0
    %1752 = vmatpush.msra.mxu0 0.0
    %1753 = vmatpush.msra.mxu0 0.0
    %1754 = vmatpush.msra.mxu0 0.0
    %1755 = vmatpush.msra.mxu0 0.0
    %1756 = vmatpush.msra.mxu0 0.0
    %1757 = vmatpush.msra.mxu0 0.0
    %1758 = vmatpush.msra.mxu0 0.0
    %1759 = vmatpush.msra.mxu0 %v26
    %1760 = vmatpush.msra.mxu0 %v25
    %1761 = vmatmul.f32.gmra.mxu0 %v1743
    %v1762 = vpop.f32.mrf.mxu0
    %v1763 = vadd.f32 0.0, %v1762
    %1764 = vdwg.mxu0
    %v1765 = vadd.f32 %v1742, %v1763
    %v1766 = vxor.u32 %v1765, 2147483648
    %v1767 = vmul.f32 %v1766, 1.442695
    %v1768 = vpow.pop %v1767
    %v1769 = vadd.f32 %v1768, 1.0
    %v1770 = vrcp.pop %v1769
    %v1771 = vmul.f32 %v1769, %v1770
    %v1772 = vsub.f32 1.0, %v1771
    %v1773 = vmul.f32 %v1770, %v1772
    %v1774 = vadd.f32 %v1770, %v1773
    %vm1775 = vweird.f32 %v1769
    %vm1776 = vweird.f32 %v1770
    %vm1777 = vmor %vm1775, %vm1776
    %v1778 = vsel %vm1777, %v1770, %v1774
    %v1779 = vand.u32 2147483647, %v1769
    %vm1780 = vcmp.eq.f32.partialorder %v1779, 8.507059e+37
    %v1781 = vand.u32 %v1769, 2147483648
    %v1782 = vor.u32 1.1754944e-38, %v1781
    %v1783 = vsel %vm1780, %v1782, %v1778
    %v1784 = vmul.f32 1.0, %v1783
    %v1785 = vtanh.pop %v1765
    %v1786 = vmul.f32 %v1784, %v1661
    %1788 = vrot.lane.b32.xlu0 %v1785, 96
    %v1789 = vpop.permute.xlu0 %1788
    %v1791 = vmul.f32 %v1784, %v1789
    %1793 = vrot.lane.b32.xlu0 %v1791, 16
    %v1794 = vpop.permute.xlu0 %1793
    %v1796 = vadd.f32 %v1786, %v1794
    %v1797 = vtanh.pop %v1796
    %1799 = vrot.lane.b32.xlu0 %v1797, 32
    %v1800 = vpop.permute.xlu0 %1799
    %v1802 = vmul.f32 %v1784, %v1800
    %1804 = vrot.lane.b32.xlu0 %v1802, 80
    %v1805 = vpop.permute.xlu0 %1804
    %1807 = vrot.lane.b32.xlu0 %v1736, 96
    %v1808 = vpop.permute.xlu0 %1807
    %v1810 = vsel %vm246, %v1805, %v1808
    %v1812 = vsel %vm321, %v1810, 0
    %1814 = vmatpush.msra.mxu0 0.0
    %1815 = vmatpush.msra.mxu0 0.0
    %1816 = vmatpush.msra.mxu0 0.0
    %1817 = vmatpush.msra.mxu0 0.0
    %1818 = vmatpush.msra.mxu0 0.0
    %1819 = vmatpush.msra.mxu0 0.0
    %1820 = vmatpush.msra.mxu0 0.0
    %1821 = vmatpush.msra.mxu0 0.0
    %1822 = vmatpush.msra.mxu0 0.0
    %1823 = vmatpush.msra.mxu0 0.0
    %1824 = vmatpush.msra.mxu0 0.0
    %1825 = vmatpush.msra.mxu0 0.0
    %1826 = vmatpush.msra.mxu0 %v30
    %1827 = vmatpush.msra.mxu0 %v29
    %1828 = vmatpush.msra.mxu0 %v28
    %1829 = vmatpush.msra.mxu0 %v27
    %1830 = vmatmul.f32.gmra.mxu0 %v1812
    %v1831 = vpop.f32.mrf.mxu0
    %v1832 = vadd.f32 0.0, %v1831
    %1833 = vdwg.mxu0
    %v1834 = vadd.f32 %v35, %v1832
    %v1835 = vxor.u32 %v1834, 2147483648
    %v1836 = vmul.f32 %v1835, 1.442695
    %v1837 = vpow.pop %v1836
    %v1838 = vadd.f32 %v1837, 1.0
    %v1839 = vrcp.pop %v1838
    %v1840 = vmul.f32 %v1838, %v1839
    %v1841 = vsub.f32 1.0, %v1840
    %v1842 = vmul.f32 %v1839, %v1841
    %v1843 = vadd.f32 %v1839, %v1842
    %vm1844 = vweird.f32 %v1838
    %vm1845 = vweird.f32 %v1839
    %vm1846 = vmor %vm1844, %vm1845
    %v1847 = vsel %vm1846, %v1839, %v1843
    %v1848 = vand.u32 2147483647, %v1838
    %vm1849 = vcmp.eq.f32.partialorder %v1848, 8.507059e+37
    %v1850 = vand.u32 %v1838, 2147483648
    %v1851 = vor.u32 1.1754944e-38, %v1850
    %v1852 = vsel %vm1849, %v1851, %v1847
    %v1853 = vmul.f32 1.0, %v1852
    %v1854 = vtanh.pop %v1834
    %v1855 = vmul.f32 %v1853, %v1730
    %1857 = vrot.lane.b32.xlu0 %v1854, 96
    %v1858 = vpop.permute.xlu0 %1857
    %v1860 = vmul.f32 %v1853, %v1858
    %1862 = vrot.lane.b32.xlu0 %v1860, 16
    %v1863 = vpop.permute.xlu0 %1862
    %v1865 = vadd.f32 %v1855, %v1863
    %v1866 = vtanh.pop %v1865
    %1868 = vrot.lane.b32.xlu0 %v1866, 32
    %v1869 = vpop.permute.xlu0 %1868
    %v1871 = vmul.f32 %v1853, %v1869
    %1873 = vrot.lane.b32.xlu0 %v1871, 80
    %v1874 = vpop.permute.xlu0 %1873
    %1876 = vst.msk [vmem:[#allocation3 + $0x58] sm:$0xff] %vm246, %v1874
    %v1877 = vld [vmem:[#allocation2 + $0x60] sm:$0xff]
    %v1878 = vsel %vm246, %v1805, 0
    %1880 = vmatpush.msra.mxu0 0.0
    %1881 = vmatpush.msra.mxu0 0.0
    %1882 = vmatpush.msra.mxu0 0.0
    %1883 = vmatpush.msra.mxu0 0.0
    %1884 = vmatpush.msra.mxu0 0.0
    %1885 = vmatpush.msra.mxu0 0.0
    %1886 = vmatpush.msra.mxu0 0.0
    %1887 = vmatpush.msra.mxu0 0.0
    %1888 = vmatpush.msra.mxu0 0.0
    %1889 = vmatpush.msra.mxu0 0.0
    %1890 = vmatpush.msra.mxu0 0.0
    %1891 = vmatpush.msra.mxu0 0.0
    %1892 = vmatpush.msra.mxu0 0.0
    %1893 = vmatpush.msra.mxu0 0.0
    %1894 = vmatpush.msra.mxu0 %v26
    %1895 = vmatpush.msra.mxu0 %v25
    %1896 = vmatmul.f32.gmra.mxu0 %v1878
    %v1897 = vpop.f32.mrf.mxu0
    %v1898 = vadd.f32 0.0, %v1897
    %1899 = vdwg.mxu0
    %v1900 = vadd.f32 %v1877, %v1898
    %v1901 = vxor.u32 %v1900, 2147483648
    %v1902 = vmul.f32 %v1901, 1.442695
    %v1903 = vpow.pop %v1902
    %v1904 = vadd.f32 %v1903, 1.0
    %v1905 = vrcp.pop %v1904
    %v1906 = vmul.f32 %v1904, %v1905
    %v1907 = vsub.f32 1.0, %v1906
    %v1908 = vmul.f32 %v1905, %v1907
    %v1909 = vadd.f32 %v1905, %v1908
    %vm1910 = vweird.f32 %v1904
    %vm1911 = vweird.f32 %v1905
    %vm1912 = vmor %vm1910, %vm1911
    %v1913 = vsel %vm1912, %v1905, %v1909
    %v1914 = vand.u32 2147483647, %v1904
    %vm1915 = vcmp.eq.f32.partialorder %v1914, 8.507059e+37
    %v1916 = vand.u32 %v1904, 2147483648
    %v1917 = vor.u32 1.1754944e-38, %v1916
    %v1918 = vsel %vm1915, %v1917, %v1913
    %v1919 = vmul.f32 1.0, %v1918
    %v1920 = vtanh.pop %v1900
    %v1921 = vmul.f32 %v1919, %v1796
    %1923 = vrot.lane.b32.xlu0 %v1920, 96
    %v1924 = vpop.permute.xlu0 %1923
    %v1926 = vmul.f32 %v1919, %v1924
    %1928 = vrot.lane.b32.xlu0 %v1926, 16
    %v1929 = vpop.permute.xlu0 %1928
    %v1931 = vadd.f32 %v1921, %v1929
    %v1932 = vtanh.pop %v1931
    %1934 = vrot.lane.b32.xlu0 %v1932, 32
    %v1935 = vpop.permute.xlu0 %1934
    %v1937 = vmul.f32 %v1919, %v1935
    %1939 = vrot.lane.b32.xlu0 %v1937, 80
    %v1940 = vpop.permute.xlu0 %1939
    %1942 = vrot.lane.b32.xlu0 %v1871, 96
    %v1943 = vpop.permute.xlu0 %1942
    %v1945 = vsel %vm246, %v1940, %v1943
    %v1947 = vsel %vm321, %v1945, 0
    %1949 = vmatpush.msra.mxu0 0.0
    %1950 = vmatpush.msra.mxu0 0.0
    %1951 = vmatpush.msra.mxu0 0.0
    %1952 = vmatpush.msra.mxu0 0.0
    %1953 = vmatpush.msra.mxu0 0.0
    %1954 = vmatpush.msra.mxu0 0.0
    %1955 = vmatpush.msra.mxu0 0.0
    %1956 = vmatpush.msra.mxu0 0.0
    %1957 = vmatpush.msra.mxu0 0.0
    %1958 = vmatpush.msra.mxu0 0.0
    %1959 = vmatpush.msra.mxu0 0.0
    %1960 = vmatpush.msra.mxu0 0.0
    %1961 = vmatpush.msra.mxu0 %v30
    %1962 = vmatpush.msra.mxu0 %v29
    %1963 = vmatpush.msra.mxu0 %v28
    %1964 = vmatpush.msra.mxu0 %v27
    %1965 = vmatmul.f32.gmra.mxu0 %v1947
    %v1966 = vpop.f32.mrf.mxu0
    %v1967 = vadd.f32 0.0, %v1966
    %1968 = vdwg.mxu0
    %v1969 = vadd.f32 %v35, %v1967
    %v1970 = vxor.u32 %v1969, 2147483648
    %v1971 = vmul.f32 %v1970, 1.442695
    %v1972 = vpow.pop %v1971
    %v1973 = vadd.f32 %v1972, 1.0
    %v1974 = vrcp.pop %v1973
    %v1975 = vmul.f32 %v1973, %v1974
    %v1976 = vsub.f32 1.0, %v1975
    %v1977 = vmul.f32 %v1974, %v1976
    %v1978 = vadd.f32 %v1974, %v1977
    %vm1979 = vweird.f32 %v1973
    %vm1980 = vweird.f32 %v1974
    %vm1981 = vmor %vm1979, %vm1980
    %v1982 = vsel %vm1981, %v1974, %v1978
    %v1983 = vand.u32 2147483647, %v1973
    %vm1984 = vcmp.eq.f32.partialorder %v1983, 8.507059e+37
    %v1985 = vand.u32 %v1973, 2147483648
    %v1986 = vor.u32 1.1754944e-38, %v1985
    %v1987 = vsel %vm1984, %v1986, %v1982
    %v1988 = vmul.f32 1.0, %v1987
    %v1989 = vtanh.pop %v1969
    %v1990 = vmul.f32 %v1988, %v1865
    %1992 = vrot.lane.b32.xlu0 %v1989, 96
    %v1993 = vpop.permute.xlu0 %1992
    %v1995 = vmul.f32 %v1988, %v1993
    %1997 = vrot.lane.b32.xlu0 %v1995, 16
    %v1998 = vpop.permute.xlu0 %1997
    %v2000 = vadd.f32 %v1990, %v1998
    %v2001 = vtanh.pop %v2000
    %2003 = vrot.lane.b32.xlu0 %v2001, 32
    %v2004 = vpop.permute.xlu0 %2003
    %v2006 = vmul.f32 %v1988, %v2004
    %2008 = vrot.lane.b32.xlu0 %v2006, 80
    %v2009 = vpop.permute.xlu0 %2008
    %2011 = vst.msk [vmem:[#allocation3 + $0x60] sm:$0xff] %vm246, %v2009
    %v2012 = vld [vmem:[#allocation2 + $0x68] sm:$0xff]
    %v2013 = vsel %vm246, %v1940, 0
    %2015 = vmatpush.msra.mxu0 0.0
    %2016 = vmatpush.msra.mxu0 0.0
    %2017 = vmatpush.msra.mxu0 0.0
    %2018 = vmatpush.msra.mxu0 0.0
    %2019 = vmatpush.msra.mxu0 0.0
    %2020 = vmatpush.msra.mxu0 0.0
    %2021 = vmatpush.msra.mxu0 0.0
    %2022 = vmatpush.msra.mxu0 0.0
    %2023 = vmatpush.msra.mxu0 0.0
    %2024 = vmatpush.msra.mxu0 0.0
    %2025 = vmatpush.msra.mxu0 0.0
    %2026 = vmatpush.msra.mxu0 0.0
    %2027 = vmatpush.msra.mxu0 0.0
    %2028 = vmatpush.msra.mxu0 0.0
    %2029 = vmatpush.msra.mxu0 %v26
    %2030 = vmatpush.msra.mxu0 %v25
    %2031 = vmatmul.f32.gmra.mxu0 %v2013
    %v2032 = vpop.f32.mrf.mxu0
    %v2033 = vadd.f32 0.0, %v2032
    %2034 = vdwg.mxu0
    %v2035 = vadd.f32 %v2012, %v2033
    %v2036 = vxor.u32 %v2035, 2147483648
    %v2037 = vmul.f32 %v2036, 1.442695
    %v2038 = vpow.pop %v2037
    %v2039 = vadd.f32 %v2038, 1.0
    %v2040 = vrcp.pop %v2039
    %v2041 = vmul.f32 %v2039, %v2040
    %v2042 = vsub.f32 1.0, %v2041
    %v2043 = vmul.f32 %v2040, %v2042
    %v2044 = vadd.f32 %v2040, %v2043
    %vm2045 = vweird.f32 %v2039
    %vm2046 = vweird.f32 %v2040
    %vm2047 = vmor %vm2045, %vm2046
    %v2048 = vsel %vm2047, %v2040, %v2044
    %v2049 = vand.u32 2147483647, %v2039
    %vm2050 = vcmp.eq.f32.partialorder %v2049, 8.507059e+37
    %v2051 = vand.u32 %v2039, 2147483648
    %v2052 = vor.u32 1.1754944e-38, %v2051
    %v2053 = vsel %vm2050, %v2052, %v2048
    %v2054 = vmul.f32 1.0, %v2053
    %v2055 = vtanh.pop %v2035
    %v2056 = vmul.f32 %v2054, %v1931
    %2058 = vrot.lane.b32.xlu0 %v2055, 96
    %v2059 = vpop.permute.xlu0 %2058
    %v2061 = vmul.f32 %v2054, %v2059
    %2063 = vrot.lane.b32.xlu0 %v2061, 16
    %v2064 = vpop.permute.xlu0 %2063
    %v2066 = vadd.f32 %v2056, %v2064
    %v2067 = vtanh.pop %v2066
    %2069 = vrot.lane.b32.xlu0 %v2067, 32
    %v2070 = vpop.permute.xlu0 %2069
    %v2072 = vmul.f32 %v2054, %v2070
    %2074 = vrot.lane.b32.xlu0 %v2072, 80
    %v2075 = vpop.permute.xlu0 %2074
    %2077 = vrot.lane.b32.xlu0 %v2006, 96
    %v2078 = vpop.permute.xlu0 %2077
    %v2080 = vsel %vm246, %v2075, %v2078
    %v2082 = vsel %vm321, %v2080, 0
    %2084 = vmatpush.msra.mxu0 0.0
    %2085 = vmatpush.msra.mxu0 0.0
    %2086 = vmatpush.msra.mxu0 0.0
    %2087 = vmatpush.msra.mxu0 0.0
    %2088 = vmatpush.msra.mxu0 0.0
    %2089 = vmatpush.msra.mxu0 0.0
    %2090 = vmatpush.msra.mxu0 0.0
    %2091 = vmatpush.msra.mxu0 0.0
    %2092 = vmatpush.msra.mxu0 0.0
    %2093 = vmatpush.msra.mxu0 0.0
    %2094 = vmatpush.msra.mxu0 0.0
    %2095 = vmatpush.msra.mxu0 0.0
    %2096 = vmatpush.msra.mxu0 %v30
    %2097 = vmatpush.msra.mxu0 %v29
    %2098 = vmatpush.msra.mxu0 %v28
    %2099 = vmatpush.msra.mxu0 %v27
    %2100 = vmatmul.f32.gmra.mxu0 %v2082
    %v2101 = vpop.f32.mrf.mxu0
    %v2102 = vadd.f32 0.0, %v2101
    %2103 = vdwg.mxu0
    %v2104 = vadd.f32 %v35, %v2102
    %v2105 = vxor.u32 %v2104, 2147483648
    %v2106 = vmul.f32 %v2105, 1.442695
    %v2107 = vpow.pop %v2106
    %v2108 = vadd.f32 %v2107, 1.0
    %v2109 = vrcp.pop %v2108
    %v2110 = vmul.f32 %v2108, %v2109
    %v2111 = vsub.f32 1.0, %v2110
    %v2112 = vmul.f32 %v2109, %v2111
    %v2113 = vadd.f32 %v2109, %v2112
    %vm2114 = vweird.f32 %v2108
    %vm2115 = vweird.f32 %v2109
    %vm2116 = vmor %vm2114, %vm2115
    %v2117 = vsel %vm2116, %v2109, %v2113
    %v2118 = vand.u32 2147483647, %v2108
    %vm2119 = vcmp.eq.f32.partialorder %v2118, 8.507059e+37
    %v2120 = vand.u32 %v2108, 2147483648
    %v2121 = vor.u32 1.1754944e-38, %v2120
    %v2122 = vsel %vm2119, %v2121, %v2117
    %v2123 = vmul.f32 1.0, %v2122
    %v2124 = vtanh.pop %v2104
    %v2125 = vmul.f32 %v2123, %v2000
    %2127 = vrot.lane.b32.xlu0 %v2124, 96
    %v2128 = vpop.permute.xlu0 %2127
    %v2130 = vmul.f32 %v2123, %v2128
    %2132 = vrot.lane.b32.xlu0 %v2130, 16
    %v2133 = vpop.permute.xlu0 %2132
    %v2135 = vadd.f32 %v2125, %v2133
    %v2136 = vtanh.pop %v2135
    %2138 = vrot.lane.b32.xlu0 %v2136, 32
    %v2139 = vpop.permute.xlu0 %2138
    %v2141 = vmul.f32 %v2123, %v2139
    %2143 = vrot.lane.b32.xlu0 %v2141, 80
    %v2144 = vpop.permute.xlu0 %2143
    %2146 = vst.msk [vmem:[#allocation3 + $0x68] sm:$0xff] %vm246, %v2144
    %v2147 = vld [vmem:[#allocation2 + $0x70] sm:$0xff]
    %v2148 = vsel %vm246, %v2075, 0
    %2150 = vmatpush.msra.mxu0 0.0
    %2151 = vmatpush.msra.mxu0 0.0
    %2152 = vmatpush.msra.mxu0 0.0
    %2153 = vmatpush.msra.mxu0 0.0
    %2154 = vmatpush.msra.mxu0 0.0
    %2155 = vmatpush.msra.mxu0 0.0
    %2156 = vmatpush.msra.mxu0 0.0
    %2157 = vmatpush.msra.mxu0 0.0
    %2158 = vmatpush.msra.mxu0 0.0
    %2159 = vmatpush.msra.mxu0 0.0
    %2160 = vmatpush.msra.mxu0 0.0
    %2161 = vmatpush.msra.mxu0 0.0
    %2162 = vmatpush.msra.mxu0 0.0
    %2163 = vmatpush.msra.mxu0 0.0
    %2164 = vmatpush.msra.mxu0 %v26
    %2165 = vmatpush.msra.mxu0 %v25
    %2166 = vmatmul.f32.gmra.mxu0 %v2148
    %v2167 = vpop.f32.mrf.mxu0
    %v2168 = vadd.f32 0.0, %v2167
    %2169 = vdwg.mxu0
    %v2170 = vadd.f32 %v2147, %v2168
    %v2171 = vxor.u32 %v2170, 2147483648
    %v2172 = vmul.f32 %v2171, 1.442695
    %v2173 = vpow.pop %v2172
    %v2174 = vadd.f32 %v2173, 1.0
    %v2175 = vrcp.pop %v2174
    %v2176 = vmul.f32 %v2174, %v2175
    %v2177 = vsub.f32 1.0, %v2176
    %v2178 = vmul.f32 %v2175, %v2177
    %v2179 = vadd.f32 %v2175, %v2178
    %vm2180 = vweird.f32 %v2174
    %vm2181 = vweird.f32 %v2175
    %vm2182 = vmor %vm2180, %vm2181
    %v2183 = vsel %vm2182, %v2175, %v2179
    %v2184 = vand.u32 2147483647, %v2174
    %vm2185 = vcmp.eq.f32.partialorder %v2184, 8.507059e+37
    %v2186 = vand.u32 %v2174, 2147483648
    %v2187 = vor.u32 1.1754944e-38, %v2186
    %v2188 = vsel %vm2185, %v2187, %v2183
    %v2189 = vmul.f32 1.0, %v2188
    %v2190 = vtanh.pop %v2170
    %v2191 = vmul.f32 %v2189, %v2066
    %2193 = vrot.lane.b32.xlu0 %v2190, 96
    %v2194 = vpop.permute.xlu0 %2193
    %v2196 = vmul.f32 %v2189, %v2194
    %2198 = vrot.lane.b32.xlu0 %v2196, 16
    %v2199 = vpop.permute.xlu0 %2198
    %v2201 = vadd.f32 %v2191, %v2199
    %v2202 = vtanh.pop %v2201
    %2204 = vrot.lane.b32.xlu0 %v2202, 32
    %v2205 = vpop.permute.xlu0 %2204
    %v2207 = vmul.f32 %v2189, %v2205
    %2209 = vrot.lane.b32.xlu0 %v2207, 80
    %v2210 = vpop.permute.xlu0 %2209
    %2212 = vrot.lane.b32.xlu0 %v2141, 96
    %v2213 = vpop.permute.xlu0 %2212
    %v2215 = vsel %vm246, %v2210, %v2213
    %v2217 = vsel %vm321, %v2215, 0
    %2219 = vmatpush.msra.mxu0 0.0
    %2220 = vmatpush.msra.mxu0 0.0
    %2221 = vmatpush.msra.mxu0 0.0
    %2222 = vmatpush.msra.mxu0 0.0
    %2223 = vmatpush.msra.mxu0 0.0
    %2224 = vmatpush.msra.mxu0 0.0
    %2225 = vmatpush.msra.mxu0 0.0
    %2226 = vmatpush.msra.mxu0 0.0
    %2227 = vmatpush.msra.mxu0 0.0
    %2228 = vmatpush.msra.mxu0 0.0
    %2229 = vmatpush.msra.mxu0 0.0
    %2230 = vmatpush.msra.mxu0 0.0
    %2231 = vmatpush.msra.mxu0 %v30
    %2232 = vmatpush.msra.mxu0 %v29
    %2233 = vmatpush.msra.mxu0 %v28
    %2234 = vmatpush.msra.mxu0 %v27
    %2235 = vmatmul.f32.gmra.mxu0 %v2217
    %v2236 = vpop.f32.mrf.mxu0
    %v2237 = vadd.f32 0.0, %v2236
    %2238 = vdwg.mxu0
    %v2239 = vadd.f32 %v35, %v2237
    %v2240 = vxor.u32 %v2239, 2147483648
    %v2241 = vmul.f32 %v2240, 1.442695
    %v2242 = vpow.pop %v2241
    %v2243 = vadd.f32 %v2242, 1.0
    %v2244 = vrcp.pop %v2243
    %v2245 = vmul.f32 %v2243, %v2244
    %v2246 = vsub.f32 1.0, %v2245
    %v2247 = vmul.f32 %v2244, %v2246
    %v2248 = vadd.f32 %v2244, %v2247
    %vm2249 = vweird.f32 %v2243
    %vm2250 = vweird.f32 %v2244
    %vm2251 = vmor %vm2249, %vm2250
    %v2252 = vsel %vm2251, %v2244, %v2248
    %v2253 = vand.u32 2147483647, %v2243
    %vm2254 = vcmp.eq.f32.partialorder %v2253, 8.507059e+37
    %v2255 = vand.u32 %v2243, 2147483648
    %v2256 = vor.u32 1.1754944e-38, %v2255
    %v2257 = vsel %vm2254, %v2256, %v2252
    %v2258 = vmul.f32 1.0, %v2257
    %v2259 = vtanh.pop %v2239
    %v2260 = vmul.f32 %v2258, %v2135
    %2262 = vrot.lane.b32.xlu0 %v2259, 96
    %v2263 = vpop.permute.xlu0 %2262
    %v2265 = vmul.f32 %v2258, %v2263
    %2267 = vrot.lane.b32.xlu0 %v2265, 16
    %v2268 = vpop.permute.xlu0 %2267
    %v2270 = vadd.f32 %v2260, %v2268
    %v2271 = vtanh.pop %v2270
    %2273 = vrot.lane.b32.xlu0 %v2271, 32
    %v2274 = vpop.permute.xlu0 %2273
    %v2276 = vmul.f32 %v2258, %v2274
    %2278 = vrot.lane.b32.xlu0 %v2276, 80
    %v2279 = vpop.permute.xlu0 %2278
    %2281 = vst.msk [vmem:[#allocation3 + $0x70] sm:$0xff] %vm246, %v2279
    %v2282 = vld [vmem:[#allocation2 + $0x78] sm:$0xff]
    %v2283 = vsel %vm246, %v2210, 0
    %2285 = vmatpush.msra.mxu0 0.0
    %2286 = vmatpush.msra.mxu0 0.0
    %2287 = vmatpush.msra.mxu0 0.0
    %2288 = vmatpush.msra.mxu0 0.0
    %2289 = vmatpush.msra.mxu0 0.0
    %2290 = vmatpush.msra.mxu0 0.0
    %2291 = vmatpush.msra.mxu0 0.0
    %2292 = vmatpush.msra.mxu0 0.0
    %2293 = vmatpush.msra.mxu0 0.0
    %2294 = vmatpush.msra.mxu0 0.0
    %2295 = vmatpush.msra.mxu0 0.0
    %2296 = vmatpush.msra.mxu0 0.0
    %2297 = vmatpush.msra.mxu0 0.0
    %2298 = vmatpush.msra.mxu0 0.0
    %2299 = vmatpush.msra.mxu0 %v26
    %2300 = vmatpush.msra.mxu0 %v25
    %2301 = vmatmul.f32.gmra.mxu0 %v2283
    %v2302 = vpop.f32.mrf.mxu0
    %v2303 = vadd.f32 0.0, %v2302
    %2304 = vdwg.mxu0
    %v2305 = vadd.f32 %v2282, %v2303
    %v2306 = vxor.u32 %v2305, 2147483648
    %v2307 = vmul.f32 %v2306, 1.442695
    %v2308 = vpow.pop %v2307
    %v2309 = vadd.f32 %v2308, 1.0
    %v2310 = vrcp.pop %v2309
    %v2311 = vmul.f32 %v2309, %v2310
    %v2312 = vsub.f32 1.0, %v2311
    %v2313 = vmul.f32 %v2310, %v2312
    %v2314 = vadd.f32 %v2310, %v2313
    %vm2315 = vweird.f32 %v2309
    %vm2316 = vweird.f32 %v2310
    %vm2317 = vmor %vm2315, %vm2316
    %v2318 = vsel %vm2317, %v2310, %v2314
    %v2319 = vand.u32 2147483647, %v2309
    %vm2320 = vcmp.eq.f32.partialorder %v2319, 8.507059e+37
    %v2321 = vand.u32 %v2309, 2147483648
    %v2322 = vor.u32 1.1754944e-38, %v2321
    %v2323 = vsel %vm2320, %v2322, %v2318
    %v2324 = vmul.f32 1.0, %v2323
    %v2325 = vtanh.pop %v2305
    %v2326 = vmul.f32 %v2324, %v2201
    %2328 = vrot.lane.b32.xlu0 %v2325, 96
    %v2329 = vpop.permute.xlu0 %2328
    %v2331 = vmul.f32 %v2324, %v2329
    %2333 = vrot.lane.b32.xlu0 %v2331, 16
    %v2334 = vpop.permute.xlu0 %2333
    %v2336 = vadd.f32 %v2326, %v2334
    %v2337 = vtanh.pop %v2336
    %2339 = vrot.lane.b32.xlu0 %v2337, 32
    %v2340 = vpop.permute.xlu0 %2339
    %v2342 = vmul.f32 %v2324, %v2340
    %2344 = vrot.lane.b32.xlu0 %v2342, 80
    %v2345 = vpop.permute.xlu0 %2344
    %2347 = vrot.lane.b32.xlu0 %v2276, 96
    %v2348 = vpop.permute.xlu0 %2347
    %v2350 = vsel %vm246, %v2345, %v2348
    %v2352 = vsel %vm321, %v2350, 0
    %2354 = vmatpush.msra.mxu0 0.0
    %2355 = vmatpush.msra.mxu0 0.0
    %2356 = vmatpush.msra.mxu0 0.0
    %2357 = vmatpush.msra.mxu0 0.0
    %2358 = vmatpush.msra.mxu0 0.0
    %2359 = vmatpush.msra.mxu0 0.0
    %2360 = vmatpush.msra.mxu0 0.0
    %2361 = vmatpush.msra.mxu0 0.0
    %2362 = vmatpush.msra.mxu0 0.0
    %2363 = vmatpush.msra.mxu0 0.0
    %2364 = vmatpush.msra.mxu0 0.0
    %2365 = vmatpush.msra.mxu0 0.0
    %2366 = vmatpush.msra.mxu0 %v30
    %2367 = vmatpush.msra.mxu0 %v29
    %2368 = vmatpush.msra.mxu0 %v28
    %2369 = vmatpush.msra.mxu0 %v27
    %2370 = vmatmul.f32.gmra.mxu0 %v2352
    %v2371 = vpop.f32.mrf.mxu0
    %v2372 = vadd.f32 0.0, %v2371
    %2373 = vdwg.mxu0
    %v2374 = vadd.f32 %v35, %v2372
    %v2375 = vxor.u32 %v2374, 2147483648
    %v2376 = vmul.f32 %v2375, 1.442695
    %v2377 = vpow.pop %v2376
    %v2378 = vadd.f32 %v2377, 1.0
    %v2379 = vrcp.pop %v2378
    %v2380 = vmul.f32 %v2378, %v2379
    %v2381 = vsub.f32 1.0, %v2380
    %v2382 = vmul.f32 %v2379, %v2381
    %v2383 = vadd.f32 %v2379, %v2382
    %vm2384 = vweird.f32 %v2378
    %vm2385 = vweird.f32 %v2379
    %vm2386 = vmor %vm2384, %vm2385
    %v2387 = vsel %vm2386, %v2379, %v2383
    %v2388 = vand.u32 2147483647, %v2378
    %vm2389 = vcmp.eq.f32.partialorder %v2388, 8.507059e+37
    %v2390 = vand.u32 %v2378, 2147483648
    %v2391 = vor.u32 1.1754944e-38, %v2390
    %v2392 = vsel %vm2389, %v2391, %v2387
    %v2393 = vmul.f32 1.0, %v2392
    %v2394 = vtanh.pop %v2374
    %v2395 = vmul.f32 %v2393, %v2270
    %2397 = vrot.lane.b32.xlu0 %v2394, 96
    %v2398 = vpop.permute.xlu0 %2397
    %v2400 = vmul.f32 %v2393, %v2398
    %2402 = vrot.lane.b32.xlu0 %v2400, 16
    %v2403 = vpop.permute.xlu0 %2402
    %v2405 = vadd.f32 %v2395, %v2403
    %v2406 = vtanh.pop %v2405
    %2408 = vrot.lane.b32.xlu0 %v2406, 32
    %v2409 = vpop.permute.xlu0 %2408
    %v2411 = vmul.f32 %v2393, %v2409
    %2413 = vrot.lane.b32.xlu0 %v2411, 80
    %v2414 = vpop.permute.xlu0 %2413
    %2416 = vst.msk [vmem:[#allocation3 + $0x78] sm:$0xff] %vm246, %v2414
    %v2417 = vld [vmem:[#allocation3] sm:$0xff]
    %v2418 = vld [vmem:[#allocation3 + $0x8] sm:$0xff]
    %v2419 = vld [vmem:[#allocation3 + $0x10] sm:$0xff]
    %v2420 = vld [vmem:[#allocation3 + $0x18] sm:$0xff]
    %v2421 = vld [vmem:[#allocation3 + $0x20] sm:$0xff]
    %v2422 = vld [vmem:[#allocation3 + $0x28] sm:$0xff]
    %v2423 = vld [vmem:[#allocation3 + $0x30] sm:$0xff]
    %v2424 = vld [vmem:[#allocation3 + $0x38] sm:$0xff]
    %v2425 = vld [vmem:[#allocation3 + $0x40] sm:$0xff]
    %v2426 = vld [vmem:[#allocation3 + $0x48] sm:$0xff]
    %v2427 = vld [vmem:[#allocation3 + $0x50] sm:$0xff]
    %v2428 = vld [vmem:[#allocation3 + $0x58] sm:$0xff]
    %v2429 = vld [vmem:[#allocation3 + $0x60] sm:$0xff]
    %v2430 = vld [vmem:[#allocation3 + $0x68] sm:$0xff]
    %v2431 = vld [vmem:[#allocation3 + $0x70] sm:$0xff]
    %v2432 = vld [vmem:[#allocation3 + $0x78] sm:$0xff]
    %v2433 = vmul.f32 %v2417, %v52
    %v2434 = vmul.f32 %v2418, %v52
    %v2435 = vmul.f32 %v2419, %v52
    %v2436 = vmul.f32 %v2420, %v52
    %v2437 = vmul.f32 %v2421, %v52
    %v2438 = vmul.f32 %v2422, %v52
    %v2439 = vmul.f32 %v2423, %v52
    %v2440 = vmul.f32 %v2424, %v52
    %v2441 = vmul.f32 %v2425, %v52
    %v2442 = vmul.f32 %v2426, %v52
    %v2443 = vmul.f32 %v2427, %v52
    %v2444 = vmul.f32 %v2428, %v52
    %v2445 = vmul.f32 %v2429, %v52
    %v2446 = vmul.f32 %v2430, %v52
    %v2447 = vmul.f32 %v2431, %v52
    %v2448 = vmul.f32 %v2432, %v52
    %v2449 = vsel %vm246, %v2433, 0.0
    %2450 = vadd.xlane.f32.xlu0 %v2449
    %v2451 = vpop.xlane.xlu0 %2450
    %v2452 = vsel %vm246, %v2434, 0.0
    %2453 = vadd.xlane.f32.xlu0 %v2452
    %v2454 = vpop.xlane.xlu0 %2453
    %v2455 = vsel %vm246, %v2435, 0.0
    %2456 = vadd.xlane.f32.xlu0 %v2455
    %v2457 = vpop.xlane.xlu0 %2456
    %v2458 = vsel %vm246, %v2436, 0.0
    %2459 = vadd.xlane.f32.xlu0 %v2458
    %v2460 = vpop.xlane.xlu0 %2459
    %v2461 = vsel %vm246, %v2437, 0.0
    %2462 = vadd.xlane.f32.xlu0 %v2461
    %v2463 = vpop.xlane.xlu0 %2462
    %v2464 = vsel %vm246, %v2438, 0.0
    %2465 = vadd.xlane.f32.xlu0 %v2464
    %v2466 = vpop.xlane.xlu0 %2465
    %v2467 = vsel %vm246, %v2439, 0.0
    %2468 = vadd.xlane.f32.xlu0 %v2467
    %v2469 = vpop.xlane.xlu0 %2468
    %v2470 = vsel %vm246, %v2440, 0.0
    %2471 = vadd.xlane.f32.xlu0 %v2470
    %v2472 = vpop.xlane.xlu0 %2471
    %v2473 = vsel %vm246, %v2441, 0.0
    %2474 = vadd.xlane.f32.xlu0 %v2473
    %v2475 = vpop.xlane.xlu0 %2474
    %v2476 = vsel %vm246, %v2442, 0.0
    %2477 = vadd.xlane.f32.xlu0 %v2476
    %v2478 = vpop.xlane.xlu0 %2477
    %v2479 = vsel %vm246, %v2443, 0.0
    %2480 = vadd.xlane.f32.xlu0 %v2479
    %v2481 = vpop.xlane.xlu0 %2480
    %v2482 = vsel %vm246, %v2444, 0.0
    %2483 = vadd.xlane.f32.xlu0 %v2482
    %v2484 = vpop.xlane.xlu0 %2483
    %v2485 = vsel %vm246, %v2445, 0.0
    %2486 = vadd.xlane.f32.xlu0 %v2485
    %v2487 = vpop.xlane.xlu0 %2486
    %v2488 = vsel %vm246, %v2446, 0.0
    %2489 = vadd.xlane.f32.xlu0 %v2488
    %v2490 = vpop.xlane.xlu0 %2489
    %v2491 = vsel %vm246, %v2447, 0.0
    %2492 = vadd.xlane.f32.xlu0 %v2491
    %v2493 = vpop.xlane.xlu0 %2492
    %v2494 = vsel %vm246, %v2448, 0.0
    %2495 = vadd.xlane.f32.xlu0 %v2494
    %v2496 = vpop.xlane.xlu0 %2495
    %v2497 = vadd.f32 %v2451, %v52
    %v2498 = vadd.f32 %v2454, %v52
    %v2499 = vadd.f32 %v2457, %v52
    %v2500 = vadd.f32 %v2460, %v52
    %v2501 = vadd.f32 %v2463, %v52
    %v2502 = vadd.f32 %v2466, %v52
    %v2503 = vadd.f32 %v2469, %v52
    %v2504 = vadd.f32 %v2472, %v52
    %v2505 = vadd.f32 %v2475, %v52
    %v2506 = vadd.f32 %v2478, %v52
    %v2507 = vadd.f32 %v2481, %v52
    %v2508 = vadd.f32 %v2484, %v52
    %v2509 = vadd.f32 %v2487, %v52
    %v2510 = vadd.f32 %v2490, %v52
    %v2511 = vadd.f32 %v2493, %v52
    %v2512 = vadd.f32 %v2496, %v52
    %2529 = vrot.lane.b32.xlu0 %v2497, 110
    %v2530 = vpop.permute.xlu0 %2529
    %2531 = vrot.lane.b32.xlu0 %v2498, 110
    %v2532 = vpop.permute.xlu0 %2531
    %2533 = vrot.lane.b32.xlu0 %v2499, 110
    %v2534 = vpop.permute.xlu0 %2533
    %2535 = vrot.lane.b32.xlu0 %v2500, 110
    %v2536 = vpop.permute.xlu0 %2535
    %2537 = vrot.lane.b32.xlu0 %v2501, 110
    %v2538 = vpop.permute.xlu0 %2537
    %2539 = vrot.lane.b32.xlu0 %v2502, 110
    %v2540 = vpop.permute.xlu0 %2539
    %2541 = vrot.lane.b32.xlu0 %v2503, 110
    %v2542 = vpop.permute.xlu0 %2541
    %2543 = vrot.lane.b32.xlu0 %v2504, 110
    %v2544 = vpop.permute.xlu0 %2543
    %2545 = vrot.lane.b32.xlu0 %v2505, 110
    %v2546 = vpop.permute.xlu0 %2545
    %2547 = vrot.lane.b32.xlu0 %v2506, 110
    %v2548 = vpop.permute.xlu0 %2547
    %2549 = vrot.lane.b32.xlu0 %v2507, 110
    %v2550 = vpop.permute.xlu0 %2549
    %2551 = vrot.lane.b32.xlu0 %v2508, 110
    %v2552 = vpop.permute.xlu0 %2551
    %2553 = vrot.lane.b32.xlu0 %v2509, 110
    %v2554 = vpop.permute.xlu0 %2553
    %2555 = vrot.lane.b32.xlu0 %v2510, 110
    %v2556 = vpop.permute.xlu0 %2555
    %2557 = vrot.lane.b32.xlu0 %v2511, 110
    %v2558 = vpop.permute.xlu0 %2557
    %2559 = vrot.lane.b32.xlu0 %v2512, 110
    %v2560 = vpop.permute.xlu0 %2559
    %vm2577 = vcmask 7168
    %2578 = vst.msk [vmem:[%s5] sm:$0xff] %vm2577, %v2530
    %2579 = vst.msk [vmem:[%s5 + $0x8] sm:$0xff] %vm2577, %v2532
    %2580 = vst.msk [vmem:[%s5 + $0x10] sm:$0xff] %vm2577, %v2534
    %2581 = vst.msk [vmem:[%s5 + $0x18] sm:$0xff] %vm2577, %v2536
    %2582 = vst.msk [vmem:[%s5 + $0x20] sm:$0xff] %vm2577, %v2538
    %2583 = vst.msk [vmem:[%s5 + $0x28] sm:$0xff] %vm2577, %v2540
    %2584 = vst.msk [vmem:[%s5 + $0x30] sm:$0xff] %vm2577, %v2542
    %2585 = vst.msk [vmem:[%s5 + $0x38] sm:$0xff] %vm2577, %v2544
    %2586 = vst.msk [vmem:[%s5 + $0x40] sm:$0xff] %vm2577, %v2546
    %2587 = vst.msk [vmem:[%s5 + $0x48] sm:$0xff] %vm2577, %v2548
    %2588 = vst.msk [vmem:[%s5 + $0x50] sm:$0xff] %vm2577, %v2550
    %2589 = vst.msk [vmem:[%s5 + $0x58] sm:$0xff] %vm2577, %v2552
    %2590 = vst.msk [vmem:[%s5 + $0x60] sm:$0xff] %vm2577, %v2554
    %2591 = vst.msk [vmem:[%s5 + $0x68] sm:$0xff] %vm2577, %v2556
    %2592 = vst.msk [vmem:[%s5 + $0x70] sm:$0xff] %vm2577, %v2558
    %2593 = vst.msk [vmem:[%s5 + $0x78] sm:$0xff] %vm2577, %v2560
    %2594 = vst.msk [vmem:[#allocation4] sm:$0xff] %vm246, %v2345
    %s2595 = scalar_lea.vmem [#allocation4], 8
    %2596 = vst.msk [vmem:[%s2595] sm:$0xff] %vm246, %v2414
    %2598 = vrot.lane.b32.xlu0 %v2336, 112
    %v2599 = vpop.permute.xlu0 %2598
    %2601 = vst.msk [vmem:[#allocation6] sm:$0xff] %vm246, %v2599
    %2603 = vrot.lane.b32.xlu0 %v2405, 112
    %v2604 = vpop.permute.xlu0 %2603
    %s2606 = scalar_lea.vmem [#allocation6], 8
    %2607 = vst.msk [vmem:[%s2606] sm:$0xff] %vm246, %v2604
    // Predicated region
    $region22: #{tpu_custom_call.1} parent=1 // pred_check
      _
    $region23: #{tpu_custom_call.1} parent=1 // pred_check_branch
      %2609 = sbr.rel (0) target = $region25
    $region24: #{tpu_custom_call.1} parent=1 // pred_region
      _
    $region25: #{tpu_custom_call.1} parent=1 // pred_fallthru
      _
    // Predicated region
    $region26: #{tpu_custom_call.1} parent=1 // pred_check
      _
    $region27: #{tpu_custom_call.1} parent=1 // pred_check_branch
      %2611 = sbr.rel (0) target = $region29
    $region28: #{tpu_custom_call.1} parent=1 // pred_region
      %2613 = vsyncadd [#allocation5], 0
      %s2614 = sshll.u32 [#allocation4], 4
      %s2615 = int_to_ptr.vmem [resolvable:$true] %s2614
      %s2616 = sshll.u32 %s6, 4
      %s2617 = int_to_ptr.hbm [resolvable:$true] %s2616
      %2622 = dma.vmem_to_hbm [thread:$0]  %s2615, 256, %s2617, [#allocation5], 128, 128, 8
    $region29: #{tpu_custom_call.1} parent=1 // pred_fallthru
      _
    // Predicated region
    $region30: #{tpu_custom_call.1} parent=1 // pred_check
      _
    $region31: #{tpu_custom_call.1} parent=1 // pred_check_branch
      %2624 = sbr.rel (0) target = $region33
    $region32: #{tpu_custom_call.1} parent=1 // pred_region
      %2626 = vsyncadd [#allocation7], 0
      %s2627 = sshll.u32 [#allocation6], 4
      %s2628 = int_to_ptr.vmem [resolvable:$true] %s2627
      %s2629 = sshll.u32 %s7, 4
      %s2630 = int_to_ptr.hbm [resolvable:$true] %s2629
      %2635 = dma.vmem_to_hbm [thread:$0]  %s2628, 256, %s2630, [#allocation7], 128, 128, 8
    $region33: #{tpu_custom_call.1} parent=1 // pred_fallthru
      _
    // Predicated region
    $region34: #{tpu_custom_call.1} parent=1 // pred_check
      _
    $region35: #{tpu_custom_call.1} parent=1 // pred_check_branch
      %2637 = sbr.rel (0) target = $region37
    $region36: #{tpu_custom_call.1} parent=1 // pred_region
      _
    $region37: #{tpu_custom_call.1} parent=1 // pred_fallthru
      _
    // Predicated region
    $region38: #{tpu_custom_call.1} parent=1 // pred_check
      _
    $region39: #{tpu_custom_call.1} parent=1 // pred_check_branch
      %2639 = sbr.rel (0) target = $region41
    $region40: #{tpu_custom_call.1} parent=1 // pred_region
      %2641 = dma.done [#allocation5], 256
    $region41: #{tpu_custom_call.1} parent=1 // pred_fallthru
      _
    // Predicated region
    $region42: #{tpu_custom_call.1} parent=1 // pred_check
      _
    $region43: #{tpu_custom_call.1} parent=1 // pred_check_branch
      %2643 = sbr.rel (0) target = $region45
    $region44: #{tpu_custom_call.1} parent=1 // pred_region
      %2645 = dma.done [#allocation7], 256
    $region45: #{tpu_custom_call.1} parent=1 // pred_fallthru
      _
    %2646 = vsyncpa [#allocation5], 1
    %2647 = vsyncpa [#allocation7], 1

</llo_original>
